<compile_context>
chip_gen: v7x
topology: tpu7x:2x2x1
jax: 0.10.0
libtpu: 0.0.40
codegen_flags: <defaults>
</compile_context>

<pallas_src>
import jax
import jax.numpy as jnp
from jax import lax
from jax.experimental import pallas as pl
from jax.experimental.pallas import tpu as pltpu


def _round_up(v, m):
    return -(-v // m) * m


def _vmem_tile_bytes(shape, dtype):
    """Rough padded VMEM footprint of one buffer ((8,128) tiling of last 2 dims)."""
    dims = [int(d) for d in shape]
    if len(dims) == 1:
        dims = [1] + dims
    dims[-1] = _round_up(dims[-1], 128)
    dims[-2] = _round_up(dims[-2], 8)
    n = 1
    for d in dims:
        n *= d
    return n * jnp.dtype(dtype).itemsize


def _vmem_capacity_bytes():
    """Physical VMEM of the current generation (fallback: 64 MiB, v7x-safe)."""
    try:
        info = pltpu.get_tpu_info()
        cap = getattr(info, "vmem_capacity_bytes", None)
        if cap:
            return int(cap)
    except Exception:
        pass
    return 64 * 2**20


def _pick_row_tile(h):
    """Row-slab size: bounds the live f32 accumulator; whole image if H % 8 != 0."""
    if h > 8 and h % 8 == 0:
        return 8
    return h


def _make_double_conv_kernel(H, W, Cin, Cmid, Cout, TH, use_col1, use_col2):
    """Build the fused (conv3x3+bias+ReLU) x2 kernel for one NHWC image."""
    taps = [(kh, kw) for kh in range(3) for kw in range(3)]
    n_slabs = H // TH

    def zero_border(pad_ref, h, w, c):
        # Border-only zeroing: the interior is fully overwritten right after,
        # so a full-buffer zero would be ~2x redundant store traffic.  Done
        # every grid step (NOT program_id==0-guarded) so it stays correct when
        # the batch axis is split across TensorCores (each has its own scratch).
        dt = pad_ref.dtype
        pad_ref[0:1, :, :] = jnp.zeros((1, w + 2, c), dt)
        pad_ref[h + 1:h + 2, :, :] = jnp.zeros((1, w + 2, c), dt)
        pad_ref[:, 0:1, :] = jnp.zeros((h + 2, 1, c), dt)
        pad_ref[:, w + 1:w + 2, :] = jnp.zeros((h + 2, 1, c), dt)

    def conv_stage(pad_ref, w_ref, b_ref, c_in, col_ref, write_slab):
        """3x3 conv + bias + ReLU, processed in TH-row slabs."""
        for s in range(n_slabs):
            r0 = s * TH
            if col_ref is not None:
                # Narrow-channel path: slab-sized im2col -> one K=9*c_in MXU
                # contraction (tap accumulation stays inside the MXU).
                for t, (kh, kw) in enumerate(taps):
                    col_ref[:, :, t * c_in:(t + 1) * c_in] = (
                        pad_ref[r0 + kh:r0 + kh + TH, kw:kw + W, :])
                acc = lax.dot_general(
                    col_ref[...], w_ref[...],
                    dimension_numbers=(((2,), (0,)), ((), ())),
                    preferred_element_type=jnp.float32)          # (TH, W, Cout) f32
            else:
                # Wide-channel path: 9 per-tap matmuls accumulated in f32; no
                # materialized im2col (no col scratch, no extra store traffic).
                acc = None
                for t, (kh, kw) in enumerate(taps):
                    lhs = pad_ref[r0 + kh:r0 + kh + TH, kw:kw + W, :]   # (TH, W, c_in)
                    p = lax.dot_general(
                        lhs, w_ref[t],
                        dimension_numbers=(((2,), (0,)), ((), ())),
                        preferred_element_type=jnp.float32)
                    acc = p if acc is None else acc + p
            write_slab(r0, jnp.maximum(acc + b_ref[...], 0.0))

    def kernel(x_ref, w1_ref, b1_ref, w2_ref, b2_ref, o_ref, *scratch):
        xpad_ref = scratch[0]
        hpad_ref = scratch[1]
        idx = 2
        col1_ref = None
        col2_ref = None
        if use_col1:
            col1_ref = scratch[idx]
            idx += 1
        if use_col2:
            col2_ref = scratch[idx]
            idx += 1

        # ---- stage 1: pad (borders only) + conv + bias + ReLU -> hpad interior
        zero_border(xpad_ref, H, W, Cin)
        xpad_ref[1:H + 1, 1:W + 1, :] = x_ref[...]
        zero_border(hpad_ref, H, W, Cmid)

        def write_h(r0, slab):
            # Intermediate activation never leaves VMEM.
            hpad_ref[1 + r0:1 + r0 + TH, 1:W + 1, :] = slab.astype(hpad_ref.dtype)

        conv_stage(xpad_ref, w1_ref, b1_ref, Cin, col1_ref, write_h)

        # ---- stage 2: conv + bias + ReLU -> output block --------------------
        def write_o(r0, slab):
            o_ref[r0:r0 + TH, :, :] = slab.astype(o_ref.dtype)

        conv_stage(hpad_ref, w2_ref, b2_ref, Cmid, col2_ref, write_o)

    return kernel


def double_conv_nhwc(x_nhwc, w1_hwio, b1, w2_hwio, b2, *, compute_dtype=None):
    """Fused DoubleConv on an NHWC tensor via one gridded pallas_call."""
    N, H, W, Cin = x_nhwc.shape
    Cmid = w1_hwio.shape[-1]
    Cout = w2_hwio.shape[-1]
    out_dtype = x_nhwc.dtype
    dt = jnp.dtype(compute_dtype) if compute_dtype is not None else jnp.dtype(out_dtype)

    TH = _pick_row_tile(H)
    # Narrow-channel stages use a slab-sized im2col (big K keeps the MXU fed);
    # wide-channel stages use per-tap accumulation (no col scratch at all).
    use_col1 = Cin < 128
    use_col2 = Cmid < 128

    x = x_nhwc.astype(dt)
    # Weight packing matches the in-kernel tap order t = kh*3 + kw.
    if use_col1:
        w1p = w1_hwio.reshape(9 * Cin, Cmid).astype(dt)
    else:
        w1p = w1_hwio.reshape(9, Cin, Cmid).astype(dt)
    if use_col2:
        w2p = w2_hwio.reshape(9 * Cmid, Cout).astype(dt)
    else:
        w2p = w2_hwio.reshape(9, Cmid, Cout).astype(dt)
    b1r = b1.reshape(1, 1, Cmid).astype(jnp.float32)
    b2r = b2.reshape(1, 1, Cout).astype(jnp.float32)

    # ---- VMEM budget (generation-aware, includes f32 slab temporaries) ------
    est = (2 * _vmem_tile_bytes((H, W, Cin), dt)          # double-buffered input
           + 2 * _vmem_tile_bytes((H, W, Cout), dt)       # double-buffered output
           + 2 * _vmem_tile_bytes(w1p.shape, dt)          # weights (assume 2 copies)
           + 2 * _vmem_tile_bytes(w2p.shape, dt)
           + 2 * _vmem_tile_bytes((1, 1, Cmid), jnp.float32)
           + 2 * _vmem_tile_bytes((1, 1, Cout), jnp.float32)
           + _vmem_tile_bytes((H + 2, W + 2, Cin), dt)    # padded input scratch
           + _vmem_tile_bytes((H + 2, W + 2, Cmid), dt)   # padded intermediate
           + 2 * _vmem_tile_bytes((TH, W, max(Cmid, Cout)), jnp.float32))  # f32 acc
    if use_col1:
        est += _vmem_tile_bytes((TH, W, 9 * Cin), dt)
    if use_col2:
        est += _vmem_tile_bytes((TH, W, 9 * Cmid), dt)
    vmem_cap = _vmem_capacity_bytes()
    vmem_limit = int(min(max(2 * est, 32 * 2**20), int(0.8 * vmem_cap)))

    scratch_shapes = [
        pltpu.VMEM((H + 2, W + 2, Cin), dt),    # zero-padded input
        pltpu.VMEM((H + 2, W + 2, Cmid), dt),   # zero-padded intermediate
    ]
    if use_col1:
        scratch_shapes.append(pltpu.VMEM((TH, W, 9 * Cin), dt))
    if use_col2:
        scratch_shapes.append(pltpu.VMEM((TH, W, 9 * Cmid), dt))

    def _full_spec(shape):
        return pl.BlockSpec(shape, lambda n, nd=len(shape): (0,) * nd)

    grid_spec = pltpu.PrefetchScalarGridSpec(
        num_scalar_prefetch=0,
        grid=(N,),  # one image per grid step
        in_specs=[
            pl.BlockSpec((None, H, W, Cin), lambda n: (n, 0, 0, 0)),
            # Constant index_maps -> weights/biases stay VMEM-resident.
            _full_spec(w1p.shape),
            _full_spec(b1r.shape),
            _full_spec(w2p.shape),
            _full_spec(b2r.shape),
        ],
        out_specs=pl.BlockSpec((None, H, W, Cout), lambda n: (n, 0, 0, 0)),
        scratch_shapes=scratch_shapes,
    )

    flops = 2 * N * H * W * 9 * (Cin * Cmid + Cmid * Cout)
    bytes_accessed = int(
        x.size * jnp.dtype(dt).itemsize
        + w1p.size * jnp.dtype(dt).itemsize
        + w2p.size * jnp.dtype(dt).itemsize
        + (b1r.size + b2r.size) * 4
        + N * H * W * Cout * jnp.dtype(dt).itemsize)

    kernel = _make_double_conv_kernel(H, W, Cin, Cmid, Cout, TH, use_col1, use_col2)

    y = pl.pallas_call(
        kernel,
        out_shape=jax.ShapeDtypeStruct((N, H, W, Cout), dt),
        grid_spec=grid_spec,
        compiler_params=pltpu.CompilerParams(
            dimension_semantics=("parallel",),   # v7x: shard batch over 2 TCs
            vmem_limit_bytes=vmem_limit),
        cost_estimate=pl.CostEstimate(
            flops=flops, transcendentals=0, bytes_accessed=bytes_accessed),
    )(x, w1p, b1r, w2p, b2r)
    return y.astype(out_dtype)


def init_double_conv_params(key, in_c, out_c):
    """Deterministic synthetic params (PyTorch-ish kaiming-uniform scale)."""
    k1, k2, k3, k4 = jax.random.split(key, 4)
    fan1 = in_c * 9
    fan2 = out_c * 9
    bound1 = 1.0 / jnp.sqrt(fan1)
    bound2 = 1.0 / jnp.sqrt(fan2)
    # Weights stored in HWIO (3, 3, Cin, Cout).
    w1 = jax.random.uniform(k1, (3, 3, in_c, out_c), jnp.float32, -bound1, bound1)
    b1 = jax.random.uniform(k2, (out_c,), jnp.float32, -bound1, bound1)
    w2 = jax.random.uniform(k3, (3, 3, out_c, out_c), jnp.float32, -bound2, bound2)
    b2 = jax.random.uniform(k4, (out_c,), jnp.float32, -bound2, bound2)
    return (w1, b1, w2, b2)


@jax.jit
def double_conv_forward(x_nchw, w1, b1, w2, b2):
    """Matches DoubleConv.forward: conv3x3(pad=1)+ReLU twice.  NCHW in/out."""
    # NOTE: keep the surrounding model channels-last to drop these transposes.
    x = jnp.transpose(x_nchw, (0, 2, 3, 1))        # NCHW -> NHWC
    y = double_conv_nhwc(x, w1, b1, w2, b2)
    return jnp.transpose(y, (0, 3, 1, 2))          # NHWC -> NCHW


@jax.jit
def double_conv_forward_bf16(x_nchw, w1, b1, w2, b2):
    """Same forward, bf16 operands / f32 accumulation (MXU-native fast path)."""
    x = jnp.transpose(x_nchw, (0, 2, 3, 1))
    y = double_conv_nhwc(x, w1, b1, w2, b2, compute_dtype=jnp.bfloat16)
    return jnp.transpose(y, (0, 3, 1, 2))


def _reference_double_conv(x_nchw, w1, b1, w2, b2):
    """Pure-JAX reference (lax.conv) for the correctness check."""
    def conv(x, w_hwio, b):
        w_oihw = jnp.transpose(w_hwio, (3, 2, 0, 1))
        y = lax.conv_general_dilated(
            x, w_oihw, window_strides=(1, 1), padding=((1, 1), (1, 1)),
            dimension_numbers=("NCHW", "OIHW", "NCHW"))
        return jnp.maximum(y + b.reshape(1, -1, 1, 1), 0.0)
    return conv(conv(x_nchw, w1, b1), w2, b2)


if __name__ == "__main__":
    key = jax.random.PRNGKey(0)
    k_x, k_p, k_x2, k_p2 = jax.random.split(key, 4)

    # --- narrow-channel config (exercises the slab im2col K=9C path), f32 ----
    N, in_c, out_c, H, W = 2, 4, 8, 16, 16
    x = jax.random.normal(k_x, (N, in_c, H, W), jnp.float32)
    w1, b1, w2, b2 = init_double_conv_params(k_p, in_c, out_c)

    out = jax.block_until_ready(double_conv_forward(x, w1, b1, w2, b2))
    ref = _reference_double_conv(x, w1, b1, w2, b2)
    assert out.shape == (N, out_c, H, W)
    assert jnp.allclose(out, ref, atol=1e-4, rtol=1e-4)

    # --- wide-channel config (exercises per-tap MXU accumulation), bf16 ------
    N2, c2, H2, W2 = 1, 128, 16, 16
    x2 = jax.random.normal(k_x2, (N2, c2, H2, W2), jnp.float32)
    w1b, b1b, w2b, b2b = init_double_conv_params(k_p2, c2, c2)

    out2 = jax.block_until_ready(double_conv_forward_bf16(x2, w1b, b1b, w2b, b2b))
    ref2 = _reference_double_conv(x2, w1b, b1b, w2b, b2b)
    rel = float(jnp.max(jnp.abs(out2.astype(jnp.float32) - ref2))
                / (jnp.max(jnp.abs(ref2)) + 1e-6))
    assert out2.shape == (N2, c2, H2, W2)
    assert rel < 5e-2, f"bf16 path relative error too large: {rel}"

    print("KERNEL_OK")
</pallas_src>

<mosaic_0001>
module attributes {stable_mosaic.version = 11 : i64} {
  func.func @kernel(%arg0: i32, %arg1: memref<1x16x16x4xf32, #tpu.memory_space<vmem>>, %arg2: memref<36x8xf32, #tpu.memory_space<vmem>>, %arg3: memref<1x1x8xf32, #tpu.memory_space<vmem>>, %arg4: memref<72x8xf32, #tpu.memory_space<vmem>>, %arg5: memref<1x1x8xf32, #tpu.memory_space<vmem>>, %arg6: memref<1x16x16x8xf32, #tpu.memory_space<vmem>>, %arg7: memref<18x18x4xf32, #tpu.memory_space<vmem>>, %arg8: memref<18x18x8xf32, #tpu.memory_space<vmem>>, %arg9: memref<8x16x36xf32, #tpu.memory_space<vmem>>, %arg10: memref<8x16x72xf32, #tpu.memory_space<vmem>>) attributes {dimension_semantics = [#tpu.dimension_semantics<parallel>], iteration_bounds = array<i64: 2>, scalar_prefetch = 0 : i64, scratch_operands = 4 : i64, tpu.core_type = #tpu.core_type<tc>, window_params = [{transform_indices = @transform_0, window_bounds = array<i64: 1, 16, 16, 4>}, {pipeline_mode = #tpu.pipeline_mode<synchronous>, transform_indices = @transform_1, window_bounds = array<i64: 36, 8>}, {pipeline_mode = #tpu.pipeline_mode<synchronous>, transform_indices = @transform_2, window_bounds = array<i64: 1, 1, 8>}, {pipeline_mode = #tpu.pipeline_mode<synchronous>, transform_indices = @transform_3, window_bounds = array<i64: 72, 8>}, {pipeline_mode = #tpu.pipeline_mode<synchronous>, transform_indices = @transform_4, window_bounds = array<i64: 1, 1, 8>}, {transform_indices = @transform_5, window_bounds = array<i64: 1, 16, 16, 8>}]} {
    %cst = arith.constant 0.000000e+00 : f32
    %0 = vector.broadcast %cst : f32 to vector<1x18x4xf32>
    %c0 = arith.constant 0 : index
    %c0_0 = arith.constant 0 : index
    %c0_1 = arith.constant 0 : index
    %1 = vector.load %arg7[%c0, %c0_0, %c0_1] : memref<18x18x4xf32, #tpu.memory_space<vmem>>, vector<1x18x4xf32>
    tpu.vector_store %arg7[%c0, %c0_0, %c0_1], %0 {strides = array<i32>} : memref<18x18x4xf32, #tpu.memory_space<vmem>>, vector<1x18x4xf32>,
    %cst_2 = arith.constant 0.000000e+00 : f32
    %2 = vector.broadcast %cst_2 : f32 to vector<1x18x4xf32>
    %c17 = arith.constant 17 : index
    %c0_3 = arith.constant 0 : index
    %c0_4 = arith.constant 0 : index
    %3 = vector.load %arg7[%c17, %c0_3, %c0_4] : memref<18x18x4xf32, #tpu.memory_space<vmem>>, vector<1x18x4xf32>
    tpu.vector_store %arg7[%c17, %c0_3, %c0_4], %2 {strides = array<i32>} : memref<18x18x4xf32, #tpu.memory_space<vmem>>, vector<1x18x4xf32>,
    %cst_5 = arith.constant 0.000000e+00 : f32
    %4 = vector.broadcast %cst_5 : f32 to vector<18x1x4xf32>
    %c0_6 = arith.constant 0 : index
    %c0_7 = arith.constant 0 : index
    %c0_8 = arith.constant 0 : index
    %5 = vector.load %arg7[%c0_6, %c0_7, %c0_8] : memref<18x18x4xf32, #tpu.memory_space<vmem>>, vector<18x1x4xf32>
    tpu.vector_store %arg7[%c0_6, %c0_7, %c0_8], %4 {strides = array<i32>} : memref<18x18x4xf32, #tpu.memory_space<vmem>>, vector<18x1x4xf32>,
    %cst_9 = arith.constant 0.000000e+00 : f32
    %6 = vector.broadcast %cst_9 : f32 to vector<18x1x4xf32>
    %c0_10 = arith.constant 0 : index
    %c17_11 = arith.constant 17 : index
    %c0_12 = arith.constant 0 : index
    %7 = vector.load %arg7[%c0_10, %c17_11, %c0_12] : memref<18x18x4xf32, #tpu.memory_space<vmem>>, vector<18x1x4xf32>
    tpu.vector_store %arg7[%c0_10, %c17_11, %c0_12], %6 {strides = array<i32>} : memref<18x18x4xf32, #tpu.memory_space<vmem>>, vector<18x1x4xf32>,
    %c0_13 = arith.constant 0 : index
    %c0_14 = arith.constant 0 : index
    %c0_15 = arith.constant 0 : index
    %c0_16 = arith.constant 0 : index
    %8 = vector.load %arg1[%c0_13, %c0_14, %c0_15, %c0_16] : memref<1x16x16x4xf32, #tpu.memory_space<vmem>>, vector<1x16x16x4xf32>
    %9 = vector.shape_cast %8 : vector<1x16x16x4xf32> to vector<16x16x4xf32>
    %c1 = arith.constant 1 : index
    %c1_17 = arith.constant 1 : index
    %c0_18 = arith.constant 0 : index
    %10 = vector.load %arg7[%c1, %c1_17, %c0_18] : memref<18x18x4xf32, #tpu.memory_space<vmem>>, vector<16x16x4xf32>
    tpu.vector_store %arg7[%c1, %c1_17, %c0_18], %9 {strides = array<i32>} : memref<18x18x4xf32, #tpu.memory_space<vmem>>, vector<16x16x4xf32>,
    %cst_19 = arith.constant 0.000000e+00 : f32
    %11 = vector.broadcast %cst_19 : f32 to vector<1x18x8xf32>
    %c0_20 = arith.constant 0 : index
    %c0_21 = arith.constant 0 : index
    %c0_22 = arith.constant 0 : index
    %12 = vector.load %arg8[%c0_20, %c0_21, %c0_22] : memref<18x18x8xf32, #tpu.memory_space<vmem>>, vector<1x18x8xf32>
    tpu.vector_store %arg8[%c0_20, %c0_21, %c0_22], %11 {strides = array<i32>} : memref<18x18x8xf32, #tpu.memory_space<vmem>>, vector<1x18x8xf32>,
    %cst_23 = arith.constant 0.000000e+00 : f32
    %13 = vector.broadcast %cst_23 : f32 to vector<1x18x8xf32>
    %c17_24 = arith.constant 17 : index
    %c0_25 = arith.constant 0 : index
    %c0_26 = arith.constant 0 : index
    %14 = vector.load %arg8[%c17_24, %c0_25, %c0_26] : memref<18x18x8xf32, #tpu.memory_space<vmem>>, vector<1x18x8xf32>
    tpu.vector_store %arg8[%c17_24, %c0_25, %c0_26], %13 {strides = array<i32>} : memref<18x18x8xf32, #tpu.memory_space<vmem>>, vector<1x18x8xf32>,
    %cst_27 = arith.constant 0.000000e+00 : f32
    %15 = vector.broadcast %cst_27 : f32 to vector<18x1x8xf32>
    %c0_28 = arith.constant 0 : index
    %c0_29 = arith.constant 0 : index
    %c0_30 = arith.constant 0 : index
    %16 = vector.load %arg8[%c0_28, %c0_29, %c0_30] : memref<18x18x8xf32, #tpu.memory_space<vmem>>, vector<18x1x8xf32>
    tpu.vector_store %arg8[%c0_28, %c0_29, %c0_30], %15 {strides = array<i32>} : memref<18x18x8xf32, #tpu.memory_space<vmem>>, vector<18x1x8xf32>,
    %cst_31 = arith.constant 0.000000e+00 : f32
    %17 = vector.broadcast %cst_31 : f32 to vector<18x1x8xf32>
    %c0_32 = arith.constant 0 : index
    %c17_33 = arith.constant 17 : index
    %c0_34 = arith.constant 0 : index
    %18 = vector.load %arg8[%c0_32, %c17_33, %c0_34] : memref<18x18x8xf32, #tpu.memory_space<vmem>>, vector<18x1x8xf32>
    tpu.vector_store %arg8[%c0_32, %c17_33, %c0_34], %17 {strides = array<i32>} : memref<18x18x8xf32, #tpu.memory_space<vmem>>, vector<18x1x8xf32>,
    %c0_35 = arith.constant 0 : index
    %c0_36 = arith.constant 0 : index
    %c0_37 = arith.constant 0 : index
    %19 = vector.load %arg7[%c0_35, %c0_36, %c0_37] : memref<18x18x4xf32, #tpu.memory_space<vmem>>, vector<8x16x4xf32>
    %c0_38 = arith.constant 0 : index
    %c0_39 = arith.constant 0 : index
    %c0_40 = arith.constant 0 : index
    %20 = vector.load %arg9[%c0_38, %c0_39, %c0_40] : memref<8x16x36xf32, #tpu.memory_space<vmem>>, vector<8x16x4xf32>
    tpu.vector_store %arg9[%c0_38, %c0_39, %c0_40], %19 {strides = array<i32>} : memref<8x16x36xf32, #tpu.memory_space<vmem>>, vector<8x16x4xf32>,
    %c0_41 = arith.constant 0 : index
    %c1_42 = arith.constant 1 : index
    %c0_43 = arith.constant 0 : index
    %21 = vector.load %arg7[%c0_41, %c1_42, %c0_43] : memref<18x18x4xf32, #tpu.memory_space<vmem>>, vector<8x16x4xf32>
    %c0_44 = arith.constant 0 : index
    %c0_45 = arith.constant 0 : index
    %c4 = arith.constant 4 : index
    %22 = vector.load %arg9[%c0_44, %c0_45, %c4] : memref<8x16x36xf32, #tpu.memory_space<vmem>>, vector<8x16x4xf32>
    tpu.vector_store %arg9[%c0_44, %c0_45, %c4], %21 {strides = array<i32>} : memref<8x16x36xf32, #tpu.memory_space<vmem>>, vector<8x16x4xf32>,
    %c0_46 = arith.constant 0 : index
    %c2 = arith.constant 2 : index
    %c0_47 = arith.constant 0 : index
    %23 = vector.load %arg7[%c0_46, %c2, %c0_47] : memref<18x18x4xf32, #tpu.memory_space<vmem>>, vector<8x16x4xf32>
    %c0_48 = arith.constant 0 : index
    %c0_49 = arith.constant 0 : index
    %c8 = arith.constant 8 : index
    %24 = vector.load %arg9[%c0_48, %c0_49, %c8] : memref<8x16x36xf32, #tpu.memory_space<vmem>>, vector<8x16x4xf32>
    tpu.vector_store %arg9[%c0_48, %c0_49, %c8], %23 {strides = array<i32>} : memref<8x16x36xf32, #tpu.memory_space<vmem>>, vector<8x16x4xf32>,
    %c1_50 = arith.constant 1 : index
    %c0_51 = arith.constant 0 : index
    %c0_52 = arith.constant 0 : index
    %25 = vector.load %arg7[%c1_50, %c0_51, %c0_52] : memref<18x18x4xf32, #tpu.memory_space<vmem>>, vector<8x16x4xf32>
    %c0_53 = arith.constant 0 : index
    %c0_54 = arith.constant 0 : index
    %c12 = arith.constant 12 : index
    %26 = vector.load %arg9[%c0_53, %c0_54, %c12] : memref<8x16x36xf32, #tpu.memory_space<vmem>>, vector<8x16x4xf32>
    tpu.vector_store %arg9[%c0_53, %c0_54, %c12], %25 {strides = array<i32>} : memref<8x16x36xf32, #tpu.memory_space<vmem>>, vector<8x16x4xf32>,
    %c1_55 = arith.constant 1 : index
    %c1_56 = arith.constant 1 : index
    %c0_57 = arith.constant 0 : index
    %27 = vector.load %arg7[%c1_55, %c1_56, %c0_57] : memref<18x18x4xf32, #tpu.memory_space<vmem>>, vector<8x16x4xf32>
    %c0_58 = arith.constant 0 : index
    %c0_59 = arith.constant 0 : index
    %c16 = arith.constant 16 : index
    %28 = vector.load %arg9[%c0_58, %c0_59, %c16] : memref<8x16x36xf32, #tpu.memory_space<vmem>>, vector<8x16x4xf32>
    tpu.vector_store %arg9[%c0_58, %c0_59, %c16], %27 {strides = array<i32>} : memref<8x16x36xf32, #tpu.memory_space<vmem>>, vector<8x16x4xf32>,
    %c1_60 = arith.constant 1 : index
    %c2_61 = arith.constant 2 : index
    %c0_62 = arith.constant 0 : index
    %29 = vector.load %arg7[%c1_60, %c2_61, %c0_62] : memref<18x18x4xf32, #tpu.memory_space<vmem>>, vector<8x16x4xf32>
    %c0_63 = arith.constant 0 : index
    %c0_64 = arith.constant 0 : index
    %c20 = arith.constant 20 : index
    %30 = vector.load %arg9[%c0_63, %c0_64, %c20] : memref<8x16x36xf32, #tpu.memory_space<vmem>>, vector<8x16x4xf32>
    tpu.vector_store %arg9[%c0_63, %c0_64, %c20], %29 {strides = array<i32>} : memref<8x16x36xf32, #tpu.memory_space<vmem>>, vector<8x16x4xf32>,
    %c2_65 = arith.constant 2 : index
    %c0_66 = arith.constant 0 : index
    %c0_67 = arith.constant 0 : index
    %31 = vector.load %arg7[%c2_65, %c0_66, %c0_67] : memref<18x18x4xf32, #tpu.memory_space<vmem>>, vector<8x16x4xf32>
    %c0_68 = arith.constant 0 : index
    %c0_69 = arith.constant 0 : index
    %c24 = arith.constant 24 : index
    %32 = vector.load %arg9[%c0_68, %c0_69, %c24] : memref<8x16x36xf32, #tpu.memory_space<vmem>>, vector<8x16x4xf32>
    tpu.vector_store %arg9[%c0_68, %c0_69, %c24], %31 {strides = array<i32>} : memref<8x16x36xf32, #tpu.memory_space<vmem>>, vector<8x16x4xf32>,
    %c2_70 = arith.constant 2 : index
    %c1_71 = arith.constant 1 : index
    %c0_72 = arith.constant 0 : index
    %33 = vector.load %arg7[%c2_70, %c1_71, %c0_72] : memref<18x18x4xf32, #tpu.memory_space<vmem>>, vector<8x16x4xf32>
    %c0_73 = arith.constant 0 : index
    %c0_74 = arith.constant 0 : index
    %c28 = arith.constant 28 : index
    %34 = vector.load %arg9[%c0_73, %c0_74, %c28] : memref<8x16x36xf32, #tpu.memory_space<vmem>>, vector<8x16x4xf32>
    tpu.vector_store %arg9[%c0_73, %c0_74, %c28], %33 {strides = array<i32>} : memref<8x16x36xf32, #tpu.memory_space<vmem>>, vector<8x16x4xf32>,
    %c2_75 = arith.constant 2 : index
    %c2_76 = arith.constant 2 : index
    %c0_77 = arith.constant 0 : index
    %35 = vector.load %arg7[%c2_75, %c2_76, %c0_77] : memref<18x18x4xf32, #tpu.memory_space<vmem>>, vector<8x16x4xf32>
    %c0_78 = arith.constant 0 : index
    %c0_79 = arith.constant 0 : index
    %c32 = arith.constant 32 : index
    %36 = vector.load %arg9[%c0_78, %c0_79, %c32] : memref<8x16x36xf32, #tpu.memory_space<vmem>>, vector<8x16x4xf32>
    tpu.vector_store %arg9[%c0_78, %c0_79, %c32], %35 {strides = array<i32>} : memref<8x16x36xf32, #tpu.memory_space<vmem>>, vector<8x16x4xf32>,
    %c0_80 = arith.constant 0 : index
    %c0_81 = arith.constant 0 : index
    %c0_82 = arith.constant 0 : index
    %37 = vector.load %arg9[%c0_80, %c0_81, %c0_82] : memref<8x16x36xf32, #tpu.memory_space<vmem>>, vector<8x16x36xf32>
    %c0_83 = arith.constant 0 : index
    %c0_84 = arith.constant 0 : index
    %38 = vector.load %arg2[%c0_83, %c0_84] : memref<36x8xf32, #tpu.memory_space<vmem>>, vector<36x8xf32>
    %cst_85 = arith.constant dense<0.000000e+00> : vector<8x16x8xf32>
    %39 = tpu.matmul %37, %38, %cst_85 {dimension_numbers = #tpu.dot_dimension_numbers<[2], [0], [0, 1], [1], [0, 0, 0, 1, 1, 1], [], []>} : vector<8x16x36xf32>, vector<36x8xf32>, vector<8x16x8xf32> -> vector<8x16x8xf32>
    %c0_86 = arith.constant 0 : index
    %c0_87 = arith.constant 0 : index
    %c0_88 = arith.constant 0 : index
    %40 = vector.load %arg3[%c0_86, %c0_87, %c0_88] : memref<1x1x8xf32, #tpu.memory_space<vmem>>, vector<1x1x8xf32>
    %41 = vector.broadcast %40 : vector<1x1x8xf32> to vector<8x16x8xf32>
    %42 = arith.addf %39, %41 : vector<8x16x8xf32>
    %cst_89 = arith.constant 0.000000e+00 : f32
    %43 = vector.broadcast %cst_89 : f32 to vector<8x16x8xf32>
    %44 = arith.maximumf %42, %43 : vector<8x16x8xf32>
    %c1_90 = arith.constant 1 : index
    %c1_91 = arith.constant 1 : index
    %c0_92 = arith.constant 0 : index
    %45 = vector.load %arg8[%c1_90, %c1_91, %c0_92] : memref<18x18x8xf32, #tpu.memory_space<vmem>>, vector<8x16x8xf32>
    tpu.vector_store %arg8[%c1_90, %c1_91, %c0_92], %44 {strides = array<i32>} : memref<18x18x8xf32, #tpu.memory_space<vmem>>, vector<8x16x8xf32>,
    %c8_93 = arith.constant 8 : index
    %c0_94 = arith.constant 0 : index
    %c0_95 = arith.constant 0 : index
    %46 = vector.load %arg7[%c8_93, %c0_94, %c0_95] : memref<18x18x4xf32, #tpu.memory_space<vmem>>, vector<8x16x4xf32>
    %c0_96 = arith.constant 0 : index
    %c0_97 = arith.constant 0 : index
    %c0_98 = arith.constant 0 : index
    %47 = vector.load %arg9[%c0_96, %c0_97, %c0_98] : memref<8x16x36xf32, #tpu.memory_space<vmem>>, vector<8x16x4xf32>
    tpu.vector_store %arg9[%c0_96, %c0_97, %c0_98], %46 {strides = array<i32>} : memref<8x16x36xf32, #tpu.memory_space<vmem>>, vector<8x16x4xf32>,
    %c8_99 = arith.constant 8 : index
    %c1_100 = arith.constant 1 : index
    %c0_101 = arith.constant 0 : index
    %48 = vector.load %arg7[%c8_99, %c1_100, %c0_101] : memref<18x18x4xf32, #tpu.memory_space<vmem>>, vector<8x16x4xf32>
    %c0_102 = arith.constant 0 : index
    %c0_103 = arith.constant 0 : index
    %c4_104 = arith.constant 4 : index
    %49 = vector.load %arg9[%c0_102, %c0_103, %c4_104] : memref<8x16x36xf32, #tpu.memory_space<vmem>>, vector<8x16x4xf32>
    tpu.vector_store %arg9[%c0_102, %c0_103, %c4_104], %48 {strides = array<i32>} : memref<8x16x36xf32, #tpu.memory_space<vmem>>, vector<8x16x4xf32>,
    %c8_105 = arith.constant 8 : index
    %c2_106 = arith.constant 2 : index
    %c0_107 = arith.constant 0 : index
    %50 = vector.load %arg7[%c8_105, %c2_106, %c0_107] : memref<18x18x4xf32, #tpu.memory_space<vmem>>, vector<8x16x4xf32>
    %c0_108 = arith.constant 0 : index
    %c0_109 = arith.constant 0 : index
    %c8_110 = arith.constant 8 : index
    %51 = vector.load %arg9[%c0_108, %c0_109, %c8_110] : memref<8x16x36xf32, #tpu.memory_space<vmem>>, vector<8x16x4xf32>
    tpu.vector_store %arg9[%c0_108, %c0_109, %c8_110], %50 {strides = array<i32>} : memref<8x16x36xf32, #tpu.memory_space<vmem>>, vector<8x16x4xf32>,
    %c9 = arith.constant 9 : index
    %c0_111 = arith.constant 0 : index
    %c0_112 = arith.constant 0 : index
    %52 = vector.load %arg7[%c9, %c0_111, %c0_112] : memref<18x18x4xf32, #tpu.memory_space<vmem>>, vector<8x16x4xf32>
    %c0_113 = arith.constant 0 : index
    %c0_114 = arith.constant 0 : index
    %c12_115 = arith.constant 12 : index
    %53 = vector.load %arg9[%c0_113, %c0_114, %c12_115] : memref<8x16x36xf32, #tpu.memory_space<vmem>>, vector<8x16x4xf32>
    tpu.vector_store %arg9[%c0_113, %c0_114, %c12_115], %52 {strides = array<i32>} : memref<8x16x36xf32, #tpu.memory_space<vmem>>, vector<8x16x4xf32>,
    %c9_116 = arith.constant 9 : index
    %c1_117 = arith.constant 1 : index
    %c0_118 = arith.constant 0 : index
    %54 = vector.load %arg7[%c9_116, %c1_117, %c0_118] : memref<18x18x4xf32, #tpu.memory_space<vmem>>, vector<8x16x4xf32>
    %c0_119 = arith.constant 0 : index
    %c0_120 = arith.constant 0 : index
    %c16_121 = arith.constant 16 : index
    %55 = vector.load %arg9[%c0_119, %c0_120, %c16_121] : memref<8x16x36xf32, #tpu.memory_space<vmem>>, vector<8x16x4xf32>
    tpu.vector_store %arg9[%c0_119, %c0_120, %c16_121], %54 {strides = array<i32>} : memref<8x16x36xf32, #tpu.memory_space<vmem>>, vector<8x16x4xf32>,
    %c9_122 = arith.constant 9 : index
    %c2_123 = arith.constant 2 : index
    %c0_124 = arith.constant 0 : index
    %56 = vector.load %arg7[%c9_122, %c2_123, %c0_124] : memref<18x18x4xf32, #tpu.memory_space<vmem>>, vector<8x16x4xf32>
    %c0_125 = arith.constant 0 : index
    %c0_126 = arith.constant 0 : index
    %c20_127 = arith.constant 20 : index
    %57 = vector.load %arg9[%c0_125, %c0_126, %c20_127] : memref<8x16x36xf32, #tpu.memory_space<vmem>>, vector<8x16x4xf32>
    tpu.vector_store %arg9[%c0_125, %c0_126, %c20_127], %56 {strides = array<i32>} : memref<8x16x36xf32, #tpu.memory_space<vmem>>, vector<8x16x4xf32>,
    %c10 = arith.constant 10 : index
    %c0_128 = arith.constant 0 : index
    %c0_129 = arith.constant 0 : index
    %58 = vector.load %arg7[%c10, %c0_128, %c0_129] : memref<18x18x4xf32, #tpu.memory_space<vmem>>, vector<8x16x4xf32>
    %c0_130 = arith.constant 0 : index
    %c0_131 = arith.constant 0 : index
    %c24_132 = arith.constant 24 : index
    %59 = vector.load %arg9[%c0_130, %c0_131, %c24_132] : memref<8x16x36xf32, #tpu.memory_space<vmem>>, vector<8x16x4xf32>
    tpu.vector_store %arg9[%c0_130, %c0_131, %c24_132], %58 {strides = array<i32>} : memref<8x16x36xf32, #tpu.memory_space<vmem>>, vector<8x16x4xf32>,
    %c10_133 = arith.constant 10 : index
    %c1_134 = arith.constant 1 : index
    %c0_135 = arith.constant 0 : index
    %60 = vector.load %arg7[%c10_133, %c1_134, %c0_135] : memref<18x18x4xf32, #tpu.memory_space<vmem>>, vector<8x16x4xf32>
    %c0_136 = arith.constant 0 : index
    %c0_137 = arith.constant 0 : index
    %c28_138 = arith.constant 28 : index
    %61 = vector.load %arg9[%c0_136, %c0_137, %c28_138] : memref<8x16x36xf32, #tpu.memory_space<vmem>>, vector<8x16x4xf32>
    tpu.vector_store %arg9[%c0_136, %c0_137, %c28_138], %60 {strides = array<i32>} : memref<8x16x36xf32, #tpu.memory_space<vmem>>, vector<8x16x4xf32>,
    %c10_139 = arith.constant 10 : index
    %c2_140 = arith.constant 2 : index
    %c0_141 = arith.constant 0 : index
    %62 = vector.load %arg7[%c10_139, %c2_140, %c0_141] : memref<18x18x4xf32, #tpu.memory_space<vmem>>, vector<8x16x4xf32>
    %c0_142 = arith.constant 0 : index
    %c0_143 = arith.constant 0 : index
    %c32_144 = arith.constant 32 : index
    %63 = vector.load %arg9[%c0_142, %c0_143, %c32_144] : memref<8x16x36xf32, #tpu.memory_space<vmem>>, vector<8x16x4xf32>
    tpu.vector_store %arg9[%c0_142, %c0_143, %c32_144], %62 {strides = array<i32>} : memref<8x16x36xf32, #tpu.memory_space<vmem>>, vector<8x16x4xf32>,
    %c0_145 = arith.constant 0 : index
    %c0_146 = arith.constant 0 : index
    %c0_147 = arith.constant 0 : index
    %64 = vector.load %arg9[%c0_145, %c0_146, %c0_147] : memref<8x16x36xf32, #tpu.memory_space<vmem>>, vector<8x16x36xf32>
    %c0_148 = arith.constant 0 : index
    %c0_149 = arith.constant 0 : index
    %65 = vector.load %arg2[%c0_148, %c0_149] : memref<36x8xf32, #tpu.memory_space<vmem>>, vector<36x8xf32>
    %cst_150 = arith.constant dense<0.000000e+00> : vector<8x16x8xf32>
    %66 = tpu.matmul %64, %65, %cst_150 {dimension_numbers = #tpu.dot_dimension_numbers<[2], [0], [0, 1], [1], [0, 0, 0, 1, 1, 1], [], []>} : vector<8x16x36xf32>, vector<36x8xf32>, vector<8x16x8xf32> -> vector<8x16x8xf32>
    %c0_151 = arith.constant 0 : index
    %c0_152 = arith.constant 0 : index
    %c0_153 = arith.constant 0 : index
    %67 = vector.load %arg3[%c0_151, %c0_152, %c0_153] : memref<1x1x8xf32, #tpu.memory_space<vmem>>, vector<1x1x8xf32>
    %68 = vector.broadcast %67 : vector<1x1x8xf32> to vector<8x16x8xf32>
    %69 = arith.addf %66, %68 : vector<8x16x8xf32>
    %cst_154 = arith.constant 0.000000e+00 : f32
    %70 = vector.broadcast %cst_154 : f32 to vector<8x16x8xf32>
    %71 = arith.maximumf %69, %70 : vector<8x16x8xf32>
    %c9_155 = arith.constant 9 : index
    %c1_156 = arith.constant 1 : index
    %c0_157 = arith.constant 0 : index
    %72 = vector.load %arg8[%c9_155, %c1_156, %c0_157] : memref<18x18x8xf32, #tpu.memory_space<vmem>>, vector<8x16x8xf32>
    tpu.vector_store %arg8[%c9_155, %c1_156, %c0_157], %71 {strides = array<i32>} : memref<18x18x8xf32, #tpu.memory_space<vmem>>, vector<8x16x8xf32>,
    %c0_158 = arith.constant 0 : index
    %c0_159 = arith.constant 0 : index
    %c0_160 = arith.constant 0 : index
    %73 = vector.load %arg8[%c0_158, %c0_159, %c0_160] : memref<18x18x8xf32, #tpu.memory_space<vmem>>, vector<8x16x8xf32>
    %c0_161 = arith.constant 0 : index
    %c0_162 = arith.constant 0 : index
    %c0_163 = arith.constant 0 : index
    %74 = vector.load %arg10[%c0_161, %c0_162, %c0_163] : memref<8x16x72xf32, #tpu.memory_space<vmem>>, vector<8x16x8xf32>
    tpu.vector_store %arg10[%c0_161, %c0_162, %c0_163], %73 {strides = array<i32>} : memref<8x16x72xf32, #tpu.memory_space<vmem>>, vector<8x16x8xf32>,
    %c0_164 = arith.constant 0 : index
    %c1_165 = arith.constant 1 : index
    %c0_166 = arith.constant 0 : index
    %75 = vector.load %arg8[%c0_164, %c1_165, %c0_166] : memref<18x18x8xf32, #tpu.memory_space<vmem>>, vector<8x16x8xf32>
    %c0_167 = arith.constant 0 : index
    %c0_168 = arith.constant 0 : index
    %c8_169 = arith.constant 8 : index
    %76 = vector.load %arg10[%c0_167, %c0_168, %c8_169] : memref<8x16x72xf32, #tpu.memory_space<vmem>>, vector<8x16x8xf32>
    tpu.vector_store %arg10[%c0_167, %c0_168, %c8_169], %75 {strides = array<i32>} : memref<8x16x72xf32, #tpu.memory_space<vmem>>, vector<8x16x8xf32>,
    %c0_170 = arith.constant 0 : index
    %c2_171 = arith.constant 2 : index
    %c0_172 = arith.constant 0 : index
    %77 = vector.load %arg8[%c0_170, %c2_171, %c0_172] : memref<18x18x8xf32, #tpu.memory_space<vmem>>, vector<8x16x8xf32>
    %c0_173 = arith.constant 0 : index
    %c0_174 = arith.constant 0 : index
    %c16_175 = arith.constant 16 : index
    %78 = vector.load %arg10[%c0_173, %c0_174, %c16_175] : memref<8x16x72xf32, #tpu.memory_space<vmem>>, vector<8x16x8xf32>
    tpu.vector_store %arg10[%c0_173, %c0_174, %c16_175], %77 {strides = array<i32>} : memref<8x16x72xf32, #tpu.memory_space<vmem>>, vector<8x16x8xf32>,
    %c1_176 = arith.constant 1 : index
    %c0_177 = arith.constant 0 : index
    %c0_178 = arith.constant 0 : index
    %79 = vector.load %arg8[%c1_176, %c0_177, %c0_178] : memref<18x18x8xf32, #tpu.memory_space<vmem>>, vector<8x16x8xf32>
    %c0_179 = arith.constant 0 : index
    %c0_180 = arith.constant 0 : index
    %c24_181 = arith.constant 24 : index
    %80 = vector.load %arg10[%c0_179, %c0_180, %c24_181] : memref<8x16x72xf32, #tpu.memory_space<vmem>>, vector<8x16x8xf32>
    tpu.vector_store %arg10[%c0_179, %c0_180, %c24_181], %79 {strides = array<i32>} : memref<8x16x72xf32, #tpu.memory_space<vmem>>, vector<8x16x8xf32>,
    %c1_182 = arith.constant 1 : index
    %c1_183 = arith.constant 1 : index
    %c0_184 = arith.constant 0 : index
    %81 = vector.load %arg8[%c1_182, %c1_183, %c0_184] : memref<18x18x8xf32, #tpu.memory_space<vmem>>, vector<8x16x8xf32>
    %c0_185 = arith.constant 0 : index
    %c0_186 = arith.constant 0 : index
    %c32_187 = arith.constant 32 : index
    %82 = vector.load %arg10[%c0_185, %c0_186, %c32_187] : memref<8x16x72xf32, #tpu.memory_space<vmem>>, vector<8x16x8xf32>
    tpu.vector_store %arg10[%c0_185, %c0_186, %c32_187], %81 {strides = array<i32>} : memref<8x16x72xf32, #tpu.memory_space<vmem>>, vector<8x16x8xf32>,
    %c1_188 = arith.constant 1 : index
    %c2_189 = arith.constant 2 : index
    %c0_190 = arith.constant 0 : index
    %83 = vector.load %arg8[%c1_188, %c2_189, %c0_190] : memref<18x18x8xf32, #tpu.memory_space<vmem>>, vector<8x16x8xf32>
    %c0_191 = arith.constant 0 : index
    %c0_192 = arith.constant 0 : index
    %c40 = arith.constant 40 : index
    %84 = vector.load %arg10[%c0_191, %c0_192, %c40] : memref<8x16x72xf32, #tpu.memory_space<vmem>>, vector<8x16x8xf32>
    tpu.vector_store %arg10[%c0_191, %c0_192, %c40], %83 {strides = array<i32>} : memref<8x16x72xf32, #tpu.memory_space<vmem>>, vector<8x16x8xf32>,
    %c2_193 = arith.constant 2 : index
    %c0_194 = arith.constant 0 : index
    %c0_195 = arith.constant 0 : index
    %85 = vector.load %arg8[%c2_193, %c0_194, %c0_195] : memref<18x18x8xf32, #tpu.memory_space<vmem>>, vector<8x16x8xf32>
    %c0_196 = arith.constant 0 : index
    %c0_197 = arith.constant 0 : index
    %c48 = arith.constant 48 : index
    %86 = vector.load %arg10[%c0_196, %c0_197, %c48] : memref<8x16x72xf32, #tpu.memory_space<vmem>>, vector<8x16x8xf32>
    tpu.vector_store %arg10[%c0_196, %c0_197, %c48], %85 {strides = array<i32>} : memref<8x16x72xf32, #tpu.memory_space<vmem>>, vector<8x16x8xf32>,
    %c2_198 = arith.constant 2 : index
    %c1_199 = arith.constant 1 : index
    %c0_200 = arith.constant 0 : index
    %87 = vector.load %arg8[%c2_198, %c1_199, %c0_200] : memref<18x18x8xf32, #tpu.memory_space<vmem>>, vector<8x16x8xf32>
    %c0_201 = arith.constant 0 : index
    %c0_202 = arith.constant 0 : index
    %c56 = arith.constant 56 : index
    %88 = vector.load %arg10[%c0_201, %c0_202, %c56] : memref<8x16x72xf32, #tpu.memory_space<vmem>>, vector<8x16x8xf32>
    tpu.vector_store %arg10[%c0_201, %c0_202, %c56], %87 {strides = array<i32>} : memref<8x16x72xf32, #tpu.memory_space<vmem>>, vector<8x16x8xf32>,
    %c2_203 = arith.constant 2 : index
    %c2_204 = arith.constant 2 : index
    %c0_205 = arith.constant 0 : index
    %89 = vector.load %arg8[%c2_203, %c2_204, %c0_205] : memref<18x18x8xf32, #tpu.memory_space<vmem>>, vector<8x16x8xf32>
    %c0_206 = arith.constant 0 : index
    %c0_207 = arith.constant 0 : index
    %c64 = arith.constant 64 : index
    %90 = vector.load %arg10[%c0_206, %c0_207, %c64] : memref<8x16x72xf32, #tpu.memory_space<vmem>>, vector<8x16x8xf32>
    tpu.vector_store %arg10[%c0_206, %c0_207, %c64], %89 {strides = array<i32>} : memref<8x16x72xf32, #tpu.memory_space<vmem>>, vector<8x16x8xf32>,
    %c0_208 = arith.constant 0 : index
    %c0_209 = arith.constant 0 : index
    %c0_210 = arith.constant 0 : index
    %91 = vector.load %arg10[%c0_208, %c0_209, %c0_210] : memref<8x16x72xf32, #tpu.memory_space<vmem>>, vector<8x16x72xf32>
    %c0_211 = arith.constant 0 : index
    %c0_212 = arith.constant 0 : index
    %92 = vector.load %arg4[%c0_211, %c0_212] : memref<72x8xf32, #tpu.memory_space<vmem>>, vector<72x8xf32>
    %cst_213 = arith.constant dense<0.000000e+00> : vector<8x16x8xf32>
    %93 = tpu.matmul %91, %92, %cst_213 {dimension_numbers = #tpu.dot_dimension_numbers<[2], [0], [0, 1], [1], [0, 0, 0, 1, 1, 1], [], []>} : vector<8x16x72xf32>, vector<72x8xf32>, vector<8x16x8xf32> -> vector<8x16x8xf32>
    %c0_214 = arith.constant 0 : index
    %c0_215 = arith.constant 0 : index
    %c0_216 = arith.constant 0 : index
    %94 = vector.load %arg5[%c0_214, %c0_215, %c0_216] : memref<1x1x8xf32, #tpu.memory_space<vmem>>, vector<1x1x8xf32>
    %95 = vector.broadcast %94 : vector<1x1x8xf32> to vector<8x16x8xf32>
    %96 = arith.addf %93, %95 : vector<8x16x8xf32>
    %cst_217 = arith.constant 0.000000e+00 : f32
    %97 = vector.broadcast %cst_217 : f32 to vector<8x16x8xf32>
    %98 = arith.maximumf %96, %97 : vector<8x16x8xf32>
    %c0_218 = arith.constant 0 : index
    %c0_219 = arith.constant 0 : index
    %c0_220 = arith.constant 0 : index
    %c0_221 = arith.constant 0 : index
    %99 = vector.load %arg6[%c0_218, %c0_219, %c0_220, %c0_221] : memref<1x16x16x8xf32, #tpu.memory_space<vmem>>, vector<1x8x16x8xf32>
    %100 = vector.shape_cast %99 : vector<1x8x16x8xf32> to vector<8x16x8xf32>
    %101 = vector.shape_cast %98 : vector<8x16x8xf32> to vector<1x8x16x8xf32>
    tpu.vector_store %arg6[%c0_218, %c0_219, %c0_220, %c0_221], %101 {strides = array<i32>} : memref<1x16x16x8xf32, #tpu.memory_space<vmem>>, vector<1x8x16x8xf32>,
    %c8_222 = arith.constant 8 : index
    %c0_223 = arith.constant 0 : index
    %c0_224 = arith.constant 0 : index
    %102 = vector.load %arg8[%c8_222, %c0_223, %c0_224] : memref<18x18x8xf32, #tpu.memory_space<vmem>>, vector<8x16x8xf32>
    %c0_225 = arith.constant 0 : index
    %c0_226 = arith.constant 0 : index
    %c0_227 = arith.constant 0 : index
    %103 = vector.load %arg10[%c0_225, %c0_226, %c0_227] : memref<8x16x72xf32, #tpu.memory_space<vmem>>, vector<8x16x8xf32>
    tpu.vector_store %arg10[%c0_225, %c0_226, %c0_227], %102 {strides = array<i32>} : memref<8x16x72xf32, #tpu.memory_space<vmem>>, vector<8x16x8xf32>,
    %c8_228 = arith.constant 8 : index
    %c1_229 = arith.constant 1 : index
    %c0_230 = arith.constant 0 : index
    %104 = vector.load %arg8[%c8_228, %c1_229, %c0_230] : memref<18x18x8xf32, #tpu.memory_space<vmem>>, vector<8x16x8xf32>
    %c0_231 = arith.constant 0 : index
    %c0_232 = arith.constant 0 : index
    %c8_233 = arith.constant 8 : index
    %105 = vector.load %arg10[%c0_231, %c0_232, %c8_233] : memref<8x16x72xf32, #tpu.memory_space<vmem>>, vector<8x16x8xf32>
    tpu.vector_store %arg10[%c0_231, %c0_232, %c8_233], %104 {strides = array<i32>} : memref<8x16x72xf32, #tpu.memory_space<vmem>>, vector<8x16x8xf32>,
    %c8_234 = arith.constant 8 : index
    %c2_235 = arith.constant 2 : index
    %c0_236 = arith.constant 0 : index
    %106 = vector.load %arg8[%c8_234, %c2_235, %c0_236] : memref<18x18x8xf32, #tpu.memory_space<vmem>>, vector<8x16x8xf32>
    %c0_237 = arith.constant 0 : index
    %c0_238 = arith.constant 0 : index
    %c16_239 = arith.constant 16 : index
    %107 = vector.load %arg10[%c0_237, %c0_238, %c16_239] : memref<8x16x72xf32, #tpu.memory_space<vmem>>, vector<8x16x8xf32>
    tpu.vector_store %arg10[%c0_237, %c0_238, %c16_239], %106 {strides = array<i32>} : memref<8x16x72xf32, #tpu.memory_space<vmem>>, vector<8x16x8xf32>,
    %c9_240 = arith.constant 9 : index
    %c0_241 = arith.constant 0 : index
    %c0_242 = arith.constant 0 : index
    %108 = vector.load %arg8[%c9_240, %c0_241, %c0_242] : memref<18x18x8xf32, #tpu.memory_space<vmem>>, vector<8x16x8xf32>
    %c0_243 = arith.constant 0 : index
    %c0_244 = arith.constant 0 : index
    %c24_245 = arith.constant 24 : index
    %109 = vector.load %arg10[%c0_243, %c0_244, %c24_245] : memref<8x16x72xf32, #tpu.memory_space<vmem>>, vector<8x16x8xf32>
    tpu.vector_store %arg10[%c0_243, %c0_244, %c24_245], %108 {strides = array<i32>} : memref<8x16x72xf32, #tpu.memory_space<vmem>>, vector<8x16x8xf32>,
    %c9_246 = arith.constant 9 : index
    %c1_247 = arith.constant 1 : index
    %c0_248 = arith.constant 0 : index
    %110 = vector.load %arg8[%c9_246, %c1_247, %c0_248] : memref<18x18x8xf32, #tpu.memory_space<vmem>>, vector<8x16x8xf32>
    %c0_249 = arith.constant 0 : index
    %c0_250 = arith.constant 0 : index
    %c32_251 = arith.constant 32 : index
    %111 = vector.load %arg10[%c0_249, %c0_250, %c32_251] : memref<8x16x72xf32, #tpu.memory_space<vmem>>, vector<8x16x8xf32>
    tpu.vector_store %arg10[%c0_249, %c0_250, %c32_251], %110 {strides = array<i32>} : memref<8x16x72xf32, #tpu.memory_space<vmem>>, vector<8x16x8xf32>,
    %c9_252 = arith.constant 9 : index
    %c2_253 = arith.constant 2 : index
    %c0_254 = arith.constant 0 : index
    %112 = vector.load %arg8[%c9_252, %c2_253, %c0_254] : memref<18x18x8xf32, #tpu.memory_space<vmem>>, vector<8x16x8xf32>
    %c0_255 = arith.constant 0 : index
    %c0_256 = arith.constant 0 : index
    %c40_257 = arith.constant 40 : index
    %113 = vector.load %arg10[%c0_255, %c0_256, %c40_257] : memref<8x16x72xf32, #tpu.memory_space<vmem>>, vector<8x16x8xf32>
    tpu.vector_store %arg10[%c0_255, %c0_256, %c40_257], %112 {strides = array<i32>} : memref<8x16x72xf32, #tpu.memory_space<vmem>>, vector<8x16x8xf32>,
    %c10_258 = arith.constant 10 : index
    %c0_259 = arith.constant 0 : index
    %c0_260 = arith.constant 0 : index
    %114 = vector.load %arg8[%c10_258, %c0_259, %c0_260] : memref<18x18x8xf32, #tpu.memory_space<vmem>>, vector<8x16x8xf32>
    %c0_261 = arith.constant 0 : index
    %c0_262 = arith.constant 0 : index
    %c48_263 = arith.constant 48 : index
    %115 = vector.load %arg10[%c0_261, %c0_262, %c48_263] : memref<8x16x72xf32, #tpu.memory_space<vmem>>, vector<8x16x8xf32>
    tpu.vector_store %arg10[%c0_261, %c0_262, %c48_263], %114 {strides = array<i32>} : memref<8x16x72xf32, #tpu.memory_space<vmem>>, vector<8x16x8xf32>,
    %c10_264 = arith.constant 10 : index
    %c1_265 = arith.constant 1 : index
    %c0_266 = arith.constant 0 : index
    %116 = vector.load %arg8[%c10_264, %c1_265, %c0_266] : memref<18x18x8xf32, #tpu.memory_space<vmem>>, vector<8x16x8xf32>
    %c0_267 = arith.constant 0 : index
    %c0_268 = arith.constant 0 : index
    %c56_269 = arith.constant 56 : index
    %117 = vector.load %arg10[%c0_267, %c0_268, %c56_269] : memref<8x16x72xf32, #tpu.memory_space<vmem>>, vector<8x16x8xf32>
    tpu.vector_store %arg10[%c0_267, %c0_268, %c56_269], %116 {strides = array<i32>} : memref<8x16x72xf32, #tpu.memory_space<vmem>>, vector<8x16x8xf32>,
    %c10_270 = arith.constant 10 : index
    %c2_271 = arith.constant 2 : index
    %c0_272 = arith.constant 0 : index
    %118 = vector.load %arg8[%c10_270, %c2_271, %c0_272] : memref<18x18x8xf32, #tpu.memory_space<vmem>>, vector<8x16x8xf32>
    %c0_273 = arith.constant 0 : index
    %c0_274 = arith.constant 0 : index
    %c64_275 = arith.constant 64 : index
    %119 = vector.load %arg10[%c0_273, %c0_274, %c64_275] : memref<8x16x72xf32, #tpu.memory_space<vmem>>, vector<8x16x8xf32>
    tpu.vector_store %arg10[%c0_273, %c0_274, %c64_275], %118 {strides = array<i32>} : memref<8x16x72xf32, #tpu.memory_space<vmem>>, vector<8x16x8xf32>,
    %c0_276 = arith.constant 0 : index
    %c0_277 = arith.constant 0 : index
    %c0_278 = arith.constant 0 : index
    %120 = vector.load %arg10[%c0_276, %c0_277, %c0_278] : memref<8x16x72xf32, #tpu.memory_space<vmem>>, vector<8x16x72xf32>
    %c0_279 = arith.constant 0 : index
    %c0_280 = arith.constant 0 : index
    %121 = vector.load %arg4[%c0_279, %c0_280] : memref<72x8xf32, #tpu.memory_space<vmem>>, vector<72x8xf32>
    %cst_281 = arith.constant dense<0.000000e+00> : vector<8x16x8xf32>
    %122 = tpu.matmul %120, %121, %cst_281 {dimension_numbers = #tpu.dot_dimension_numbers<[2], [0], [0, 1], [1], [0, 0, 0, 1, 1, 1], [], []>} : vector<8x16x72xf32>, vector<72x8xf32>, vector<8x16x8xf32> -> vector<8x16x8xf32>
    %c0_282 = arith.constant 0 : index
    %c0_283 = arith.constant 0 : index
    %c0_284 = arith.constant 0 : index
    %123 = vector.load %arg5[%c0_282, %c0_283, %c0_284] : memref<1x1x8xf32, #tpu.memory_space<vmem>>, vector<1x1x8xf32>
    %124 = vector.broadcast %123 : vector<1x1x8xf32> to vector<8x16x8xf32>
    %125 = arith.addf %122, %124 : vector<8x16x8xf32>
    %cst_285 = arith.constant 0.000000e+00 : f32
    %126 = vector.broadcast %cst_285 : f32 to vector<8x16x8xf32>
    %127 = arith.maximumf %125, %126 : vector<8x16x8xf32>
    %c0_286 = arith.constant 0 : index
    %c8_287 = arith.constant 8 : index
    %c0_288 = arith.constant 0 : index
    %c0_289 = arith.constant 0 : index
    %128 = vector.load %arg6[%c0_286, %c8_287, %c0_288, %c0_289] : memref<1x16x16x8xf32, #tpu.memory_space<vmem>>, vector<1x8x16x8xf32>
    %129 = vector.shape_cast %128 : vector<1x8x16x8xf32> to vector<8x16x8xf32>
    %130 = vector.shape_cast %127 : vector<8x16x8xf32> to vector<1x8x16x8xf32>
    tpu.vector_store %arg6[%c0_286, %c8_287, %c0_288, %c0_289], %130 {strides = array<i32>} : memref<1x16x16x8xf32, #tpu.memory_space<vmem>>, vector<1x8x16x8xf32>,
    return
  }
  func.func @transform_0(%arg0: i32) -> (i32, i32, i32, i32) {
    %c0_i32 = arith.constant 0 : i32
    %c0_i32_0 = arith.constant 0 : i32
    %c0_i32_1 = arith.constant 0 : i32
    %c0_i32_2 = arith.constant 0 : i32
    return %arg0, %c0_i32, %c0_i32_0, %c0_i32_1 : i32, i32, i32, i32
  }
  func.func @transform_1(%arg0: i32) -> (i32, i32) {
    %c0_i32 = arith.constant 0 : i32
    %c0_i32_0 = arith.constant 0 : i32
    %c0_i32_1 = arith.constant 0 : i32
    return %c0_i32, %c0_i32_0 : i32, i32
  }
  func.func @transform_2(%arg0: i32) -> (i32, i32, i32) {
    %c0_i32 = arith.constant 0 : i32
    %c0_i32_0 = arith.constant 0 : i32
    %c0_i32_1 = arith.constant 0 : i32
    %c0_i32_2 = arith.constant 0 : i32
    return %c0_i32, %c0_i32_0, %c0_i32_1 : i32, i32, i32
  }
  func.func @transform_3(%arg0: i32) -> (i32, i32) {
    %c0_i32 = arith.constant 0 : i32
    %c0_i32_0 = arith.constant 0 : i32
    %c0_i32_1 = arith.constant 0 : i32
    return %c0_i32, %c0_i32_0 : i32, i32
  }
  func.func @transform_4(%arg0: i32) -> (i32, i32, i32) {
    %c0_i32 = arith.constant 0 : i32
    %c0_i32_0 = arith.constant 0 : i32
    %c0_i32_1 = arith.constant 0 : i32
    %c0_i32_2 = arith.constant 0 : i32
    return %c0_i32, %c0_i32_0, %c0_i32_1 : i32, i32, i32
  }
  func.func @transform_5(%arg0: i32) -> (i32, i32, i32, i32) {
    %c0_i32 = arith.constant 0 : i32
    %c0_i32_0 = arith.constant 0 : i32
    %c0_i32_1 = arith.constant 0 : i32
    %c0_i32_2 = arith.constant 0 : i32
    return %arg0, %c0_i32, %c0_i32_0, %c0_i32_1 : i32, i32, i32, i32
  }
}

</mosaic_0001>

<llo_original>
// kernel: double_conv_forward.1
$region0: #{double_conv_forward.1}
  #allocation0 [shape = 'u32[]', space=smem, size = 0x4, offset = 0x4, fixed_abs, tag = 'smem constant byte address 0x4 - core index']
  #allocation1 [shape = 'u32[144,128]{1,0:T(1,128)}', space=vmem, size = 0x12000, scoped, tag = 'internal scratch']
  #allocation2 [shape = 'f32[18,18,4]{2,1,0:T(8,128)}', space=vmem, size = 0x36000, scoped, tag = 'scratch operand']
  #allocation3 [shape = 'f32[18,18,8]{2,1,0:T(8,128)}', space=vmem, size = 0x36000, scoped, tag = 'scratch operand']
  #allocation4 [shape = 'f32[8,16,36]{2,1,0:T(8,128)}', space=vmem, size = 0x10000, scoped, tag = 'scratch operand']
  #allocation5 [shape = 'f32[8,16,72]{2,1,0:T(8,128)}', space=vmem, size = 0x10000, scoped, tag = 'scratch operand']
  %s0 = inlined_call_operand.vmem [shape: f32[2,16,16,4], index: 0, kind: input, shape index: {}]
  %s1 = inlined_call_operand.vmem [shape: f32[36,8], index: 1, kind: input, shape index: {}]
  %s2 = inlined_call_operand.vmem [shape: f32[1,1,8], index: 2, kind: input, shape index: {}]
  %s3 = inlined_call_operand.vmem [shape: f32[72,8], index: 3, kind: input, shape index: {}]
  %s4 = inlined_call_operand.vmem [shape: f32[1,1,8], index: 4, kind: input, shape index: {}]
  %s5 = inlined_call_operand.vmem [shape: f32[2,16,16,8], index: 5, kind: output, shape index: {}]
  %s6 = sld [smem:[#allocation0]]
  $region53: #{double_conv_forward.1} parent=0
    _
  %s8 = ssub.s32 1, %s6
  %s9 = scalar_select 0, %s8, %s6
  loop: start=0, step=1, limit=4
  $region2: #{double_conv_forward.1} parent=0 // loop_pre_header
    _
  $region3: #{double_conv_forward.1} parent=0 // loop_header
    %s11 = sphi 0, %s15
    %p12 = scmp.ge.s32.totalorder %s11, 4
    %s21 = sphi 0, %s23
    %s24 = sphi 0, %s21
    %s25 = sphi 0, %s24
    %s41 = sphi 0, %s25
    %s45 = sphi 0, %s45
    %s47 = sphi 0, %s45
    %s48 = sphi 0, %s47
    %s62 = sphi 0, %s48
    %s66 = sphi 0, %s66
    %s68 = sphi 0, %s66
    %s69 = sphi 0, %s68
    %s83 = sphi 0, %s69
    %s87 = sphi 0, %s87
    %s89 = sphi 0, %s87
    %s90 = sphi 0, %s89
    %s104 = sphi 0, %s90
    %s108 = sphi 0, %s108
    %s110 = sphi 0, %s108
    %s111 = sphi 0, %s110
    %s125 = sphi 0, %s111
    %s131 = sphi 0, %s133
    %s134 = sphi 0, %s131
    %s135 = sphi 0, %s134
    %s151 = sphi 0, %s135
  $region4: #{double_conv_forward.1} parent=0 // loop_header_branch
    %14 = sbr.rel (%p12) target = $region8
  $region5: #{double_conv_forward.1} parent=0 // loop_body
    %s16 = ssub.s32 %s11, 1
    %s17 = ssub.s32 %s11, 2
    %s18 = sadd.s32 %s11, 1
    %s19 = ssub.s32 %s11, %s18
    %p20 = scmp.eq.s32.totalorder %s19, 0
    %s22 = sadd.s32 %s21, 1
    %s23 = scalar_select %p20, %s21, %s22
    %p26 = pneg %p20
    %p27 = scmp.eq.s32.totalorder %s11, 1
    %p28 = por %p26, %p27
    %p29 = scmp.ne.s32.totalorder %s21, %s24
    %p30 = scmp.eq.s32.totalorder %s11, 0
    %p31 = por %p29, %p30
    %p32 = scmp.ne.s32.totalorder %s21, %s24
    %p33 = scmp.eq.s32.totalorder %s16, 1
    %p34 = por %p32, %p33
    %p35 = scmp.ne.s32.totalorder %s24, %s25
    %p36 = scmp.eq.s32.totalorder %s16, 0
    %p37 = por %p35, %p36
    %p38 = scmp.ne.s32.totalorder %s24, %s25
    %p39 = scmp.eq.s32.totalorder %s17, 1
    %p40 = por %p38, %p39
    %p42 = scmp.ne.s32.totalorder %s25, %s41
    %p43 = scmp.eq.s32.totalorder %s17, 0
    %p44 = por %p42, %p43
    %s46 = sadd.s32 %s45, 1
    %p49 = scmp.eq.s32.totalorder %s11, 1
    %p50 = scmp.ne.s32.totalorder %s45, %s47
    %p51 = scmp.eq.s32.totalorder %s11, 0
    %p52 = por %p50, %p51
    %p53 = scmp.ne.s32.totalorder %s45, %s47
    %p54 = scmp.eq.s32.totalorder %s16, 1
    %p55 = por %p53, %p54
    %p56 = scmp.ne.s32.totalorder %s47, %s48
    %p57 = scmp.eq.s32.totalorder %s16, 0
    %p58 = por %p56, %p57
    %p59 = scmp.ne.s32.totalorder %s47, %s48
    %p60 = scmp.eq.s32.totalorder %s17, 1
    %p61 = por %p59, %p60
    %p63 = scmp.ne.s32.totalorder %s48, %s62
    %p64 = scmp.eq.s32.totalorder %s17, 0
    %p65 = por %p63, %p64
    %s67 = sadd.s32 %s66, 1
    %p70 = scmp.eq.s32.totalorder %s11, 1
    %p71 = scmp.ne.s32.totalorder %s66, %s68
    %p72 = scmp.eq.s32.totalorder %s11, 0
    %p73 = por %p71, %p72
    %p74 = scmp.ne.s32.totalorder %s66, %s68
    %p75 = scmp.eq.s32.totalorder %s16, 1
    %p76 = por %p74, %p75
    %p77 = scmp.ne.s32.totalorder %s68, %s69
    %p78 = scmp.eq.s32.totalorder %s16, 0
    %p79 = por %p77, %p78
    %p80 = scmp.ne.s32.totalorder %s68, %s69
    %p81 = scmp.eq.s32.totalorder %s17, 1
    %p82 = por %p80, %p81
    %p84 = scmp.ne.s32.totalorder %s69, %s83
    %p85 = scmp.eq.s32.totalorder %s17, 0
    %p86 = por %p84, %p85
    %s88 = sadd.s32 %s87, 1
    %p91 = scmp.eq.s32.totalorder %s11, 1
    %p92 = scmp.ne.s32.totalorder %s87, %s89
    %p93 = scmp.eq.s32.totalorder %s11, 0
    %p94 = por %p92, %p93
    %p95 = scmp.ne.s32.totalorder %s87, %s89
    %p96 = scmp.eq.s32.totalorder %s16, 1
    %p97 = por %p95, %p96
    %p98 = scmp.ne.s32.totalorder %s89, %s90
    %p99 = scmp.eq.s32.totalorder %s16, 0
    %p100 = por %p98, %p99
    %p101 = scmp.ne.s32.totalorder %s89, %s90
    %p102 = scmp.eq.s32.totalorder %s17, 1
    %p103 = por %p101, %p102
    %p105 = scmp.ne.s32.totalorder %s90, %s104
    %p106 = scmp.eq.s32.totalorder %s17, 0
    %p107 = por %p105, %p106
    %s109 = sadd.s32 %s108, 1
    %p112 = scmp.eq.s32.totalorder %s11, 1
    %p113 = scmp.ne.s32.totalorder %s108, %s110
    %p114 = scmp.eq.s32.totalorder %s11, 0
    %p115 = por %p113, %p114
    %p116 = scmp.ne.s32.totalorder %s108, %s110
    %p117 = scmp.eq.s32.totalorder %s16, 1
    %p118 = por %p116, %p117
    %p119 = scmp.ne.s32.totalorder %s110, %s111
    %p120 = scmp.eq.s32.totalorder %s16, 0
    %p121 = por %p119, %p120
    %p122 = scmp.ne.s32.totalorder %s110, %s111
    %p123 = scmp.eq.s32.totalorder %s17, 1
    %p124 = por %p122, %p123
    %p126 = scmp.ne.s32.totalorder %s111, %s125
    %p127 = scmp.eq.s32.totalorder %s17, 0
    %p128 = por %p126, %p127
    %s129 = ssub.s32 %s11, %s18
    %p130 = scmp.eq.s32.totalorder %s129, 0
    %s132 = sadd.s32 %s131, 1
    %s133 = scalar_select %p130, %s131, %s132
    %p136 = pneg %p130
    %p137 = scmp.eq.s32.totalorder %s11, 1
    %p138 = por %p136, %p137
    %p139 = scmp.ne.s32.totalorder %s131, %s134
    %p140 = scmp.eq.s32.totalorder %s11, 0
    %p141 = por %p139, %p140
    %p142 = scmp.ne.s32.totalorder %s131, %s134
    %p143 = scmp.eq.s32.totalorder %s16, 1
    %p144 = por %p142, %p143
    %p145 = scmp.ne.s32.totalorder %s134, %s135
    %p146 = scmp.eq.s32.totalorder %s16, 0
    %p147 = por %p145, %p146
    %p148 = scmp.ne.s32.totalorder %s134, %s135
    %p149 = scmp.eq.s32.totalorder %s17, 1
    %p150 = por %p148, %p149
    %p152 = scmp.ne.s32.totalorder %s135, %s151
    %p153 = scmp.eq.s32.totalorder %s17, 0
    %p154 = por %p152, %p153
    %p155 = scmp.le.s32.totalorder 1, %s11
    %p156 = scmp.lt.s32.totalorder %s11, 3
    %p157 = pnand %p155, %p156
    %p158 = pneg %p157
    // Predicated region
    $region9: #{double_conv_forward.1} parent=5 // pred_check
      _
    $region10: #{double_conv_forward.1} parent=5 // pred_check_branch
      %160 = sbr.rel (%p157) target = $region12
    $region11: #{double_conv_forward.1} parent=5 // pred_region
      %s161 = ssub.s32 %s11, 1
      // Predicated region
      $region13: #{double_conv_forward.1} parent=11 // pred_check
        %p162 = pneg %p58
      $region14: #{double_conv_forward.1} parent=11 // pred_check_branch
        %164 = sbr.rel (%p162) target = $region16
      $region15: #{double_conv_forward.1} parent=11 // pred_region
        _
      $region16: #{double_conv_forward.1} parent=11 // pred_fallthru
        _
      // Predicated region
      $region17: #{double_conv_forward.1} parent=11 // pred_check
        %p165 = pneg %p79
      $region18: #{double_conv_forward.1} parent=11 // pred_check_branch
        %167 = sbr.rel (%p165) target = $region20
      $region19: #{double_conv_forward.1} parent=11 // pred_region
        _
      $region20: #{double_conv_forward.1} parent=11 // pred_fallthru
        _
      // Predicated region
      $region21: #{double_conv_forward.1} parent=11 // pred_check
        %p168 = pneg %p100
      $region22: #{double_conv_forward.1} parent=11 // pred_check_branch
        %170 = sbr.rel (%p168) target = $region24
      $region23: #{double_conv_forward.1} parent=11 // pred_region
        _
      $region24: #{double_conv_forward.1} parent=11 // pred_fallthru
        _
      // Predicated region
      $region25: #{double_conv_forward.1} parent=11 // pred_check
        %p171 = pneg %p121
      $region26: #{double_conv_forward.1} parent=11 // pred_check_branch
        %173 = sbr.rel (%p171) target = $region28
      $region27: #{double_conv_forward.1} parent=11 // pred_region
        _
      $region28: #{double_conv_forward.1} parent=11 // pred_fallthru
        _
    $region12: #{double_conv_forward.1} parent=5 // pred_fallthru
      _
    %p174 = scmp.lt.s32.totalorder %s11, 2
    // Predicated region
    $region29: #{double_conv_forward.1} parent=5 // pred_check
      %p175 = pneg %p174
    $region30: #{double_conv_forward.1} parent=5 // pred_check_branch
      %177 = sbr.rel (%p175) target = $region32
    $region31: #{double_conv_forward.1} parent=5 // pred_region
      // Predicated region
      $region33: #{double_conv_forward.1} parent=31 // pred_check
        %p178 = pneg %p31
      $region34: #{double_conv_forward.1} parent=31 // pred_check_branch
        %180 = sbr.rel (%p178) target = $region36
      $region35: #{double_conv_forward.1} parent=31 // pred_region
        %p181 = scmp.lt.s32.totalorder %s11, 1
        %s182 = scalar_select %p181, %s11, 1
        %s183 = smul.addr %s182, 32
        %s184 = smul.addr %s183, 8
        %s185 = scalar_lea.vmem %s0, %s184
      $region36: #{double_conv_forward.1} parent=31 // pred_fallthru
        _
    $region32: #{double_conv_forward.1} parent=5 // pred_fallthru
      _
    %p186 = scmp.le.s32.totalorder 1, %s11
    %p187 = scmp.lt.s32.totalorder %s11, 3
    %p188 = pnand %p186, %p187
    %p189 = pneg %p188
    // Predicated region
    $region37: #{double_conv_forward.1} parent=5 // pred_check
      _
    $region38: #{double_conv_forward.1} parent=5 // pred_check_branch
      %191 = sbr.rel (%p188) target = $region40
    $region39: #{double_conv_forward.1} parent=5 // pred_region
      %s192 = ssub.s32 %s11, 1
      %p193 = scmp.lt.s32.totalorder %s16, 1
      %s194 = scalar_select %p193, %s16, 1
      %s195 = smul.addr %s194, 32
      %s196 = smul.addr %s195, 8
      %s197 = scalar_lea.vmem %s0, %s196
      %p198 = pneg %p37
      %p199 = pneg %p34
      %p200 = pneg %p58
      %p201 = pneg %p55
      %p202 = pneg %p79
      %p203 = pneg %p76
      %p204 = pneg %p100
      %p205 = pneg %p97
      %p206 = pneg %p121
      %p207 = pneg %p118
      %p208 = pneg %p147
      %p209 = pneg %p144
      %p210 = scmp.lt.s32.totalorder %s16, 1
      %s211 = scalar_select %p210, %s16, 1
      %s212 = smul.addr %s211, 32
      %s213 = smul.addr %s212, 8
      %s214 = scalar_lea.vmem %s5, %s213
      %p215 = scmp.lt.s32.totalorder %s16, 1
      %s216 = scalar_select %p215, %s16, 1
      %s217 = smul.addr %s216, 32
      %s218 = smul.addr %s217, 8
      %s219 = scalar_lea.vmem %s0, %s218
      %p220 = scmp.lt.s32.totalorder %s16, 1
      %s221 = scalar_select %p220, %s16, 1
      %s222 = smul.addr %s221, 32
      %s223 = smul.addr %s222, 8
      %s224 = scalar_lea.vmem %s5, %s223
      %vm225 = vcmask 31744
      %226 = vst.msk [vmem:[#allocation2] sm:$0xff] %vm225, 0.0
      %227 = vst.msk [vmem:[#allocation2 + $0x8] sm:$0xff] %vm225, 0.0
      %vm228 = vcmask 25600
      %229 = vst.msk [vmem:[#allocation2 + $0x10] sm:$0x3] %vm228, 0.0
      %s230 = scalar_lea.vmem [#allocation2], 408
      %231 = vst.msk [vmem:[%s230] sm:$0xff] %vm225, 0.0
      %232 = vst.msk [vmem:[%s230 + $0x8] sm:$0xff] %vm225, 0.0
      %233 = vst.msk [vmem:[%s230 + $0x10] sm:$0x3] %vm228, 0.0
      %vm234 = vcmask 24576
      %235 = vst.msk [vmem:[#allocation2] sm:$0x1] %vm234, 0.0
      %236 = vst.msk [vmem:[#allocation2 + $0x18] sm:$0x1] %vm234, 0.0
      %237 = vst.msk [vmem:[#allocation2 + $0x30] sm:$0x1] %vm234, 0.0
      %238 = vst.msk [vmem:[#allocation2 + $0x48] sm:$0x1] %vm234, 0.0
      %239 = vst.msk [vmem:[#allocation2 + $0x60] sm:$0x1] %vm234, 0.0
      %240 = vst.msk [vmem:[#allocation2 + $0x78] sm:$0x1] %vm234, 0.0
      %241 = vst.msk [vmem:[#allocation2 + $0x90] sm:$0x1] %vm234, 0.0
      %242 = vst.msk [vmem:[#allocation2 + $0xa8] sm:$0x1] %vm234, 0.0
      %243 = vst.msk [vmem:[#allocation2 + $0xc0] sm:$0x1] %vm234, 0.0
      %244 = vst.msk [vmem:[#allocation2 + $0xd8] sm:$0x1] %vm234, 0.0
      %245 = vst.msk [vmem:[#allocation2 + $0xf0] sm:$0x1] %vm234, 0.0
      %246 = vst.msk [vmem:[#allocation2 + $0x108] sm:$0x1] %vm234, 0.0
      %247 = vst.msk [vmem:[#allocation2 + $0x120] sm:$0x1] %vm234, 0.0
      %248 = vst.msk [vmem:[#allocation2 + $0x138] sm:$0x1] %vm234, 0.0
      %249 = vst.msk [vmem:[#allocation2 + $0x150] sm:$0x1] %vm234, 0.0
      %250 = vst.msk [vmem:[#allocation2 + $0x168] sm:$0x1] %vm234, 0.0
      %251 = vst.msk [vmem:[#allocation2 + $0x180] sm:$0x1] %vm234, 0.0
      %252 = vst.msk [vmem:[#allocation2 + $0x198] sm:$0x1] %vm234, 0.0
      %253 = vst.msk [vmem:[#allocation2 + $0x11] sm:$0x1] %vm234, 0.0
      %254 = vst.msk [vmem:[#allocation2 + $0x29] sm:$0x1] %vm234, 0.0
      %255 = vst.msk [vmem:[#allocation2 + $0x41] sm:$0x1] %vm234, 0.0
      %256 = vst.msk [vmem:[#allocation2 + $0x59] sm:$0x1] %vm234, 0.0
      %257 = vst.msk [vmem:[#allocation2 + $0x71] sm:$0x1] %vm234, 0.0
      %258 = vst.msk [vmem:[#allocation2 + $0x89] sm:$0x1] %vm234, 0.0
      %259 = vst.msk [vmem:[#allocation2 + $0xa1] sm:$0x1] %vm234, 0.0
      %260 = vst.msk [vmem:[#allocation2 + $0xb9] sm:$0x1] %vm234, 0.0
      %261 = vst.msk [vmem:[#allocation2 + $0xd1] sm:$0x1] %vm234, 0.0
      %262 = vst.msk [vmem:[#allocation2 + $0xe9] sm:$0x1] %vm234, 0.0
      %263 = vst.msk [vmem:[#allocation2 + $0x101] sm:$0x1] %vm234, 0.0
      %264 = vst.msk [vmem:[#allocation2 + $0x119] sm:$0x1] %vm234, 0.0
      %265 = vst.msk [vmem:[#allocation2 + $0x131] sm:$0x1] %vm234, 0.0
      %266 = vst.msk [vmem:[#allocation2 + $0x149] sm:$0x1] %vm234, 0.0
      %267 = vst.msk [vmem:[#allocation2 + $0x161] sm:$0x1] %vm234, 0.0
      %268 = vst.msk [vmem:[#allocation2 + $0x179] sm:$0x1] %vm234, 0.0
      %269 = vst.msk [vmem:[#allocation2 + $0x191] sm:$0x1] %vm234, 0.0
      %270 = vst.msk [vmem:[#allocation2 + $0x1a9] sm:$0x1] %vm234, 0.0
      %v271 = vld [vmem:[%s219] sm:$0xff]
      %v272 = vld [vmem:[%s219 + $0x8] sm:$0xff]
      %v273 = vld [vmem:[%s219 + $0x10] sm:$0xff]
      %v274 = vld [vmem:[%s219 + $0x18] sm:$0xff]
      %v275 = vld [vmem:[%s219 + $0x20] sm:$0xff]
      %v276 = vld [vmem:[%s219 + $0x28] sm:$0xff]
      %v277 = vld [vmem:[%s219 + $0x30] sm:$0xff]
      %v278 = vld [vmem:[%s219 + $0x38] sm:$0xff]
      %v279 = vld [vmem:[%s219 + $0x40] sm:$0xff]
      %v280 = vld [vmem:[%s219 + $0x48] sm:$0xff]
      %v281 = vld [vmem:[%s219 + $0x50] sm:$0xff]
      %v282 = vld [vmem:[%s219 + $0x58] sm:$0xff]
      %v283 = vld [vmem:[%s219 + $0x60] sm:$0xff]
      %v284 = vld [vmem:[%s219 + $0x68] sm:$0xff]
      %v285 = vld [vmem:[%s219 + $0x70] sm:$0xff]
      %v286 = vld [vmem:[%s219 + $0x78] sm:$0xff]
      %v287 = vld [vmem:[%s219 + $0x80] sm:$0xff]
      %v288 = vld [vmem:[%s219 + $0x88] sm:$0xff]
      %v289 = vld [vmem:[%s219 + $0x90] sm:$0xff]
      %v290 = vld [vmem:[%s219 + $0x98] sm:$0xff]
      %v291 = vld [vmem:[%s219 + $0xa0] sm:$0xff]
      %v292 = vld [vmem:[%s219 + $0xa8] sm:$0xff]
      %v293 = vld [vmem:[%s219 + $0xb0] sm:$0xff]
      %v294 = vld [vmem:[%s219 + $0xb8] sm:$0xff]
      %v295 = vld [vmem:[%s219 + $0xc0] sm:$0xff]
      %v296 = vld [vmem:[%s219 + $0xc8] sm:$0xff]
      %v297 = vld [vmem:[%s219 + $0xd0] sm:$0xff]
      %v298 = vld [vmem:[%s219 + $0xd8] sm:$0xff]
      %v299 = vld [vmem:[%s219 + $0xe0] sm:$0xff]
      %v300 = vld [vmem:[%s219 + $0xe8] sm:$0xff]
      %v301 = vld [vmem:[%s219 + $0xf0] sm:$0xff]
      %v302 = vld [vmem:[%s219 + $0xf8] sm:$0xff]
      %s303 = scalar_lea.vmem [#allocation2], 24
      %304 = vst.msk [vmem:[%s303 + $0x1] sm:$0xff] %vm225, %v271
      %305 = vst.msk [vmem:[%s303 + $0x9] sm:$0xff] %vm225, %v272
      %306 = vst.msk [vmem:[%s303 + $0x19] sm:$0xff] %vm225, %v273
      %307 = vst.msk [vmem:[%s303 + $0x21] sm:$0xff] %vm225, %v274
      %308 = vst.msk [vmem:[%s303 + $0x31] sm:$0xff] %vm225, %v275
      %309 = vst.msk [vmem:[%s303 + $0x39] sm:$0xff] %vm225, %v276
      %310 = vst.msk [vmem:[%s303 + $0x49] sm:$0xff] %vm225, %v277
      %311 = vst.msk [vmem:[%s303 + $0x51] sm:$0xff] %vm225, %v278
      %312 = vst.msk [vmem:[%s303 + $0x61] sm:$0xff] %vm225, %v279
      %313 = vst.msk [vmem:[%s303 + $0x69] sm:$0xff] %vm225, %v280
      %314 = vst.msk [vmem:[%s303 + $0x79] sm:$0xff] %vm225, %v281
      %315 = vst.msk [vmem:[%s303 + $0x81] sm:$0xff] %vm225, %v282
      %316 = vst.msk [vmem:[%s303 + $0x91] sm:$0xff] %vm225, %v283
      %317 = vst.msk [vmem:[%s303 + $0x99] sm:$0xff] %vm225, %v284
      %318 = vst.msk [vmem:[%s303 + $0xa9] sm:$0xff] %vm225, %v285
      %319 = vst.msk [vmem:[%s303 + $0xb1] sm:$0xff] %vm225, %v286
      %320 = vst.msk [vmem:[%s303 + $0xc1] sm:$0xff] %vm225, %v287
      %321 = vst.msk [vmem:[%s303 + $0xc9] sm:$0xff] %vm225, %v288
      %322 = vst.msk [vmem:[%s303 + $0xd9] sm:$0xff] %vm225, %v289
      %323 = vst.msk [vmem:[%s303 + $0xe1] sm:$0xff] %vm225, %v290
      %324 = vst.msk [vmem:[%s303 + $0xf1] sm:$0xff] %vm225, %v291
      %325 = vst.msk [vmem:[%s303 + $0xf9] sm:$0xff] %vm225, %v292
      %326 = vst.msk [vmem:[%s303 + $0x109] sm:$0xff] %vm225, %v293
      %327 = vst.msk [vmem:[%s303 + $0x111] sm:$0xff] %vm225, %v294
      %328 = vst.msk [vmem:[%s303 + $0x121] sm:$0xff] %vm225, %v295
      %329 = vst.msk [vmem:[%s303 + $0x129] sm:$0xff] %vm225, %v296
      %330 = vst.msk [vmem:[%s303 + $0x139] sm:$0xff] %vm225, %v297
      %331 = vst.msk [vmem:[%s303 + $0x141] sm:$0xff] %vm225, %v298
      %332 = vst.msk [vmem:[%s303 + $0x151] sm:$0xff] %vm225, %v299
      %333 = vst.msk [vmem:[%s303 + $0x159] sm:$0xff] %vm225, %v300
      %334 = vst.msk [vmem:[%s303 + $0x169] sm:$0xff] %vm225, %v301
      %335 = vst.msk [vmem:[%s303 + $0x171] sm:$0xff] %vm225, %v302
      %vm336 = vcmask 64512
      %337 = vst.msk [vmem:[#allocation3] sm:$0xff] %vm336, 0.0
      %338 = vst.msk [vmem:[#allocation3 + $0x8] sm:$0xff] %vm336, 0.0
      %vm339 = vcmask 58368
      %340 = vst.msk [vmem:[#allocation3 + $0x10] sm:$0x3] %vm339, 0.0
      %s341 = scalar_lea.vmem [#allocation3], 408
      %342 = vst.msk [vmem:[%s341] sm:$0xff] %vm336, 0.0
      %343 = vst.msk [vmem:[%s341 + $0x8] sm:$0xff] %vm336, 0.0
      %344 = vst.msk [vmem:[%s341 + $0x10] sm:$0x3] %vm339, 0.0
      %vm345 = vcmask 57344
      %346 = vst.msk [vmem:[#allocation3] sm:$0x1] %vm345, 0.0
      %347 = vst.msk [vmem:[#allocation3 + $0x18] sm:$0x1] %vm345, 0.0
      %348 = vst.msk [vmem:[#allocation3 + $0x30] sm:$0x1] %vm345, 0.0
      %349 = vst.msk [vmem:[#allocation3 + $0x48] sm:$0x1] %vm345, 0.0
      %350 = vst.msk [vmem:[#allocation3 + $0x60] sm:$0x1] %vm345, 0.0
      %351 = vst.msk [vmem:[#allocation3 + $0x78] sm:$0x1] %vm345, 0.0
      %352 = vst.msk [vmem:[#allocation3 + $0x90] sm:$0x1] %vm345, 0.0
      %353 = vst.msk [vmem:[#allocation3 + $0xa8] sm:$0x1] %vm345, 0.0
      %354 = vst.msk [vmem:[#allocation3 + $0xc0] sm:$0x1] %vm345, 0.0
      %355 = vst.msk [vmem:[#allocation3 + $0xd8] sm:$0x1] %vm345, 0.0
      %356 = vst.msk [vmem:[#allocation3 + $0xf0] sm:$0x1] %vm345, 0.0
      %357 = vst.msk [vmem:[#allocation3 + $0x108] sm:$0x1] %vm345, 0.0
      %358 = vst.msk [vmem:[#allocation3 + $0x120] sm:$0x1] %vm345, 0.0
      %359 = vst.msk [vmem:[#allocation3 + $0x138] sm:$0x1] %vm345, 0.0
      %360 = vst.msk [vmem:[#allocation3 + $0x150] sm:$0x1] %vm345, 0.0
      %361 = vst.msk [vmem:[#allocation3 + $0x168] sm:$0x1] %vm345, 0.0
      %362 = vst.msk [vmem:[#allocation3 + $0x180] sm:$0x1] %vm345, 0.0
      %363 = vst.msk [vmem:[#allocation3 + $0x198] sm:$0x1] %vm345, 0.0
      %364 = vst.msk [vmem:[#allocation3 + $0x11] sm:$0x1] %vm345, 0.0
      %365 = vst.msk [vmem:[#allocation3 + $0x29] sm:$0x1] %vm345, 0.0
      %366 = vst.msk [vmem:[#allocation3 + $0x41] sm:$0x1] %vm345, 0.0
      %367 = vst.msk [vmem:[#allocation3 + $0x59] sm:$0x1] %vm345, 0.0
      %368 = vst.msk [vmem:[#allocation3 + $0x71] sm:$0x1] %vm345, 0.0
      %369 = vst.msk [vmem:[#allocation3 + $0x89] sm:$0x1] %vm345, 0.0
      %370 = vst.msk [vmem:[#allocation3 + $0xa1] sm:$0x1] %vm345, 0.0
      %371 = vst.msk [vmem:[#allocation3 + $0xb9] sm:$0x1] %vm345, 0.0
      %372 = vst.msk [vmem:[#allocation3 + $0xd1] sm:$0x1] %vm345, 0.0
      %373 = vst.msk [vmem:[#allocation3 + $0xe9] sm:$0x1] %vm345, 0.0
      %374 = vst.msk [vmem:[#allocation3 + $0x101] sm:$0x1] %vm345, 0.0
      %375 = vst.msk [vmem:[#allocation3 + $0x119] sm:$0x1] %vm345, 0.0
      %376 = vst.msk [vmem:[#allocation3 + $0x131] sm:$0x1] %vm345, 0.0
      %377 = vst.msk [vmem:[#allocation3 + $0x149] sm:$0x1] %vm345, 0.0
      %378 = vst.msk [vmem:[#allocation3 + $0x161] sm:$0x1] %vm345, 0.0
      %379 = vst.msk [vmem:[#allocation3 + $0x179] sm:$0x1] %vm345, 0.0
      %380 = vst.msk [vmem:[#allocation3 + $0x191] sm:$0x1] %vm345, 0.0
      %381 = vst.msk [vmem:[#allocation3 + $0x1a9] sm:$0x1] %vm345, 0.0
      %v382 = vld [vmem:[#allocation2] sm:$0xff]
      %v383 = vld [vmem:[#allocation2 + $0x8] sm:$0xff]
      %v384 = vld [vmem:[#allocation2 + $0x18] sm:$0xff]
      %v385 = vld [vmem:[#allocation2 + $0x20] sm:$0xff]
      %v386 = vld [vmem:[#allocation2 + $0x30] sm:$0xff]
      %v387 = vld [vmem:[#allocation2 + $0x38] sm:$0xff]
      %v388 = vld [vmem:[#allocation2 + $0x48] sm:$0xff]
      %v389 = vld [vmem:[#allocation2 + $0x50] sm:$0xff]
      %v390 = vld [vmem:[#allocation2 + $0x60] sm:$0xff]
      %v391 = vld [vmem:[#allocation2 + $0x68] sm:$0xff]
      %v392 = vld [vmem:[#allocation2 + $0x78] sm:$0xff]
      %v393 = vld [vmem:[#allocation2 + $0x80] sm:$0xff]
      %v394 = vld [vmem:[#allocation2 + $0x90] sm:$0xff]
      %v395 = vld [vmem:[#allocation2 + $0x98] sm:$0xff]
      %v396 = vld [vmem:[#allocation2 + $0xa8] sm:$0xff]
      %v397 = vld [vmem:[#allocation2 + $0xb0] sm:$0xff]
      %398 = vst.msk [vmem:[#allocation4] sm:$0xff] %vm225, %v382
      %399 = vst.msk [vmem:[#allocation4 + $0x8] sm:$0xff] %vm225, %v383
      %400 = vst.msk [vmem:[#allocation4 + $0x10] sm:$0xff] %vm225, %v384
      %401 = vst.msk [vmem:[#allocation4 + $0x18] sm:$0xff] %vm225, %v385
      %402 = vst.msk [vmem:[#allocation4 + $0x20] sm:$0xff] %vm225, %v386
      %403 = vst.msk [vmem:[#allocation4 + $0x28] sm:$0xff] %vm225, %v387
      %404 = vst.msk [vmem:[#allocation4 + $0x30] sm:$0xff] %vm225, %v388
      %405 = vst.msk [vmem:[#allocation4 + $0x38] sm:$0xff] %vm225, %v389
      %406 = vst.msk [vmem:[#allocation4 + $0x40] sm:$0xff] %vm225, %v390
      %407 = vst.msk [vmem:[#allocation4 + $0x48] sm:$0xff] %vm225, %v391
      %408 = vst.msk [vmem:[#allocation4 + $0x50] sm:$0xff] %vm225, %v392
      %409 = vst.msk [vmem:[#allocation4 + $0x58] sm:$0xff] %vm225, %v393
      %410 = vst.msk [vmem:[#allocation4 + $0x60] sm:$0xff] %vm225, %v394
      %411 = vst.msk [vmem:[#allocation4 + $0x68] sm:$0xff] %vm225, %v395
      %412 = vst.msk [vmem:[#allocation4 + $0x70] sm:$0xff] %vm225, %v396
      %413 = vst.msk [vmem:[#allocation4 + $0x78] sm:$0xff] %vm225, %v397
      %v414 = vld [vmem:[#allocation2 + $0x1] sm:$0xff]
      %v415 = vld [vmem:[#allocation2 + $0x9] sm:$0xff]
      %v416 = vld [vmem:[#allocation2 + $0x19] sm:$0xff]
      %v417 = vld [vmem:[#allocation2 + $0x21] sm:$0xff]
      %v418 = vld [vmem:[#allocation2 + $0x31] sm:$0xff]
      %v419 = vld [vmem:[#allocation2 + $0x39] sm:$0xff]
      %v420 = vld [vmem:[#allocation2 + $0x49] sm:$0xff]
      %v421 = vld [vmem:[#allocation2 + $0x51] sm:$0xff]
      %v422 = vld [vmem:[#allocation2 + $0x61] sm:$0xff]
      %v423 = vld [vmem:[#allocation2 + $0x69] sm:$0xff]
      %v424 = vld [vmem:[#allocation2 + $0x79] sm:$0xff]
      %v425 = vld [vmem:[#allocation2 + $0x81] sm:$0xff]
      %v426 = vld [vmem:[#allocation2 + $0x91] sm:$0xff]
      %v427 = vld [vmem:[#allocation2 + $0x99] sm:$0xff]
      %v428 = vld [vmem:[#allocation2 + $0xa9] sm:$0xff]
      %v429 = vld [vmem:[#allocation2 + $0xb1] sm:$0xff]
      %446 = vrot.lane.b32.xlu0 %v414, 4
      %v447 = vpop.permute.xlu0 %446
      %448 = vrot.lane.b32.xlu0 %v415, 4
      %v449 = vpop.permute.xlu0 %448
      %450 = vrot.lane.b32.xlu0 %v416, 4
      %v451 = vpop.permute.xlu0 %450
      %452 = vrot.lane.b32.xlu0 %v417, 4
      %v453 = vpop.permute.xlu0 %452
      %454 = vrot.lane.b32.xlu0 %v418, 4
      %v455 = vpop.permute.xlu0 %454
      %456 = vrot.lane.b32.xlu0 %v419, 4
      %v457 = vpop.permute.xlu0 %456
      %458 = vrot.lane.b32.xlu0 %v420, 4
      %v459 = vpop.permute.xlu0 %458
      %460 = vrot.lane.b32.xlu0 %v421, 4
      %v461 = vpop.permute.xlu0 %460
      %462 = vrot.lane.b32.xlu0 %v422, 4
      %v463 = vpop.permute.xlu0 %462
      %464 = vrot.lane.b32.xlu0 %v423, 4
      %v465 = vpop.permute.xlu0 %464
      %466 = vrot.lane.b32.xlu0 %v424, 4
      %v467 = vpop.permute.xlu0 %466
      %468 = vrot.lane.b32.xlu0 %v425, 4
      %v469 = vpop.permute.xlu0 %468
      %470 = vrot.lane.b32.xlu0 %v426, 4
      %v471 = vpop.permute.xlu0 %470
      %472 = vrot.lane.b32.xlu0 %v427, 4
      %v473 = vpop.permute.xlu0 %472
      %474 = vrot.lane.b32.xlu0 %v428, 4
      %v475 = vpop.permute.xlu0 %474
      %476 = vrot.lane.b32.xlu0 %v429, 4
      %v477 = vpop.permute.xlu0 %476
      %vm494 = vcmask 64544
      %495 = vst.msk [vmem:[#allocation4] sm:$0xff] %vm494, %v447
      %496 = vst.msk [vmem:[#allocation4 + $0x8] sm:$0xff] %vm494, %v449
      %497 = vst.msk [vmem:[#allocation4 + $0x10] sm:$0xff] %vm494, %v451
      %498 = vst.msk [vmem:[#allocation4 + $0x18] sm:$0xff] %vm494, %v453
      %499 = vst.msk [vmem:[#allocation4 + $0x20] sm:$0xff] %vm494, %v455
      %500 = vst.msk [vmem:[#allocation4 + $0x28] sm:$0xff] %vm494, %v457
      %501 = vst.msk [vmem:[#allocation4 + $0x30] sm:$0xff] %vm494, %v459
      %502 = vst.msk [vmem:[#allocation4 + $0x38] sm:$0xff] %vm494, %v461
      %503 = vst.msk [vmem:[#allocation4 + $0x40] sm:$0xff] %vm494, %v463
      %504 = vst.msk [vmem:[#allocation4 + $0x48] sm:$0xff] %vm494, %v465
      %505 = vst.msk [vmem:[#allocation4 + $0x50] sm:$0xff] %vm494, %v467
      %506 = vst.msk [vmem:[#allocation4 + $0x58] sm:$0xff] %vm494, %v469
      %507 = vst.msk [vmem:[#allocation4 + $0x60] sm:$0xff] %vm494, %v471
      %508 = vst.msk [vmem:[#allocation4 + $0x68] sm:$0xff] %vm494, %v473
      %509 = vst.msk [vmem:[#allocation4 + $0x70] sm:$0xff] %vm494, %v475
      %510 = vst.msk [vmem:[#allocation4 + $0x78] sm:$0xff] %vm494, %v477
      %v511 = vld [vmem:[#allocation2 + $0x2] sm:$0xff]
      %v512 = vld [vmem:[#allocation2 + $0xa] sm:$0xff]
      %v513 = vld [vmem:[#allocation2 + $0x1a] sm:$0xff]
      %v514 = vld [vmem:[#allocation2 + $0x22] sm:$0xff]
      %v515 = vld [vmem:[#allocation2 + $0x32] sm:$0xff]
      %v516 = vld [vmem:[#allocation2 + $0x3a] sm:$0xff]
      %v517 = vld [vmem:[#allocation2 + $0x4a] sm:$0xff]
      %v518 = vld [vmem:[#allocation2 + $0x52] sm:$0xff]
      %v519 = vld [vmem:[#allocation2 + $0x62] sm:$0xff]
      %v520 = vld [vmem:[#allocation2 + $0x6a] sm:$0xff]
      %v521 = vld [vmem:[#allocation2 + $0x7a] sm:$0xff]
      %v522 = vld [vmem:[#allocation2 + $0x82] sm:$0xff]
      %v523 = vld [vmem:[#allocation2 + $0x92] sm:$0xff]
      %v524 = vld [vmem:[#allocation2 + $0x9a] sm:$0xff]
      %v525 = vld [vmem:[#allocation2 + $0xaa] sm:$0xff]
      %v526 = vld [vmem:[#allocation2 + $0xb2] sm:$0xff]
      %543 = vrot.lane.b32.xlu0 %v511, 8
      %v544 = vpop.permute.xlu0 %543
      %545 = vrot.lane.b32.xlu0 %v512, 8
      %v546 = vpop.permute.xlu0 %545
      %547 = vrot.lane.b32.xlu0 %v513, 8
      %v548 = vpop.permute.xlu0 %547
      %549 = vrot.lane.b32.xlu0 %v514, 8
      %v550 = vpop.permute.xlu0 %549
      %551 = vrot.lane.b32.xlu0 %v515, 8
      %v552 = vpop.permute.xlu0 %551
      %553 = vrot.lane.b32.xlu0 %v516, 8
      %v554 = vpop.permute.xlu0 %553
      %555 = vrot.lane.b32.xlu0 %v517, 8
      %v556 = vpop.permute.xlu0 %555
      %557 = vrot.lane.b32.xlu0 %v518, 8
      %v558 = vpop.permute.xlu0 %557
      %559 = vrot.lane.b32.xlu0 %v519, 8
      %v560 = vpop.permute.xlu0 %559
      %561 = vrot.lane.b32.xlu0 %v520, 8
      %v562 = vpop.permute.xlu0 %561
      %563 = vrot.lane.b32.xlu0 %v521, 8
      %v564 = vpop.permute.xlu0 %563
      %565 = vrot.lane.b32.xlu0 %v522, 8
      %v566 = vpop.permute.xlu0 %565
      %567 = vrot.lane.b32.xlu0 %v523, 8
      %v568 = vpop.permute.xlu0 %567
      %569 = vrot.lane.b32.xlu0 %v524, 8
      %v570 = vpop.permute.xlu0 %569
      %571 = vrot.lane.b32.xlu0 %v525, 8
      %v572 = vpop.permute.xlu0 %571
      %573 = vrot.lane.b32.xlu0 %v526, 8
      %v574 = vpop.permute.xlu0 %573
      %vm591 = vcmask 97344
      %592 = vst.msk [vmem:[#allocation4] sm:$0xff] %vm591, %v544
      %593 = vst.msk [vmem:[#allocation4 + $0x8] sm:$0xff] %vm591, %v546
      %594 = vst.msk [vmem:[#allocation4 + $0x10] sm:$0xff] %vm591, %v548
      %595 = vst.msk [vmem:[#allocation4 + $0x18] sm:$0xff] %vm591, %v550
      %596 = vst.msk [vmem:[#allocation4 + $0x20] sm:$0xff] %vm591, %v552
      %597 = vst.msk [vmem:[#allocation4 + $0x28] sm:$0xff] %vm591, %v554
      %598 = vst.msk [vmem:[#allocation4 + $0x30] sm:$0xff] %vm591, %v556
      %599 = vst.msk [vmem:[#allocation4 + $0x38] sm:$0xff] %vm591, %v558
      %600 = vst.msk [vmem:[#allocation4 + $0x40] sm:$0xff] %vm591, %v560
      %601 = vst.msk [vmem:[#allocation4 + $0x48] sm:$0xff] %vm591, %v562
      %602 = vst.msk [vmem:[#allocation4 + $0x50] sm:$0xff] %vm591, %v564
      %603 = vst.msk [vmem:[#allocation4 + $0x58] sm:$0xff] %vm591, %v566
      %604 = vst.msk [vmem:[#allocation4 + $0x60] sm:$0xff] %vm591, %v568
      %605 = vst.msk [vmem:[#allocation4 + $0x68] sm:$0xff] %vm591, %v570
      %606 = vst.msk [vmem:[#allocation4 + $0x70] sm:$0xff] %vm591, %v572
      %607 = vst.msk [vmem:[#allocation4 + $0x78] sm:$0xff] %vm591, %v574
      %v608 = vld [vmem:[%s303] sm:$0xff]
      %v609 = vld [vmem:[%s303 + $0x8] sm:$0xff]
      %v610 = vld [vmem:[%s303 + $0x18] sm:$0xff]
      %v611 = vld [vmem:[%s303 + $0x20] sm:$0xff]
      %v612 = vld [vmem:[%s303 + $0x30] sm:$0xff]
      %v613 = vld [vmem:[%s303 + $0x38] sm:$0xff]
      %v614 = vld [vmem:[%s303 + $0x48] sm:$0xff]
      %v615 = vld [vmem:[%s303 + $0x50] sm:$0xff]
      %v616 = vld [vmem:[%s303 + $0x60] sm:$0xff]
      %v617 = vld [vmem:[%s303 + $0x68] sm:$0xff]
      %v618 = vld [vmem:[%s303 + $0x78] sm:$0xff]
      %v619 = vld [vmem:[%s303 + $0x80] sm:$0xff]
      %v620 = vld [vmem:[%s303 + $0x90] sm:$0xff]
      %v621 = vld [vmem:[%s303 + $0x98] sm:$0xff]
      %v622 = vld [vmem:[%s303 + $0xa8] sm:$0xff]
      %v623 = vld [vmem:[%s303 + $0xb0] sm:$0xff]
      %640 = vrot.lane.b32.xlu0 %v608, 12
      %v641 = vpop.permute.xlu0 %640
      %642 = vrot.lane.b32.xlu0 %v609, 12
      %v643 = vpop.permute.xlu0 %642
      %644 = vrot.lane.b32.xlu0 %v610, 12
      %v645 = vpop.permute.xlu0 %644
      %646 = vrot.lane.b32.xlu0 %v611, 12
      %v647 = vpop.permute.xlu0 %646
      %648 = vrot.lane.b32.xlu0 %v612, 12
      %v649 = vpop.permute.xlu0 %648
      %650 = vrot.lane.b32.xlu0 %v613, 12
      %v651 = vpop.permute.xlu0 %650
      %652 = vrot.lane.b32.xlu0 %v614, 12
      %v653 = vpop.permute.xlu0 %652
      %654 = vrot.lane.b32.xlu0 %v615, 12
      %v655 = vpop.permute.xlu0 %654
      %656 = vrot.lane.b32.xlu0 %v616, 12
      %v657 = vpop.permute.xlu0 %656
      %658 = vrot.lane.b32.xlu0 %v617, 12
      %v659 = vpop.permute.xlu0 %658
      %660 = vrot.lane.b32.xlu0 %v618, 12
      %v661 = vpop.permute.xlu0 %660
      %662 = vrot.lane.b32.xlu0 %v619, 12
      %v663 = vpop.permute.xlu0 %662
      %664 = vrot.lane.b32.xlu0 %v620, 12
      %v665 = vpop.permute.xlu0 %664
      %666 = vrot.lane.b32.xlu0 %v621, 12
      %v667 = vpop.permute.xlu0 %666
      %668 = vrot.lane.b32.xlu0 %v622, 12
      %v669 = vpop.permute.xlu0 %668
      %670 = vrot.lane.b32.xlu0 %v623, 12
      %v671 = vpop.permute.xlu0 %670
      %vm688 = vcmask 130144
      %689 = vst.msk [vmem:[#allocation4] sm:$0xff] %vm688, %v641
      %690 = vst.msk [vmem:[#allocation4 + $0x8] sm:$0xff] %vm688, %v643
      %691 = vst.msk [vmem:[#allocation4 + $0x10] sm:$0xff] %vm688, %v645
      %692 = vst.msk [vmem:[#allocation4 + $0x18] sm:$0xff] %vm688, %v647
      %693 = vst.msk [vmem:[#allocation4 + $0x20] sm:$0xff] %vm688, %v649
      %694 = vst.msk [vmem:[#allocation4 + $0x28] sm:$0xff] %vm688, %v651
      %695 = vst.msk [vmem:[#allocation4 + $0x30] sm:$0xff] %vm688, %v653
      %696 = vst.msk [vmem:[#allocation4 + $0x38] sm:$0xff] %vm688, %v655
      %697 = vst.msk [vmem:[#allocation4 + $0x40] sm:$0xff] %vm688, %v657
      %698 = vst.msk [vmem:[#allocation4 + $0x48] sm:$0xff] %vm688, %v659
      %699 = vst.msk [vmem:[#allocation4 + $0x50] sm:$0xff] %vm688, %v661
      %700 = vst.msk [vmem:[#allocation4 + $0x58] sm:$0xff] %vm688, %v663
      %701 = vst.msk [vmem:[#allocation4 + $0x60] sm:$0xff] %vm688, %v665
      %702 = vst.msk [vmem:[#allocation4 + $0x68] sm:$0xff] %vm688, %v667
      %703 = vst.msk [vmem:[#allocation4 + $0x70] sm:$0xff] %vm688, %v669
      %704 = vst.msk [vmem:[#allocation4 + $0x78] sm:$0xff] %vm688, %v671
      %v705 = vld [vmem:[%s303 + $0x1] sm:$0xff]
      %v706 = vld [vmem:[%s303 + $0x9] sm:$0xff]
      %v707 = vld [vmem:[%s303 + $0x19] sm:$0xff]
      %v708 = vld [vmem:[%s303 + $0x21] sm:$0xff]
      %v709 = vld [vmem:[%s303 + $0x31] sm:$0xff]
      %v710 = vld [vmem:[%s303 + $0x39] sm:$0xff]
      %v711 = vld [vmem:[%s303 + $0x49] sm:$0xff]
      %v712 = vld [vmem:[%s303 + $0x51] sm:$0xff]
      %v713 = vld [vmem:[%s303 + $0x61] sm:$0xff]
      %v714 = vld [vmem:[%s303 + $0x69] sm:$0xff]
      %v715 = vld [vmem:[%s303 + $0x79] sm:$0xff]
      %v716 = vld [vmem:[%s303 + $0x81] sm:$0xff]
      %v717 = vld [vmem:[%s303 + $0x91] sm:$0xff]
      %v718 = vld [vmem:[%s303 + $0x99] sm:$0xff]
      %v719 = vld [vmem:[%s303 + $0xa9] sm:$0xff]
      %v720 = vld [vmem:[%s303 + $0xb1] sm:$0xff]
      %737 = vrot.lane.b32.xlu0 %v705, 16
      %v738 = vpop.permute.xlu0 %737
      %739 = vrot.lane.b32.xlu0 %v706, 16
      %v740 = vpop.permute.xlu0 %739
      %741 = vrot.lane.b32.xlu0 %v707, 16
      %v742 = vpop.permute.xlu0 %741
      %743 = vrot.lane.b32.xlu0 %v708, 16
      %v744 = vpop.permute.xlu0 %743
      %745 = vrot.lane.b32.xlu0 %v709, 16
      %v746 = vpop.permute.xlu0 %745
      %747 = vrot.lane.b32.xlu0 %v710, 16
      %v748 = vpop.permute.xlu0 %747
      %749 = vrot.lane.b32.xlu0 %v711, 16
      %v750 = vpop.permute.xlu0 %749
      %751 = vrot.lane.b32.xlu0 %v712, 16
      %v752 = vpop.permute.xlu0 %751
      %753 = vrot.lane.b32.xlu0 %v713, 16
      %v754 = vpop.permute.xlu0 %753
      %755 = vrot.lane.b32.xlu0 %v714, 16
      %v756 = vpop.permute.xlu0 %755
      %757 = vrot.lane.b32.xlu0 %v715, 16
      %v758 = vpop.permute.xlu0 %757
      %759 = vrot.lane.b32.xlu0 %v716, 16
      %v760 = vpop.permute.xlu0 %759
      %761 = vrot.lane.b32.xlu0 %v717, 16
      %v762 = vpop.permute.xlu0 %761
      %763 = vrot.lane.b32.xlu0 %v718, 16
      %v764 = vpop.permute.xlu0 %763
      %765 = vrot.lane.b32.xlu0 %v719, 16
      %v766 = vpop.permute.xlu0 %765
      %767 = vrot.lane.b32.xlu0 %v720, 16
      %v768 = vpop.permute.xlu0 %767
      %vm785 = vcmask 162944
      %786 = vst.msk [vmem:[#allocation4] sm:$0xff] %vm785, %v738
      %787 = vst.msk [vmem:[#allocation4 + $0x8] sm:$0xff] %vm785, %v740
      %788 = vst.msk [vmem:[#allocation4 + $0x10] sm:$0xff] %vm785, %v742
      %789 = vst.msk [vmem:[#allocation4 + $0x18] sm:$0xff] %vm785, %v744
      %790 = vst.msk [vmem:[#allocation4 + $0x20] sm:$0xff] %vm785, %v746
      %791 = vst.msk [vmem:[#allocation4 + $0x28] sm:$0xff] %vm785, %v748
      %792 = vst.msk [vmem:[#allocation4 + $0x30] sm:$0xff] %vm785, %v750
      %793 = vst.msk [vmem:[#allocation4 + $0x38] sm:$0xff] %vm785, %v752
      %794 = vst.msk [vmem:[#allocation4 + $0x40] sm:$0xff] %vm785, %v754
      %795 = vst.msk [vmem:[#allocation4 + $0x48] sm:$0xff] %vm785, %v756
      %796 = vst.msk [vmem:[#allocation4 + $0x50] sm:$0xff] %vm785, %v758
      %797 = vst.msk [vmem:[#allocation4 + $0x58] sm:$0xff] %vm785, %v760
      %798 = vst.msk [vmem:[#allocation4 + $0x60] sm:$0xff] %vm785, %v762
      %799 = vst.msk [vmem:[#allocation4 + $0x68] sm:$0xff] %vm785, %v764
      %800 = vst.msk [vmem:[#allocation4 + $0x70] sm:$0xff] %vm785, %v766
      %801 = vst.msk [vmem:[#allocation4 + $0x78] sm:$0xff] %vm785, %v768
      %v802 = vld [vmem:[%s303 + $0x2] sm:$0xff]
      %v803 = vld [vmem:[%s303 + $0xa] sm:$0xff]
      %v804 = vld [vmem:[%s303 + $0x1a] sm:$0xff]
      %v805 = vld [vmem:[%s303 + $0x22] sm:$0xff]
      %v806 = vld [vmem:[%s303 + $0x32] sm:$0xff]
      %v807 = vld [vmem:[%s303 + $0x3a] sm:$0xff]
      %v808 = vld [vmem:[%s303 + $0x4a] sm:$0xff]
      %v809 = vld [vmem:[%s303 + $0x52] sm:$0xff]
      %v810 = vld [vmem:[%s303 + $0x62] sm:$0xff]
      %v811 = vld [vmem:[%s303 + $0x6a] sm:$0xff]
      %v812 = vld [vmem:[%s303 + $0x7a] sm:$0xff]
      %v813 = vld [vmem:[%s303 + $0x82] sm:$0xff]
      %v814 = vld [vmem:[%s303 + $0x92] sm:$0xff]
      %v815 = vld [vmem:[%s303 + $0x9a] sm:$0xff]
      %v816 = vld [vmem:[%s303 + $0xaa] sm:$0xff]
      %v817 = vld [vmem:[%s303 + $0xb2] sm:$0xff]
      %834 = vrot.lane.b32.xlu0 %v802, 20
      %v835 = vpop.permute.xlu0 %834
      %836 = vrot.lane.b32.xlu0 %v803, 20
      %v837 = vpop.permute.xlu0 %836
      %838 = vrot.lane.b32.xlu0 %v804, 20
      %v839 = vpop.permute.xlu0 %838
      %840 = vrot.lane.b32.xlu0 %v805, 20
      %v841 = vpop.permute.xlu0 %840
      %842 = vrot.lane.b32.xlu0 %v806, 20
      %v843 = vpop.permute.xlu0 %842
      %844 = vrot.lane.b32.xlu0 %v807, 20
      %v845 = vpop.permute.xlu0 %844
      %846 = vrot.lane.b32.xlu0 %v808, 20
      %v847 = vpop.permute.xlu0 %846
      %848 = vrot.lane.b32.xlu0 %v809, 20
      %v849 = vpop.permute.xlu0 %848
      %850 = vrot.lane.b32.xlu0 %v810, 20
      %v851 = vpop.permute.xlu0 %850
      %852 = vrot.lane.b32.xlu0 %v811, 20
      %v853 = vpop.permute.xlu0 %852
      %854 = vrot.lane.b32.xlu0 %v812, 20
      %v855 = vpop.permute.xlu0 %854
      %856 = vrot.lane.b32.xlu0 %v813, 20
      %v857 = vpop.permute.xlu0 %856
      %858 = vrot.lane.b32.xlu0 %v814, 20
      %v859 = vpop.permute.xlu0 %858
      %860 = vrot.lane.b32.xlu0 %v815, 20
      %v861 = vpop.permute.xlu0 %860
      %862 = vrot.lane.b32.xlu0 %v816, 20
      %v863 = vpop.permute.xlu0 %862
      %864 = vrot.lane.b32.xlu0 %v817, 20
      %v865 = vpop.permute.xlu0 %864
      %vm882 = vcmask 195744
      %883 = vst.msk [vmem:[#allocation4] sm:$0xff] %vm882, %v835
      %884 = vst.msk [vmem:[#allocation4 + $0x8] sm:$0xff] %vm882, %v837
      %885 = vst.msk [vmem:[#allocation4 + $0x10] sm:$0xff] %vm882, %v839
      %886 = vst.msk [vmem:[#allocation4 + $0x18] sm:$0xff] %vm882, %v841
      %887 = vst.msk [vmem:[#allocation4 + $0x20] sm:$0xff] %vm882, %v843
      %888 = vst.msk [vmem:[#allocation4 + $0x28] sm:$0xff] %vm882, %v845
      %889 = vst.msk [vmem:[#allocation4 + $0x30] sm:$0xff] %vm882, %v847
      %890 = vst.msk [vmem:[#allocation4 + $0x38] sm:$0xff] %vm882, %v849
      %891 = vst.msk [vmem:[#allocation4 + $0x40] sm:$0xff] %vm882, %v851
      %892 = vst.msk [vmem:[#allocation4 + $0x48] sm:$0xff] %vm882, %v853
      %893 = vst.msk [vmem:[#allocation4 + $0x50] sm:$0xff] %vm882, %v855
      %894 = vst.msk [vmem:[#allocation4 + $0x58] sm:$0xff] %vm882, %v857
      %895 = vst.msk [vmem:[#allocation4 + $0x60] sm:$0xff] %vm882, %v859
      %896 = vst.msk [vmem:[#allocation4 + $0x68] sm:$0xff] %vm882, %v861
      %897 = vst.msk [vmem:[#allocation4 + $0x70] sm:$0xff] %vm882, %v863
      %898 = vst.msk [vmem:[#allocation4 + $0x78] sm:$0xff] %vm882, %v865
      %s899 = scalar_lea.vmem [#allocation2], 48
      %v900 = vld [vmem:[%s899] sm:$0xff]
      %v901 = vld [vmem:[%s899 + $0x8] sm:$0xff]
      %v902 = vld [vmem:[%s899 + $0x18] sm:$0xff]
      %v903 = vld [vmem:[%s899 + $0x20] sm:$0xff]
      %v904 = vld [vmem:[%s899 + $0x30] sm:$0xff]
      %v905 = vld [vmem:[%s899 + $0x38] sm:$0xff]
      %v906 = vld [vmem:[%s899 + $0x48] sm:$0xff]
      %v907 = vld [vmem:[%s899 + $0x50] sm:$0xff]
      %v908 = vld [vmem:[%s899 + $0x60] sm:$0xff]
      %v909 = vld [vmem:[%s899 + $0x68] sm:$0xff]
      %v910 = vld [vmem:[%s899 + $0x78] sm:$0xff]
      %v911 = vld [vmem:[%s899 + $0x80] sm:$0xff]
      %v912 = vld [vmem:[%s899 + $0x90] sm:$0xff]
      %v913 = vld [vmem:[%s899 + $0x98] sm:$0xff]
      %v914 = vld [vmem:[%s899 + $0xa8] sm:$0xff]
      %v915 = vld [vmem:[%s899 + $0xb0] sm:$0xff]
      %932 = vrot.lane.b32.xlu0 %v900, 24
      %v933 = vpop.permute.xlu0 %932
      %934 = vrot.lane.b32.xlu0 %v901, 24
      %v935 = vpop.permute.xlu0 %934
      %936 = vrot.lane.b32.xlu0 %v902, 24
      %v937 = vpop.permute.xlu0 %936
      %938 = vrot.lane.b32.xlu0 %v903, 24
      %v939 = vpop.permute.xlu0 %938
      %940 = vrot.lane.b32.xlu0 %v904, 24
      %v941 = vpop.permute.xlu0 %940
      %942 = vrot.lane.b32.xlu0 %v905, 24
      %v943 = vpop.permute.xlu0 %942
      %944 = vrot.lane.b32.xlu0 %v906, 24
      %v945 = vpop.permute.xlu0 %944
      %946 = vrot.lane.b32.xlu0 %v907, 24
      %v947 = vpop.permute.xlu0 %946
      %948 = vrot.lane.b32.xlu0 %v908, 24
      %v949 = vpop.permute.xlu0 %948
      %950 = vrot.lane.b32.xlu0 %v909, 24
      %v951 = vpop.permute.xlu0 %950
      %952 = vrot.lane.b32.xlu0 %v910, 24
      %v953 = vpop.permute.xlu0 %952
      %954 = vrot.lane.b32.xlu0 %v911, 24
      %v955 = vpop.permute.xlu0 %954
      %956 = vrot.lane.b32.xlu0 %v912, 24
      %v957 = vpop.permute.xlu0 %956
      %958 = vrot.lane.b32.xlu0 %v913, 24
      %v959 = vpop.permute.xlu0 %958
      %960 = vrot.lane.b32.xlu0 %v914, 24
      %v961 = vpop.permute.xlu0 %960
      %962 = vrot.lane.b32.xlu0 %v915, 24
      %v963 = vpop.permute.xlu0 %962
      %vm980 = vcmask 228544
      %981 = vst.msk [vmem:[#allocation4] sm:$0xff] %vm980, %v933
      %982 = vst.msk [vmem:[#allocation4 + $0x8] sm:$0xff] %vm980, %v935
      %983 = vst.msk [vmem:[#allocation4 + $0x10] sm:$0xff] %vm980, %v937
      %984 = vst.msk [vmem:[#allocation4 + $0x18] sm:$0xff] %vm980, %v939
      %985 = vst.msk [vmem:[#allocation4 + $0x20] sm:$0xff] %vm980, %v941
      %986 = vst.msk [vmem:[#allocation4 + $0x28] sm:$0xff] %vm980, %v943
      %987 = vst.msk [vmem:[#allocation4 + $0x30] sm:$0xff] %vm980, %v945
      %988 = vst.msk [vmem:[#allocation4 + $0x38] sm:$0xff] %vm980, %v947
      %989 = vst.msk [vmem:[#allocation4 + $0x40] sm:$0xff] %vm980, %v949
      %990 = vst.msk [vmem:[#allocation4 + $0x48] sm:$0xff] %vm980, %v951
      %991 = vst.msk [vmem:[#allocation4 + $0x50] sm:$0xff] %vm980, %v953
      %992 = vst.msk [vmem:[#allocation4 + $0x58] sm:$0xff] %vm980, %v955
      %993 = vst.msk [vmem:[#allocation4 + $0x60] sm:$0xff] %vm980, %v957
      %994 = vst.msk [vmem:[#allocation4 + $0x68] sm:$0xff] %vm980, %v959
      %995 = vst.msk [vmem:[#allocation4 + $0x70] sm:$0xff] %vm980, %v961
      %996 = vst.msk [vmem:[#allocation4 + $0x78] sm:$0xff] %vm980, %v963
      %v997 = vld [vmem:[%s899 + $0x1] sm:$0xff]
      %v998 = vld [vmem:[%s899 + $0x9] sm:$0xff]
      %v999 = vld [vmem:[%s899 + $0x19] sm:$0xff]
      %v1000 = vld [vmem:[%s899 + $0x21] sm:$0xff]
      %v1001 = vld [vmem:[%s899 + $0x31] sm:$0xff]
      %v1002 = vld [vmem:[%s899 + $0x39] sm:$0xff]
      %v1003 = vld [vmem:[%s899 + $0x49] sm:$0xff]
      %v1004 = vld [vmem:[%s899 + $0x51] sm:$0xff]
      %v1005 = vld [vmem:[%s899 + $0x61] sm:$0xff]
      %v1006 = vld [vmem:[%s899 + $0x69] sm:$0xff]
      %v1007 = vld [vmem:[%s899 + $0x79] sm:$0xff]
      %v1008 = vld [vmem:[%s899 + $0x81] sm:$0xff]
      %v1009 = vld [vmem:[%s899 + $0x91] sm:$0xff]
      %v1010 = vld [vmem:[%s899 + $0x99] sm:$0xff]
      %v1011 = vld [vmem:[%s899 + $0xa9] sm:$0xff]
      %v1012 = vld [vmem:[%s899 + $0xb1] sm:$0xff]
      %1029 = vrot.lane.b32.xlu0 %v997, 28
      %v1030 = vpop.permute.xlu0 %1029
      %1031 = vrot.lane.b32.xlu0 %v998, 28
      %v1032 = vpop.permute.xlu0 %1031
      %1033 = vrot.lane.b32.xlu0 %v999, 28
      %v1034 = vpop.permute.xlu0 %1033
      %1035 = vrot.lane.b32.xlu0 %v1000, 28
      %v1036 = vpop.permute.xlu0 %1035
      %1037 = vrot.lane.b32.xlu0 %v1001, 28
      %v1038 = vpop.permute.xlu0 %1037
      %1039 = vrot.lane.b32.xlu0 %v1002, 28
      %v1040 = vpop.permute.xlu0 %1039
      %1041 = vrot.lane.b32.xlu0 %v1003, 28
      %v1042 = vpop.permute.xlu0 %1041
      %1043 = vrot.lane.b32.xlu0 %v1004, 28
      %v1044 = vpop.permute.xlu0 %1043
      %1045 = vrot.lane.b32.xlu0 %v1005, 28
      %v1046 = vpop.permute.xlu0 %1045
      %1047 = vrot.lane.b32.xlu0 %v1006, 28
      %v1048 = vpop.permute.xlu0 %1047
      %1049 = vrot.lane.b32.xlu0 %v1007, 28
      %v1050 = vpop.permute.xlu0 %1049
      %1051 = vrot.lane.b32.xlu0 %v1008, 28
      %v1052 = vpop.permute.xlu0 %1051
      %1053 = vrot.lane.b32.xlu0 %v1009, 28
      %v1054 = vpop.permute.xlu0 %1053
      %1055 = vrot.lane.b32.xlu0 %v1010, 28
      %v1056 = vpop.permute.xlu0 %1055
      %1057 = vrot.lane.b32.xlu0 %v1011, 28
      %v1058 = vpop.permute.xlu0 %1057
      %1059 = vrot.lane.b32.xlu0 %v1012, 28
      %v1060 = vpop.permute.xlu0 %1059
      %vm1077 = vcmask 261344
      %1078 = vst.msk [vmem:[#allocation4] sm:$0xff] %vm1077, %v1030
      %1079 = vst.msk [vmem:[#allocation4 + $0x8] sm:$0xff] %vm1077, %v1032
      %1080 = vst.msk [vmem:[#allocation4 + $0x10] sm:$0xff] %vm1077, %v1034
      %1081 = vst.msk [vmem:[#allocation4 + $0x18] sm:$0xff] %vm1077, %v1036
      %1082 = vst.msk [vmem:[#allocation4 + $0x20] sm:$0xff] %vm1077, %v1038
      %1083 = vst.msk [vmem:[#allocation4 + $0x28] sm:$0xff] %vm1077, %v1040
      %1084 = vst.msk [vmem:[#allocation4 + $0x30] sm:$0xff] %vm1077, %v1042
      %1085 = vst.msk [vmem:[#allocation4 + $0x38] sm:$0xff] %vm1077, %v1044
      %1086 = vst.msk [vmem:[#allocation4 + $0x40] sm:$0xff] %vm1077, %v1046
      %1087 = vst.msk [vmem:[#allocation4 + $0x48] sm:$0xff] %vm1077, %v1048
      %1088 = vst.msk [vmem:[#allocation4 + $0x50] sm:$0xff] %vm1077, %v1050
      %1089 = vst.msk [vmem:[#allocation4 + $0x58] sm:$0xff] %vm1077, %v1052
      %1090 = vst.msk [vmem:[#allocation4 + $0x60] sm:$0xff] %vm1077, %v1054
      %1091 = vst.msk [vmem:[#allocation4 + $0x68] sm:$0xff] %vm1077, %v1056
      %1092 = vst.msk [vmem:[#allocation4 + $0x70] sm:$0xff] %vm1077, %v1058
      %1093 = vst.msk [vmem:[#allocation4 + $0x78] sm:$0xff] %vm1077, %v1060
      %v1094 = vld [vmem:[%s899 + $0x2] sm:$0xff]
      %v1095 = vld [vmem:[%s899 + $0xa] sm:$0xff]
      %v1096 = vld [vmem:[%s899 + $0x1a] sm:$0xff]
      %v1097 = vld [vmem:[%s899 + $0x22] sm:$0xff]
      %v1098 = vld [vmem:[%s899 + $0x32] sm:$0xff]
      %v1099 = vld [vmem:[%s899 + $0x3a] sm:$0xff]
      %v1100 = vld [vmem:[%s899 + $0x4a] sm:$0xff]
      %v1101 = vld [vmem:[%s899 + $0x52] sm:$0xff]
      %v1102 = vld [vmem:[%s899 + $0x62] sm:$0xff]
      %v1103 = vld [vmem:[%s899 + $0x6a] sm:$0xff]
      %v1104 = vld [vmem:[%s899 + $0x7a] sm:$0xff]
      %v1105 = vld [vmem:[%s899 + $0x82] sm:$0xff]
      %v1106 = vld [vmem:[%s899 + $0x92] sm:$0xff]
      %v1107 = vld [vmem:[%s899 + $0x9a] sm:$0xff]
      %v1108 = vld [vmem:[%s899 + $0xaa] sm:$0xff]
      %v1109 = vld [vmem:[%s899 + $0xb2] sm:$0xff]
      %1126 = vrot.lane.b32.xlu0 %v1094, 32
      %v1127 = vpop.permute.xlu0 %1126
      %1128 = vrot.lane.b32.xlu0 %v1095, 32
      %v1129 = vpop.permute.xlu0 %1128
      %1130 = vrot.lane.b32.xlu0 %v1096, 32
      %v1131 = vpop.permute.xlu0 %1130
      %1132 = vrot.lane.b32.xlu0 %v1097, 32
      %v1133 = vpop.permute.xlu0 %1132
      %1134 = vrot.lane.b32.xlu0 %v1098, 32
      %v1135 = vpop.permute.xlu0 %1134
      %1136 = vrot.lane.b32.xlu0 %v1099, 32
      %v1137 = vpop.permute.xlu0 %1136
      %1138 = vrot.lane.b32.xlu0 %v1100, 32
      %v1139 = vpop.permute.xlu0 %1138
      %1140 = vrot.lane.b32.xlu0 %v1101, 32
      %v1141 = vpop.permute.xlu0 %1140
      %1142 = vrot.lane.b32.xlu0 %v1102, 32
      %v1143 = vpop.permute.xlu0 %1142
      %1144 = vrot.lane.b32.xlu0 %v1103, 32
      %v1145 = vpop.permute.xlu0 %1144
      %1146 = vrot.lane.b32.xlu0 %v1104, 32
      %v1147 = vpop.permute.xlu0 %1146
      %1148 = vrot.lane.b32.xlu0 %v1105, 32
      %v1149 = vpop.permute.xlu0 %1148
      %1150 = vrot.lane.b32.xlu0 %v1106, 32
      %v1151 = vpop.permute.xlu0 %1150
      %1152 = vrot.lane.b32.xlu0 %v1107, 32
      %v1153 = vpop.permute.xlu0 %1152
      %1154 = vrot.lane.b32.xlu0 %v1108, 32
      %v1155 = vpop.permute.xlu0 %1154
      %1156 = vrot.lane.b32.xlu0 %v1109, 32
      %v1157 = vpop.permute.xlu0 %1156
      %vm1174 = vcmask 294144
      %1175 = vst.msk [vmem:[#allocation4] sm:$0xff] %vm1174, %v1127
      %1176 = vst.msk [vmem:[#allocation4 + $0x8] sm:$0xff] %vm1174, %v1129
      %1177 = vst.msk [vmem:[#allocation4 + $0x10] sm:$0xff] %vm1174, %v1131
      %1178 = vst.msk [vmem:[#allocation4 + $0x18] sm:$0xff] %vm1174, %v1133
      %1179 = vst.msk [vmem:[#allocation4 + $0x20] sm:$0xff] %vm1174, %v1135
      %1180 = vst.msk [vmem:[#allocation4 + $0x28] sm:$0xff] %vm1174, %v1137
      %1181 = vst.msk [vmem:[#allocation4 + $0x30] sm:$0xff] %vm1174, %v1139
      %1182 = vst.msk [vmem:[#allocation4 + $0x38] sm:$0xff] %vm1174, %v1141
      %1183 = vst.msk [vmem:[#allocation4 + $0x40] sm:$0xff] %vm1174, %v1143
      %1184 = vst.msk [vmem:[#allocation4 + $0x48] sm:$0xff] %vm1174, %v1145
      %1185 = vst.msk [vmem:[#allocation4 + $0x50] sm:$0xff] %vm1174, %v1147
      %1186 = vst.msk [vmem:[#allocation4 + $0x58] sm:$0xff] %vm1174, %v1149
      %1187 = vst.msk [vmem:[#allocation4 + $0x60] sm:$0xff] %vm1174, %v1151
      %1188 = vst.msk [vmem:[#allocation4 + $0x68] sm:$0xff] %vm1174, %v1153
      %1189 = vst.msk [vmem:[#allocation4 + $0x70] sm:$0xff] %vm1174, %v1155
      %1190 = vst.msk [vmem:[#allocation4 + $0x78] sm:$0xff] %vm1174, %v1157
      %v1191 = vld [vmem:[#allocation4] sm:$0xff]
      %v1192 = vld [vmem:[#allocation4 + $0x8] sm:$0xff]
      %v1193 = vld [vmem:[#allocation4 + $0x10] sm:$0xff]
      %v1194 = vld [vmem:[#allocation4 + $0x18] sm:$0xff]
      %v1195 = vld [vmem:[#allocation4 + $0x20] sm:$0xff]
      %v1196 = vld [vmem:[#allocation4 + $0x28] sm:$0xff]
      %v1197 = vld [vmem:[#allocation4 + $0x30] sm:$0xff]
      %v1198 = vld [vmem:[#allocation4 + $0x38] sm:$0xff]
      %v1199 = vld [vmem:[#allocation4 + $0x40] sm:$0xff]
      %v1200 = vld [vmem:[#allocation4 + $0x48] sm:$0xff]
      %v1201 = vld [vmem:[#allocation4 + $0x50] sm:$0xff]
      %v1202 = vld [vmem:[#allocation4 + $0x58] sm:$0xff]
      %v1203 = vld [vmem:[#allocation4 + $0x60] sm:$0xff]
      %v1204 = vld [vmem:[#allocation4 + $0x68] sm:$0xff]
      %v1205 = vld [vmem:[#allocation4 + $0x70] sm:$0xff]
      %v1206 = vld [vmem:[#allocation4 + $0x78] sm:$0xff]
      %v1207 = vld [vmem:[%s1] sm:$0xff]
      %v1208 = vld [vmem:[%s1 + $0x8] sm:$0xff]
      %v1209 = vld [vmem:[%s1 + $0x10] sm:$0xff]
      %v1210 = vld [vmem:[%s1 + $0x18] sm:$0xff]
      %v1211 = vld [vmem:[%s1 + $0x20] sm:$0xf]
      %v1212 = vld [vmem:[%s2] sm:$0x1]
      %v1214 = vlaneseq
      %v1215 = vshrl.u32 %v1214, 7
      %v1216 = vsub.s32 0, %v1215
      %v1217 = vrot.slane %v1212, %v1216
      %vm1219 = vcmask 293888
      %v1221 = vsel %vm1219, %v1191, 0
      %v1224 = vsel %vm1219, %v1192, 0
      %v1227 = vsel %vm1219, %v1193, 0
      %v1230 = vsel %vm1219, %v1194, 0
      %v1233 = vsel %vm1219, %v1195, 0
      %v1236 = vsel %vm1219, %v1196, 0
      %v1239 = vsel %vm1219, %v1197, 0
      %v1242 = vsel %vm1219, %v1198, 0
      %v1245 = vsel %vm1219, %v1199, 0
      %v1248 = vsel %vm1219, %v1200, 0
      %v1251 = vsel %vm1219, %v1201, 0
      %v1254 = vsel %vm1219, %v1202, 0
      %v1257 = vsel %vm1219, %v1203, 0
      %v1260 = vsel %vm1219, %v1204, 0
      %v1263 = vsel %vm1219, %v1205, 0
      %v1266 = vsel %vm1219, %v1206, 0
      %vm1268 = vcmask 1043456
      %v1270 = vsel %vm1268, %v1211, 0
      %1272 = vmatprep.subr.mxu0 0.0
      %1273 = vmatpush1.msra.mxu0 %v1207
      %1274 = vmatprep.subr.mxu0 0.0
      %1275 = vmatpush1.msra.mxu0 %v1208
      %1276 = vmatprep.subr.mxu0 0.0
      %1277 = vmatpush1.msra.mxu0 %v1209
      %1278 = vmatprep.subr.mxu0 0.0
      %1279 = vmatpush1.msra.mxu0 %v1210
      %1280 = vmatprep.subr.mxu0 0.0
      %1281 = vmatpush1.msra.mxu0 %v1270
      %1282 = vmatprep.subr.mxu0 0.0
      %1283 = vmatpush1.msra.mxu0 0.0
      %1284 = vmatprep.subr.mxu0 0.0
      %1285 = vmatpush1.msra.mxu0 0.0
      %1286 = vmatprep.subr.mxu0 0.0
      %1287 = vmatpush1.msra.mxu0 0.0
      %1288 = vmatprep.subr.mxu0 0.0
      %1289 = vmatpush1.msra.mxu0 0.0
      %1290 = vmatprep.subr.mxu0 0.0
      %1291 = vmatpush1.msra.mxu0 0.0
      %1292 = vmatprep.subr.mxu0 0.0
      %1293 = vmatpush1.msra.mxu0 0.0
      %1294 = vmatprep.subr.mxu0 0.0
      %1295 = vmatpush1.msra.mxu0 0.0
      %1296 = vmatprep.subr.mxu0 0.0
      %1297 = vmatpush1.msra.mxu0 0.0
      %1298 = vmatprep.subr.mxu0 0.0
      %1299 = vmatpush1.msra.mxu0 0.0
      %1300 = vmatprep.subr.mxu0 0.0
      %1301 = vmatpush1.msra.mxu0 0.0
      %1302 = vmatprep.subr.mxu0 0.0
      %1303 = vmatpush1.msra.mxu0 0.0
      %1304 = vmatprep.subr.mxu0 0.0
      %1305 = vmatpush1.msra.mxu0 0.0
      %1306 = vmatprep.subr.mxu0 0.0
      %1307 = vmatpush1.msra.mxu0 0.0
      %1308 = vmatprep.subr.mxu0 0.0
      %1309 = vmatpush1.msra.mxu0 0.0
      %1310 = vmatprep.subr.mxu0 0.0
      %1311 = vmatpush1.msra.mxu0 0.0
      %1312 = vmatprep.subr.mxu0 0.0
      %1313 = vmatpush1.msra.mxu0 0.0
      %1314 = vmatprep.subr.mxu0 0.0
      %1315 = vmatpush1.msra.mxu0 0.0
      %1316 = vmatprep.subr.mxu0 0.0
      %1317 = vmatpush1.msra.mxu0 0.0
      %1318 = vmatprep.subr.mxu0 0.0
      %1319 = vmatpush1.msra.mxu0 0.0
      %1320 = vmatprep.subr.mxu0 0.0
      %1321 = vmatpush1.msra.mxu0 0.0
      %1322 = vmatprep.subr.mxu0 0.0
      %1323 = vmatpush1.msra.mxu0 0.0
      %1324 = vmatprep.subr.mxu0 0.0
      %1325 = vmatpush1.msra.mxu0 0.0
      %1326 = vmatprep.subr.mxu0 0.0
      %1327 = vmatpush1.msra.mxu0 0.0
      %1328 = vmatprep.subr.mxu0 0.0
      %1329 = vmatpush1.msra.mxu0 0.0
      %1330 = vmatprep.subr.mxu0 0.0
      %1331 = vmatpush1.msra.mxu0 0.0
      %1332 = vmatprep.subr.mxu0 0.0
      %1333 = vmatpush1.msra.mxu0 0.0
      %1334 = vmatprep.subr.mxu0 0.0
      %1335 = vmatpush1.msra.mxu0 0.0
      %1336 = vmatprep.mubr.f32.mxu0 0.0
      %1337 = vmatmul.mubr.f32.gmra.mrb[0].mxu0 %v1221
      %v1338 = vpop.f32.mrb[0].mxu0
      %v1339 = vadd.f32 %v1217, %v1338
      %v1340 = vpop.f32.mrb[0].mxu0
      %1341 = vmatprep.mubr.f32.mxu0 0.0
      %1342 = vmatmul.mubr.f32.gmra.mrb[0].mxu0 %v1224
      %v1343 = vpop.f32.mrb[0].mxu0
      %v1344 = vadd.f32 %v1217, %v1343
      %v1345 = vpop.f32.mrb[0].mxu0
      %1346 = vmatprep.mubr.f32.mxu0 0.0
      %1347 = vmatmul.mubr.f32.gmra.mrb[0].mxu0 %v1227
      %v1348 = vpop.f32.mrb[0].mxu0
      %v1349 = vadd.f32 %v1217, %v1348
      %v1350 = vpop.f32.mrb[0].mxu0
      %1351 = vmatprep.mubr.f32.mxu0 0.0
      %1352 = vmatmul.mubr.f32.gmra.mrb[0].mxu0 %v1230
      %v1353 = vpop.f32.mrb[0].mxu0
      %v1354 = vadd.f32 %v1217, %v1353
      %v1355 = vpop.f32.mrb[0].mxu0
      %1356 = vmatprep.mubr.f32.mxu0 0.0
      %1357 = vmatmul.mubr.f32.gmra.mrb[0].mxu0 %v1233
      %v1358 = vpop.f32.mrb[0].mxu0
      %v1359 = vadd.f32 %v1217, %v1358
      %v1360 = vpop.f32.mrb[0].mxu0
      %1361 = vmatprep.mubr.f32.mxu0 0.0
      %1362 = vmatmul.mubr.f32.gmra.mrb[0].mxu0 %v1236
      %v1363 = vpop.f32.mrb[0].mxu0
      %v1364 = vadd.f32 %v1217, %v1363
      %v1365 = vpop.f32.mrb[0].mxu0
      %1366 = vmatprep.mubr.f32.mxu0 0.0
      %1367 = vmatmul.mubr.f32.gmra.mrb[0].mxu0 %v1239
      %v1368 = vpop.f32.mrb[0].mxu0
      %v1369 = vadd.f32 %v1217, %v1368
      %v1370 = vpop.f32.mrb[0].mxu0
      %1371 = vmatprep.mubr.f32.mxu0 0.0
      %1372 = vmatmul.mubr.f32.gmra.mrb[0].mxu0 %v1242
      %v1373 = vpop.f32.mrb[0].mxu0
      %v1374 = vadd.f32 %v1217, %v1373
      %v1375 = vpop.f32.mrb[0].mxu0
      %1376 = vmatprep.mubr.f32.mxu0 0.0
      %1377 = vmatmul.mubr.f32.gmra.mrb[0].mxu0 %v1245
      %v1378 = vpop.f32.mrb[0].mxu0
      %v1379 = vadd.f32 %v1217, %v1378
      %v1380 = vpop.f32.mrb[0].mxu0
      %1381 = vmatprep.mubr.f32.mxu0 0.0
      %1382 = vmatmul.mubr.f32.gmra.mrb[0].mxu0 %v1248
      %v1383 = vpop.f32.mrb[0].mxu0
      %v1384 = vadd.f32 %v1217, %v1383
      %v1385 = vpop.f32.mrb[0].mxu0
      %1386 = vmatprep.mubr.f32.mxu0 0.0
      %1387 = vmatmul.mubr.f32.gmra.mrb[0].mxu0 %v1251
      %v1388 = vpop.f32.mrb[0].mxu0
      %v1389 = vadd.f32 %v1217, %v1388
      %v1390 = vpop.f32.mrb[0].mxu0
      %1391 = vmatprep.mubr.f32.mxu0 0.0
      %1392 = vmatmul.mubr.f32.gmra.mrb[0].mxu0 %v1254
      %v1393 = vpop.f32.mrb[0].mxu0
      %v1394 = vadd.f32 %v1217, %v1393
      %v1395 = vpop.f32.mrb[0].mxu0
      %1396 = vmatprep.mubr.f32.mxu0 0.0
      %1397 = vmatmul.mubr.f32.gmra.mrb[0].mxu0 %v1257
      %v1398 = vpop.f32.mrb[0].mxu0
      %v1399 = vadd.f32 %v1217, %v1398
      %v1400 = vpop.f32.mrb[0].mxu0
      %1401 = vmatprep.mubr.f32.mxu0 0.0
      %1402 = vmatmul.mubr.f32.gmra.mrb[0].mxu0 %v1260
      %v1403 = vpop.f32.mrb[0].mxu0
      %v1404 = vadd.f32 %v1217, %v1403
      %v1405 = vpop.f32.mrb[0].mxu0
      %1406 = vmatprep.mubr.f32.mxu0 0.0
      %1407 = vmatmul.mubr.f32.gmra.mrb[0].mxu0 %v1263
      %v1408 = vpop.f32.mrb[0].mxu0
      %v1409 = vadd.f32 %v1217, %v1408
      %v1410 = vpop.f32.mrb[0].mxu0
      %1411 = vmatprep.mubr.f32.mxu0 0.0
      %1412 = vmatmul.mubr.f32.gmra.mrb[0].mxu0 %v1266
      %v1413 = vpop.f32.mrb[0].mxu0
      %v1414 = vadd.f32 %v1217, %v1413
      %v1415 = vpop.f32.mrb[0].mxu0
      %1416 = vdwg.mxu0
      %v1417 = vmax.f32 %v1339, 0.0
      %v1418 = vmax.f32 %v1344, 0.0
      %v1419 = vmax.f32 %v1349, 0.0
      %v1420 = vmax.f32 %v1354, 0.0
      %v1421 = vmax.f32 %v1359, 0.0
      %v1422 = vmax.f32 %v1364, 0.0
      %v1423 = vmax.f32 %v1369, 0.0
      %v1424 = vmax.f32 %v1374, 0.0
      %v1425 = vmax.f32 %v1379, 0.0
      %v1426 = vmax.f32 %v1384, 0.0
      %v1427 = vmax.f32 %v1389, 0.0
      %v1428 = vmax.f32 %v1394, 0.0
      %v1429 = vmax.f32 %v1399, 0.0
      %v1430 = vmax.f32 %v1404, 0.0
      %v1431 = vmax.f32 %v1409, 0.0
      %v1432 = vmax.f32 %v1414, 0.0
      %s1433 = scalar_lea.vmem [#allocation3], 24
      %1434 = vst.msk [vmem:[%s1433 + $0x1] sm:$0xff] %vm336, %v1417
      %1435 = vst.msk [vmem:[%s1433 + $0x9] sm:$0xff] %vm336, %v1418
      %1436 = vst.msk [vmem:[%s1433 + $0x19] sm:$0xff] %vm336, %v1419
      %1437 = vst.msk [vmem:[%s1433 + $0x21] sm:$0xff] %vm336, %v1420
      %1438 = vst.msk [vmem:[%s1433 + $0x31] sm:$0xff] %vm336, %v1421
      %1439 = vst.msk [vmem:[%s1433 + $0x39] sm:$0xff] %vm336, %v1422
      %1440 = vst.msk [vmem:[%s1433 + $0x49] sm:$0xff] %vm336, %v1423
      %1441 = vst.msk [vmem:[%s1433 + $0x51] sm:$0xff] %vm336, %v1424
      %1442 = vst.msk [vmem:[%s1433 + $0x61] sm:$0xff] %vm336, %v1425
      %1443 = vst.msk [vmem:[%s1433 + $0x69] sm:$0xff] %vm336, %v1426
      %1444 = vst.msk [vmem:[%s1433 + $0x79] sm:$0xff] %vm336, %v1427
      %1445 = vst.msk [vmem:[%s1433 + $0x81] sm:$0xff] %vm336, %v1428
      %1446 = vst.msk [vmem:[%s1433 + $0x91] sm:$0xff] %vm336, %v1429
      %1447 = vst.msk [vmem:[%s1433 + $0x99] sm:$0xff] %vm336, %v1430
      %1448 = vst.msk [vmem:[%s1433 + $0xa9] sm:$0xff] %vm336, %v1431
      %1449 = vst.msk [vmem:[%s1433 + $0xb1] sm:$0xff] %vm336, %v1432
      %s1450 = scalar_lea.vmem [#allocation2], 192
      %v1451 = vld [vmem:[%s1450] sm:$0xff]
      %v1452 = vld [vmem:[%s1450 + $0x8] sm:$0xff]
      %v1453 = vld [vmem:[%s1450 + $0x18] sm:$0xff]
      %v1454 = vld [vmem:[%s1450 + $0x20] sm:$0xff]
      %v1455 = vld [vmem:[%s1450 + $0x30] sm:$0xff]
      %v1456 = vld [vmem:[%s1450 + $0x38] sm:$0xff]
      %v1457 = vld [vmem:[%s1450 + $0x48] sm:$0xff]
      %v1458 = vld [vmem:[%s1450 + $0x50] sm:$0xff]
      %v1459 = vld [vmem:[%s1450 + $0x60] sm:$0xff]
      %v1460 = vld [vmem:[%s1450 + $0x68] sm:$0xff]
      %v1461 = vld [vmem:[%s1450 + $0x78] sm:$0xff]
      %v1462 = vld [vmem:[%s1450 + $0x80] sm:$0xff]
      %v1463 = vld [vmem:[%s1450 + $0x90] sm:$0xff]
      %v1464 = vld [vmem:[%s1450 + $0x98] sm:$0xff]
      %v1465 = vld [vmem:[%s1450 + $0xa8] sm:$0xff]
      %v1466 = vld [vmem:[%s1450 + $0xb0] sm:$0xff]
      %1467 = vst.msk [vmem:[#allocation4] sm:$0xff] %vm225, %v1451
      %1468 = vst.msk [vmem:[#allocation4 + $0x8] sm:$0xff] %vm225, %v1452
      %1469 = vst.msk [vmem:[#allocation4 + $0x10] sm:$0xff] %vm225, %v1453
      %1470 = vst.msk [vmem:[#allocation4 + $0x18] sm:$0xff] %vm225, %v1454
      %1471 = vst.msk [vmem:[#allocation4 + $0x20] sm:$0xff] %vm225, %v1455
      %1472 = vst.msk [vmem:[#allocation4 + $0x28] sm:$0xff] %vm225, %v1456
      %1473 = vst.msk [vmem:[#allocation4 + $0x30] sm:$0xff] %vm225, %v1457
      %1474 = vst.msk [vmem:[#allocation4 + $0x38] sm:$0xff] %vm225, %v1458
      %1475 = vst.msk [vmem:[#allocation4 + $0x40] sm:$0xff] %vm225, %v1459
      %1476 = vst.msk [vmem:[#allocation4 + $0x48] sm:$0xff] %vm225, %v1460
      %1477 = vst.msk [vmem:[#allocation4 + $0x50] sm:$0xff] %vm225, %v1461
      %1478 = vst.msk [vmem:[#allocation4 + $0x58] sm:$0xff] %vm225, %v1462
      %1479 = vst.msk [vmem:[#allocation4 + $0x60] sm:$0xff] %vm225, %v1463
      %1480 = vst.msk [vmem:[#allocation4 + $0x68] sm:$0xff] %vm225, %v1464
      %1481 = vst.msk [vmem:[#allocation4 + $0x70] sm:$0xff] %vm225, %v1465
      %1482 = vst.msk [vmem:[#allocation4 + $0x78] sm:$0xff] %vm225, %v1466
      %v1483 = vld [vmem:[%s1450 + $0x1] sm:$0xff]
      %v1484 = vld [vmem:[%s1450 + $0x9] sm:$0xff]
      %v1485 = vld [vmem:[%s1450 + $0x19] sm:$0xff]
      %v1486 = vld [vmem:[%s1450 + $0x21] sm:$0xff]
      %v1487 = vld [vmem:[%s1450 + $0x31] sm:$0xff]
      %v1488 = vld [vmem:[%s1450 + $0x39] sm:$0xff]
      %v1489 = vld [vmem:[%s1450 + $0x49] sm:$0xff]
      %v1490 = vld [vmem:[%s1450 + $0x51] sm:$0xff]
      %v1491 = vld [vmem:[%s1450 + $0x61] sm:$0xff]
      %v1492 = vld [vmem:[%s1450 + $0x69] sm:$0xff]
      %v1493 = vld [vmem:[%s1450 + $0x79] sm:$0xff]
      %v1494 = vld [vmem:[%s1450 + $0x81] sm:$0xff]
      %v1495 = vld [vmem:[%s1450 + $0x91] sm:$0xff]
      %v1496 = vld [vmem:[%s1450 + $0x99] sm:$0xff]
      %v1497 = vld [vmem:[%s1450 + $0xa9] sm:$0xff]
      %v1498 = vld [vmem:[%s1450 + $0xb1] sm:$0xff]
      %1515 = vrot.lane.b32.xlu0 %v1483, 4
      %v1516 = vpop.permute.xlu0 %1515
      %1517 = vrot.lane.b32.xlu0 %v1484, 4
      %v1518 = vpop.permute.xlu0 %1517
      %1519 = vrot.lane.b32.xlu0 %v1485, 4
      %v1520 = vpop.permute.xlu0 %1519
      %1521 = vrot.lane.b32.xlu0 %v1486, 4
      %v1522 = vpop.permute.xlu0 %1521
      %1523 = vrot.lane.b32.xlu0 %v1487, 4
      %v1524 = vpop.permute.xlu0 %1523
      %1525 = vrot.lane.b32.xlu0 %v1488, 4
      %v1526 = vpop.permute.xlu0 %1525
      %1527 = vrot.lane.b32.xlu0 %v1489, 4
      %v1528 = vpop.permute.xlu0 %1527
      %1529 = vrot.lane.b32.xlu0 %v1490, 4
      %v1530 = vpop.permute.xlu0 %1529
      %1531 = vrot.lane.b32.xlu0 %v1491, 4
      %v1532 = vpop.permute.xlu0 %1531
      %1533 = vrot.lane.b32.xlu0 %v1492, 4
      %v1534 = vpop.permute.xlu0 %1533
      %1535 = vrot.lane.b32.xlu0 %v1493, 4
      %v1536 = vpop.permute.xlu0 %1535
      %1537 = vrot.lane.b32.xlu0 %v1494, 4
      %v1538 = vpop.permute.xlu0 %1537
      %1539 = vrot.lane.b32.xlu0 %v1495, 4
      %v1540 = vpop.permute.xlu0 %1539
      %1541 = vrot.lane.b32.xlu0 %v1496, 4
      %v1542 = vpop.permute.xlu0 %1541
      %1543 = vrot.lane.b32.xlu0 %v1497, 4
      %v1544 = vpop.permute.xlu0 %1543
      %1545 = vrot.lane.b32.xlu0 %v1498, 4
      %v1546 = vpop.permute.xlu0 %1545
      %1563 = vst.msk [vmem:[#allocation4] sm:$0xff] %vm494, %v1516
      %1564 = vst.msk [vmem:[#allocation4 + $0x8] sm:$0xff] %vm494, %v1518
      %1565 = vst.msk [vmem:[#allocation4 + $0x10] sm:$0xff] %vm494, %v1520
      %1566 = vst.msk [vmem:[#allocation4 + $0x18] sm:$0xff] %vm494, %v1522
      %1567 = vst.msk [vmem:[#allocation4 + $0x20] sm:$0xff] %vm494, %v1524
      %1568 = vst.msk [vmem:[#allocation4 + $0x28] sm:$0xff] %vm494, %v1526
      %1569 = vst.msk [vmem:[#allocation4 + $0x30] sm:$0xff] %vm494, %v1528
      %1570 = vst.msk [vmem:[#allocation4 + $0x38] sm:$0xff] %vm494, %v1530
      %1571 = vst.msk [vmem:[#allocation4 + $0x40] sm:$0xff] %vm494, %v1532
      %1572 = vst.msk [vmem:[#allocation4 + $0x48] sm:$0xff] %vm494, %v1534
      %1573 = vst.msk [vmem:[#allocation4 + $0x50] sm:$0xff] %vm494, %v1536
      %1574 = vst.msk [vmem:[#allocation4 + $0x58] sm:$0xff] %vm494, %v1538
      %1575 = vst.msk [vmem:[#allocation4 + $0x60] sm:$0xff] %vm494, %v1540
      %1576 = vst.msk [vmem:[#allocation4 + $0x68] sm:$0xff] %vm494, %v1542
      %1577 = vst.msk [vmem:[#allocation4 + $0x70] sm:$0xff] %vm494, %v1544
      %1578 = vst.msk [vmem:[#allocation4 + $0x78] sm:$0xff] %vm494, %v1546
      %v1579 = vld [vmem:[%s1450 + $0x2] sm:$0xff]
      %v1580 = vld [vmem:[%s1450 + $0xa] sm:$0xff]
      %v1581 = vld [vmem:[%s1450 + $0x1a] sm:$0xff]
      %v1582 = vld [vmem:[%s1450 + $0x22] sm:$0xff]
      %v1583 = vld [vmem:[%s1450 + $0x32] sm:$0xff]
      %v1584 = vld [vmem:[%s1450 + $0x3a] sm:$0xff]
      %v1585 = vld [vmem:[%s1450 + $0x4a] sm:$0xff]
      %v1586 = vld [vmem:[%s1450 + $0x52] sm:$0xff]
      %v1587 = vld [vmem:[%s1450 + $0x62] sm:$0xff]
      %v1588 = vld [vmem:[%s1450 + $0x6a] sm:$0xff]
      %v1589 = vld [vmem:[%s1450 + $0x7a] sm:$0xff]
      %v1590 = vld [vmem:[%s1450 + $0x82] sm:$0xff]
      %v1591 = vld [vmem:[%s1450 + $0x92] sm:$0xff]
      %v1592 = vld [vmem:[%s1450 + $0x9a] sm:$0xff]
      %v1593 = vld [vmem:[%s1450 + $0xaa] sm:$0xff]
      %v1594 = vld [vmem:[%s1450 + $0xb2] sm:$0xff]
      %1611 = vrot.lane.b32.xlu0 %v1579, 8
      %v1612 = vpop.permute.xlu0 %1611
      %1613 = vrot.lane.b32.xlu0 %v1580, 8
      %v1614 = vpop.permute.xlu0 %1613
      %1615 = vrot.lane.b32.xlu0 %v1581, 8
      %v1616 = vpop.permute.xlu0 %1615
      %1617 = vrot.lane.b32.xlu0 %v1582, 8
      %v1618 = vpop.permute.xlu0 %1617
      %1619 = vrot.lane.b32.xlu0 %v1583, 8
      %v1620 = vpop.permute.xlu0 %1619
      %1621 = vrot.lane.b32.xlu0 %v1584, 8
      %v1622 = vpop.permute.xlu0 %1621
      %1623 = vrot.lane.b32.xlu0 %v1585, 8
      %v1624 = vpop.permute.xlu0 %1623
      %1625 = vrot.lane.b32.xlu0 %v1586, 8
      %v1626 = vpop.permute.xlu0 %1625
      %1627 = vrot.lane.b32.xlu0 %v1587, 8
      %v1628 = vpop.permute.xlu0 %1627
      %1629 = vrot.lane.b32.xlu0 %v1588, 8
      %v1630 = vpop.permute.xlu0 %1629
      %1631 = vrot.lane.b32.xlu0 %v1589, 8
      %v1632 = vpop.permute.xlu0 %1631
      %1633 = vrot.lane.b32.xlu0 %v1590, 8
      %v1634 = vpop.permute.xlu0 %1633
      %1635 = vrot.lane.b32.xlu0 %v1591, 8
      %v1636 = vpop.permute.xlu0 %1635
      %1637 = vrot.lane.b32.xlu0 %v1592, 8
      %v1638 = vpop.permute.xlu0 %1637
      %1639 = vrot.lane.b32.xlu0 %v1593, 8
      %v1640 = vpop.permute.xlu0 %1639
      %1641 = vrot.lane.b32.xlu0 %v1594, 8
      %v1642 = vpop.permute.xlu0 %1641
      %1659 = vst.msk [vmem:[#allocation4] sm:$0xff] %vm591, %v1612
      %1660 = vst.msk [vmem:[#allocation4 + $0x8] sm:$0xff] %vm591, %v1614
      %1661 = vst.msk [vmem:[#allocation4 + $0x10] sm:$0xff] %vm591, %v1616
      %1662 = vst.msk [vmem:[#allocation4 + $0x18] sm:$0xff] %vm591, %v1618
      %1663 = vst.msk [vmem:[#allocation4 + $0x20] sm:$0xff] %vm591, %v1620
      %1664 = vst.msk [vmem:[#allocation4 + $0x28] sm:$0xff] %vm591, %v1622
      %1665 = vst.msk [vmem:[#allocation4 + $0x30] sm:$0xff] %vm591, %v1624
      %1666 = vst.msk [vmem:[#allocation4 + $0x38] sm:$0xff] %vm591, %v1626
      %1667 = vst.msk [vmem:[#allocation4 + $0x40] sm:$0xff] %vm591, %v1628
      %1668 = vst.msk [vmem:[#allocation4 + $0x48] sm:$0xff] %vm591, %v1630
      %1669 = vst.msk [vmem:[#allocation4 + $0x50] sm:$0xff] %vm591, %v1632
      %1670 = vst.msk [vmem:[#allocation4 + $0x58] sm:$0xff] %vm591, %v1634
      %1671 = vst.msk [vmem:[#allocation4 + $0x60] sm:$0xff] %vm591, %v1636
      %1672 = vst.msk [vmem:[#allocation4 + $0x68] sm:$0xff] %vm591, %v1638
      %1673 = vst.msk [vmem:[#allocation4 + $0x70] sm:$0xff] %vm591, %v1640
      %1674 = vst.msk [vmem:[#allocation4 + $0x78] sm:$0xff] %vm591, %v1642
      %s1675 = scalar_lea.vmem [#allocation2], 216
      %v1676 = vld [vmem:[%s1675] sm:$0xff]
      %v1677 = vld [vmem:[%s1675 + $0x8] sm:$0xff]
      %v1678 = vld [vmem:[%s1675 + $0x18] sm:$0xff]
      %v1679 = vld [vmem:[%s1675 + $0x20] sm:$0xff]
      %v1680 = vld [vmem:[%s1675 + $0x30] sm:$0xff]
      %v1681 = vld [vmem:[%s1675 + $0x38] sm:$0xff]
      %v1682 = vld [vmem:[%s1675 + $0x48] sm:$0xff]
      %v1683 = vld [vmem:[%s1675 + $0x50] sm:$0xff]
      %v1684 = vld [vmem:[%s1675 + $0x60] sm:$0xff]
      %v1685 = vld [vmem:[%s1675 + $0x68] sm:$0xff]
      %v1686 = vld [vmem:[%s1675 + $0x78] sm:$0xff]
      %v1687 = vld [vmem:[%s1675 + $0x80] sm:$0xff]
      %v1688 = vld [vmem:[%s1675 + $0x90] sm:$0xff]
      %v1689 = vld [vmem:[%s1675 + $0x98] sm:$0xff]
      %v1690 = vld [vmem:[%s1675 + $0xa8] sm:$0xff]
      %v1691 = vld [vmem:[%s1675 + $0xb0] sm:$0xff]
      %1708 = vrot.lane.b32.xlu0 %v1676, 12
      %v1709 = vpop.permute.xlu0 %1708
      %1710 = vrot.lane.b32.xlu0 %v1677, 12
      %v1711 = vpop.permute.xlu0 %1710
      %1712 = vrot.lane.b32.xlu0 %v1678, 12
      %v1713 = vpop.permute.xlu0 %1712
      %1714 = vrot.lane.b32.xlu0 %v1679, 12
      %v1715 = vpop.permute.xlu0 %1714
      %1716 = vrot.lane.b32.xlu0 %v1680, 12
      %v1717 = vpop.permute.xlu0 %1716
      %1718 = vrot.lane.b32.xlu0 %v1681, 12
      %v1719 = vpop.permute.xlu0 %1718
      %1720 = vrot.lane.b32.xlu0 %v1682, 12
      %v1721 = vpop.permute.xlu0 %1720
      %1722 = vrot.lane.b32.xlu0 %v1683, 12
      %v1723 = vpop.permute.xlu0 %1722
      %1724 = vrot.lane.b32.xlu0 %v1684, 12
      %v1725 = vpop.permute.xlu0 %1724
      %1726 = vrot.lane.b32.xlu0 %v1685, 12
      %v1727 = vpop.permute.xlu0 %1726
      %1728 = vrot.lane.b32.xlu0 %v1686, 12
      %v1729 = vpop.permute.xlu0 %1728
      %1730 = vrot.lane.b32.xlu0 %v1687, 12
      %v1731 = vpop.permute.xlu0 %1730
      %1732 = vrot.lane.b32.xlu0 %v1688, 12
      %v1733 = vpop.permute.xlu0 %1732
      %1734 = vrot.lane.b32.xlu0 %v1689, 12
      %v1735 = vpop.permute.xlu0 %1734
      %1736 = vrot.lane.b32.xlu0 %v1690, 12
      %v1737 = vpop.permute.xlu0 %1736
      %1738 = vrot.lane.b32.xlu0 %v1691, 12
      %v1739 = vpop.permute.xlu0 %1738
      %1756 = vst.msk [vmem:[#allocation4] sm:$0xff] %vm688, %v1709
      %1757 = vst.msk [vmem:[#allocation4 + $0x8] sm:$0xff] %vm688, %v1711
      %1758 = vst.msk [vmem:[#allocation4 + $0x10] sm:$0xff] %vm688, %v1713
      %1759 = vst.msk [vmem:[#allocation4 + $0x18] sm:$0xff] %vm688, %v1715
      %1760 = vst.msk [vmem:[#allocation4 + $0x20] sm:$0xff] %vm688, %v1717
      %1761 = vst.msk [vmem:[#allocation4 + $0x28] sm:$0xff] %vm688, %v1719
      %1762 = vst.msk [vmem:[#allocation4 + $0x30] sm:$0xff] %vm688, %v1721
      %1763 = vst.msk [vmem:[#allocation4 + $0x38] sm:$0xff] %vm688, %v1723
      %1764 = vst.msk [vmem:[#allocation4 + $0x40] sm:$0xff] %vm688, %v1725
      %1765 = vst.msk [vmem:[#allocation4 + $0x48] sm:$0xff] %vm688, %v1727
      %1766 = vst.msk [vmem:[#allocation4 + $0x50] sm:$0xff] %vm688, %v1729
      %1767 = vst.msk [vmem:[#allocation4 + $0x58] sm:$0xff] %vm688, %v1731
      %1768 = vst.msk [vmem:[#allocation4 + $0x60] sm:$0xff] %vm688, %v1733
      %1769 = vst.msk [vmem:[#allocation4 + $0x68] sm:$0xff] %vm688, %v1735
      %1770 = vst.msk [vmem:[#allocation4 + $0x70] sm:$0xff] %vm688, %v1737
      %1771 = vst.msk [vmem:[#allocation4 + $0x78] sm:$0xff] %vm688, %v1739
      %v1772 = vld [vmem:[%s1675 + $0x1] sm:$0xff]
      %v1773 = vld [vmem:[%s1675 + $0x9] sm:$0xff]
      %v1774 = vld [vmem:[%s1675 + $0x19] sm:$0xff]
      %v1775 = vld [vmem:[%s1675 + $0x21] sm:$0xff]
      %v1776 = vld [vmem:[%s1675 + $0x31] sm:$0xff]
      %v1777 = vld [vmem:[%s1675 + $0x39] sm:$0xff]
      %v1778 = vld [vmem:[%s1675 + $0x49] sm:$0xff]
      %v1779 = vld [vmem:[%s1675 + $0x51] sm:$0xff]
      %v1780 = vld [vmem:[%s1675 + $0x61] sm:$0xff]
      %v1781 = vld [vmem:[%s1675 + $0x69] sm:$0xff]
      %v1782 = vld [vmem:[%s1675 + $0x79] sm:$0xff]
      %v1783 = vld [vmem:[%s1675 + $0x81] sm:$0xff]
      %v1784 = vld [vmem:[%s1675 + $0x91] sm:$0xff]
      %v1785 = vld [vmem:[%s1675 + $0x99] sm:$0xff]
      %v1786 = vld [vmem:[%s1675 + $0xa9] sm:$0xff]
      %v1787 = vld [vmem:[%s1675 + $0xb1] sm:$0xff]
      %1804 = vrot.lane.b32.xlu0 %v1772, 16
      %v1805 = vpop.permute.xlu0 %1804
      %1806 = vrot.lane.b32.xlu0 %v1773, 16
      %v1807 = vpop.permute.xlu0 %1806
      %1808 = vrot.lane.b32.xlu0 %v1774, 16
      %v1809 = vpop.permute.xlu0 %1808
      %1810 = vrot.lane.b32.xlu0 %v1775, 16
      %v1811 = vpop.permute.xlu0 %1810
      %1812 = vrot.lane.b32.xlu0 %v1776, 16
      %v1813 = vpop.permute.xlu0 %1812
      %1814 = vrot.lane.b32.xlu0 %v1777, 16
      %v1815 = vpop.permute.xlu0 %1814
      %1816 = vrot.lane.b32.xlu0 %v1778, 16
      %v1817 = vpop.permute.xlu0 %1816
      %1818 = vrot.lane.b32.xlu0 %v1779, 16
      %v1819 = vpop.permute.xlu0 %1818
      %1820 = vrot.lane.b32.xlu0 %v1780, 16
      %v1821 = vpop.permute.xlu0 %1820
      %1822 = vrot.lane.b32.xlu0 %v1781, 16
      %v1823 = vpop.permute.xlu0 %1822
      %1824 = vrot.lane.b32.xlu0 %v1782, 16
      %v1825 = vpop.permute.xlu0 %1824
      %1826 = vrot.lane.b32.xlu0 %v1783, 16
      %v1827 = vpop.permute.xlu0 %1826
      %1828 = vrot.lane.b32.xlu0 %v1784, 16
      %v1829 = vpop.permute.xlu0 %1828
      %1830 = vrot.lane.b32.xlu0 %v1785, 16
      %v1831 = vpop.permute.xlu0 %1830
      %1832 = vrot.lane.b32.xlu0 %v1786, 16
      %v1833 = vpop.permute.xlu0 %1832
      %1834 = vrot.lane.b32.xlu0 %v1787, 16
      %v1835 = vpop.permute.xlu0 %1834
      %1852 = vst.msk [vmem:[#allocation4] sm:$0xff] %vm785, %v1805
      %1853 = vst.msk [vmem:[#allocation4 + $0x8] sm:$0xff] %vm785, %v1807
      %1854 = vst.msk [vmem:[#allocation4 + $0x10] sm:$0xff] %vm785, %v1809
      %1855 = vst.msk [vmem:[#allocation4 + $0x18] sm:$0xff] %vm785, %v1811
      %1856 = vst.msk [vmem:[#allocation4 + $0x20] sm:$0xff] %vm785, %v1813
      %1857 = vst.msk [vmem:[#allocation4 + $0x28] sm:$0xff] %vm785, %v1815
      %1858 = vst.msk [vmem:[#allocation4 + $0x30] sm:$0xff] %vm785, %v1817
      %1859 = vst.msk [vmem:[#allocation4 + $0x38] sm:$0xff] %vm785, %v1819
      %1860 = vst.msk [vmem:[#allocation4 + $0x40] sm:$0xff] %vm785, %v1821
      %1861 = vst.msk [vmem:[#allocation4 + $0x48] sm:$0xff] %vm785, %v1823
      %1862 = vst.msk [vmem:[#allocation4 + $0x50] sm:$0xff] %vm785, %v1825
      %1863 = vst.msk [vmem:[#allocation4 + $0x58] sm:$0xff] %vm785, %v1827
      %1864 = vst.msk [vmem:[#allocation4 + $0x60] sm:$0xff] %vm785, %v1829
      %1865 = vst.msk [vmem:[#allocation4 + $0x68] sm:$0xff] %vm785, %v1831
      %1866 = vst.msk [vmem:[#allocation4 + $0x70] sm:$0xff] %vm785, %v1833
      %1867 = vst.msk [vmem:[#allocation4 + $0x78] sm:$0xff] %vm785, %v1835
      %v1868 = vld [vmem:[%s1675 + $0x2] sm:$0xff]
      %v1869 = vld [vmem:[%s1675 + $0xa] sm:$0xff]
      %v1870 = vld [vmem:[%s1675 + $0x1a] sm:$0xff]
      %v1871 = vld [vmem:[%s1675 + $0x22] sm:$0xff]
      %v1872 = vld [vmem:[%s1675 + $0x32] sm:$0xff]
      %v1873 = vld [vmem:[%s1675 + $0x3a] sm:$0xff]
      %v1874 = vld [vmem:[%s1675 + $0x4a] sm:$0xff]
      %v1875 = vld [vmem:[%s1675 + $0x52] sm:$0xff]
      %v1876 = vld [vmem:[%s1675 + $0x62] sm:$0xff]
      %v1877 = vld [vmem:[%s1675 + $0x6a] sm:$0xff]
      %v1878 = vld [vmem:[%s1675 + $0x7a] sm:$0xff]
      %v1879 = vld [vmem:[%s1675 + $0x82] sm:$0xff]
      %v1880 = vld [vmem:[%s1675 + $0x92] sm:$0xff]
      %v1881 = vld [vmem:[%s1675 + $0x9a] sm:$0xff]
      %v1882 = vld [vmem:[%s1675 + $0xaa] sm:$0xff]
      %v1883 = vld [vmem:[%s1675 + $0xb2] sm:$0xff]
      %1900 = vrot.lane.b32.xlu0 %v1868, 20
      %v1901 = vpop.permute.xlu0 %1900
      %1902 = vrot.lane.b32.xlu0 %v1869, 20
      %v1903 = vpop.permute.xlu0 %1902
      %1904 = vrot.lane.b32.xlu0 %v1870, 20
      %v1905 = vpop.permute.xlu0 %1904
      %1906 = vrot.lane.b32.xlu0 %v1871, 20
      %v1907 = vpop.permute.xlu0 %1906
      %1908 = vrot.lane.b32.xlu0 %v1872, 20
      %v1909 = vpop.permute.xlu0 %1908
      %1910 = vrot.lane.b32.xlu0 %v1873, 20
      %v1911 = vpop.permute.xlu0 %1910
      %1912 = vrot.lane.b32.xlu0 %v1874, 20
      %v1913 = vpop.permute.xlu0 %1912
      %1914 = vrot.lane.b32.xlu0 %v1875, 20
      %v1915 = vpop.permute.xlu0 %1914
      %1916 = vrot.lane.b32.xlu0 %v1876, 20
      %v1917 = vpop.permute.xlu0 %1916
      %1918 = vrot.lane.b32.xlu0 %v1877, 20
      %v1919 = vpop.permute.xlu0 %1918
      %1920 = vrot.lane.b32.xlu0 %v1878, 20
      %v1921 = vpop.permute.xlu0 %1920
      %1922 = vrot.lane.b32.xlu0 %v1879, 20
      %v1923 = vpop.permute.xlu0 %1922
      %1924 = vrot.lane.b32.xlu0 %v1880, 20
      %v1925 = vpop.permute.xlu0 %1924
      %1926 = vrot.lane.b32.xlu0 %v1881, 20
      %v1927 = vpop.permute.xlu0 %1926
      %1928 = vrot.lane.b32.xlu0 %v1882, 20
      %v1929 = vpop.permute.xlu0 %1928
      %1930 = vrot.lane.b32.xlu0 %v1883, 20
      %v1931 = vpop.permute.xlu0 %1930
      %1948 = vst.msk [vmem:[#allocation4] sm:$0xff] %vm882, %v1901
      %1949 = vst.msk [vmem:[#allocation4 + $0x8] sm:$0xff] %vm882, %v1903
      %1950 = vst.msk [vmem:[#allocation4 + $0x10] sm:$0xff] %vm882, %v1905
      %1951 = vst.msk [vmem:[#allocation4 + $0x18] sm:$0xff] %vm882, %v1907
      %1952 = vst.msk [vmem:[#allocation4 + $0x20] sm:$0xff] %vm882, %v1909
      %1953 = vst.msk [vmem:[#allocation4 + $0x28] sm:$0xff] %vm882, %v1911
      %1954 = vst.msk [vmem:[#allocation4 + $0x30] sm:$0xff] %vm882, %v1913
      %1955 = vst.msk [vmem:[#allocation4 + $0x38] sm:$0xff] %vm882, %v1915
      %1956 = vst.msk [vmem:[#allocation4 + $0x40] sm:$0xff] %vm882, %v1917
      %1957 = vst.msk [vmem:[#allocation4 + $0x48] sm:$0xff] %vm882, %v1919
      %1958 = vst.msk [vmem:[#allocation4 + $0x50] sm:$0xff] %vm882, %v1921
      %1959 = vst.msk [vmem:[#allocation4 + $0x58] sm:$0xff] %vm882, %v1923
      %1960 = vst.msk [vmem:[#allocation4 + $0x60] sm:$0xff] %vm882, %v1925
      %1961 = vst.msk [vmem:[#allocation4 + $0x68] sm:$0xff] %vm882, %v1927
      %1962 = vst.msk [vmem:[#allocation4 + $0x70] sm:$0xff] %vm882, %v1929
      %1963 = vst.msk [vmem:[#allocation4 + $0x78] sm:$0xff] %vm882, %v1931
      %s1964 = scalar_lea.vmem [#allocation2], 240
      %v1965 = vld [vmem:[%s1964] sm:$0xff]
      %v1966 = vld [vmem:[%s1964 + $0x8] sm:$0xff]
      %v1967 = vld [vmem:[%s1964 + $0x18] sm:$0xff]
      %v1968 = vld [vmem:[%s1964 + $0x20] sm:$0xff]
      %v1969 = vld [vmem:[%s1964 + $0x30] sm:$0xff]
      %v1970 = vld [vmem:[%s1964 + $0x38] sm:$0xff]
      %v1971 = vld [vmem:[%s1964 + $0x48] sm:$0xff]
      %v1972 = vld [vmem:[%s1964 + $0x50] sm:$0xff]
      %v1973 = vld [vmem:[%s1964 + $0x60] sm:$0xff]
      %v1974 = vld [vmem:[%s1964 + $0x68] sm:$0xff]
      %v1975 = vld [vmem:[%s1964 + $0x78] sm:$0xff]
      %v1976 = vld [vmem:[%s1964 + $0x80] sm:$0xff]
      %v1977 = vld [vmem:[%s1964 + $0x90] sm:$0xff]
      %v1978 = vld [vmem:[%s1964 + $0x98] sm:$0xff]
      %v1979 = vld [vmem:[%s1964 + $0xa8] sm:$0xff]
      %v1980 = vld [vmem:[%s1964 + $0xb0] sm:$0xff]
      %1997 = vrot.lane.b32.xlu0 %v1965, 24
      %v1998 = vpop.permute.xlu0 %1997
      %1999 = vrot.lane.b32.xlu0 %v1966, 24
      %v2000 = vpop.permute.xlu0 %1999
      %2001 = vrot.lane.b32.xlu0 %v1967, 24
      %v2002 = vpop.permute.xlu0 %2001
      %2003 = vrot.lane.b32.xlu0 %v1968, 24
      %v2004 = vpop.permute.xlu0 %2003
      %2005 = vrot.lane.b32.xlu0 %v1969, 24
      %v2006 = vpop.permute.xlu0 %2005
      %2007 = vrot.lane.b32.xlu0 %v1970, 24
      %v2008 = vpop.permute.xlu0 %2007
      %2009 = vrot.lane.b32.xlu0 %v1971, 24
      %v2010 = vpop.permute.xlu0 %2009
      %2011 = vrot.lane.b32.xlu0 %v1972, 24
      %v2012 = vpop.permute.xlu0 %2011
      %2013 = vrot.lane.b32.xlu0 %v1973, 24
      %v2014 = vpop.permute.xlu0 %2013
      %2015 = vrot.lane.b32.xlu0 %v1974, 24
      %v2016 = vpop.permute.xlu0 %2015
      %2017 = vrot.lane.b32.xlu0 %v1975, 24
      %v2018 = vpop.permute.xlu0 %2017
      %2019 = vrot.lane.b32.xlu0 %v1976, 24
      %v2020 = vpop.permute.xlu0 %2019
      %2021 = vrot.lane.b32.xlu0 %v1977, 24
      %v2022 = vpop.permute.xlu0 %2021
      %2023 = vrot.lane.b32.xlu0 %v1978, 24
      %v2024 = vpop.permute.xlu0 %2023
      %2025 = vrot.lane.b32.xlu0 %v1979, 24
      %v2026 = vpop.permute.xlu0 %2025
      %2027 = vrot.lane.b32.xlu0 %v1980, 24
      %v2028 = vpop.permute.xlu0 %2027
      %2045 = vst.msk [vmem:[#allocation4] sm:$0xff] %vm980, %v1998
      %2046 = vst.msk [vmem:[#allocation4 + $0x8] sm:$0xff] %vm980, %v2000
      %2047 = vst.msk [vmem:[#allocation4 + $0x10] sm:$0xff] %vm980, %v2002
      %2048 = vst.msk [vmem:[#allocation4 + $0x18] sm:$0xff] %vm980, %v2004
      %2049 = vst.msk [vmem:[#allocation4 + $0x20] sm:$0xff] %vm980, %v2006
      %2050 = vst.msk [vmem:[#allocation4 + $0x28] sm:$0xff] %vm980, %v2008
      %2051 = vst.msk [vmem:[#allocation4 + $0x30] sm:$0xff] %vm980, %v2010
      %2052 = vst.msk [vmem:[#allocation4 + $0x38] sm:$0xff] %vm980, %v2012
      %2053 = vst.msk [vmem:[#allocation4 + $0x40] sm:$0xff] %vm980, %v2014
      %2054 = vst.msk [vmem:[#allocation4 + $0x48] sm:$0xff] %vm980, %v2016
      %2055 = vst.msk [vmem:[#allocation4 + $0x50] sm:$0xff] %vm980, %v2018
      %2056 = vst.msk [vmem:[#allocation4 + $0x58] sm:$0xff] %vm980, %v2020
      %2057 = vst.msk [vmem:[#allocation4 + $0x60] sm:$0xff] %vm980, %v2022
      %2058 = vst.msk [vmem:[#allocation4 + $0x68] sm:$0xff] %vm980, %v2024
      %2059 = vst.msk [vmem:[#allocation4 + $0x70] sm:$0xff] %vm980, %v2026
      %2060 = vst.msk [vmem:[#allocation4 + $0x78] sm:$0xff] %vm980, %v2028
      %v2061 = vld [vmem:[%s1964 + $0x1] sm:$0xff]
      %v2062 = vld [vmem:[%s1964 + $0x9] sm:$0xff]
      %v2063 = vld [vmem:[%s1964 + $0x19] sm:$0xff]
      %v2064 = vld [vmem:[%s1964 + $0x21] sm:$0xff]
      %v2065 = vld [vmem:[%s1964 + $0x31] sm:$0xff]
      %v2066 = vld [vmem:[%s1964 + $0x39] sm:$0xff]
      %v2067 = vld [vmem:[%s1964 + $0x49] sm:$0xff]
      %v2068 = vld [vmem:[%s1964 + $0x51] sm:$0xff]
      %v2069 = vld [vmem:[%s1964 + $0x61] sm:$0xff]
      %v2070 = vld [vmem:[%s1964 + $0x69] sm:$0xff]
      %v2071 = vld [vmem:[%s1964 + $0x79] sm:$0xff]
      %v2072 = vld [vmem:[%s1964 + $0x81] sm:$0xff]
      %v2073 = vld [vmem:[%s1964 + $0x91] sm:$0xff]
      %v2074 = vld [vmem:[%s1964 + $0x99] sm:$0xff]
      %v2075 = vld [vmem:[%s1964 + $0xa9] sm:$0xff]
      %v2076 = vld [vmem:[%s1964 + $0xb1] sm:$0xff]
      %2093 = vrot.lane.b32.xlu0 %v2061, 28
      %v2094 = vpop.permute.xlu0 %2093
      %2095 = vrot.lane.b32.xlu0 %v2062, 28
      %v2096 = vpop.permute.xlu0 %2095
      %2097 = vrot.lane.b32.xlu0 %v2063, 28
      %v2098 = vpop.permute.xlu0 %2097
      %2099 = vrot.lane.b32.xlu0 %v2064, 28
      %v2100 = vpop.permute.xlu0 %2099
      %2101 = vrot.lane.b32.xlu0 %v2065, 28
      %v2102 = vpop.permute.xlu0 %2101
      %2103 = vrot.lane.b32.xlu0 %v2066, 28
      %v2104 = vpop.permute.xlu0 %2103
      %2105 = vrot.lane.b32.xlu0 %v2067, 28
      %v2106 = vpop.permute.xlu0 %2105
      %2107 = vrot.lane.b32.xlu0 %v2068, 28
      %v2108 = vpop.permute.xlu0 %2107
      %2109 = vrot.lane.b32.xlu0 %v2069, 28
      %v2110 = vpop.permute.xlu0 %2109
      %2111 = vrot.lane.b32.xlu0 %v2070, 28
      %v2112 = vpop.permute.xlu0 %2111
      %2113 = vrot.lane.b32.xlu0 %v2071, 28
      %v2114 = vpop.permute.xlu0 %2113
      %2115 = vrot.lane.b32.xlu0 %v2072, 28
      %v2116 = vpop.permute.xlu0 %2115
      %2117 = vrot.lane.b32.xlu0 %v2073, 28
      %v2118 = vpop.permute.xlu0 %2117
      %2119 = vrot.lane.b32.xlu0 %v2074, 28
      %v2120 = vpop.permute.xlu0 %2119
      %2121 = vrot.lane.b32.xlu0 %v2075, 28
      %v2122 = vpop.permute.xlu0 %2121
      %2123 = vrot.lane.b32.xlu0 %v2076, 28
      %v2124 = vpop.permute.xlu0 %2123
      %2141 = vst.msk [vmem:[#allocation4] sm:$0xff] %vm1077, %v2094
      %2142 = vst.msk [vmem:[#allocation4 + $0x8] sm:$0xff] %vm1077, %v2096
      %2143 = vst.msk [vmem:[#allocation4 + $0x10] sm:$0xff] %vm1077, %v2098
      %2144 = vst.msk [vmem:[#allocation4 + $0x18] sm:$0xff] %vm1077, %v2100
      %2145 = vst.msk [vmem:[#allocation4 + $0x20] sm:$0xff] %vm1077, %v2102
      %2146 = vst.msk [vmem:[#allocation4 + $0x28] sm:$0xff] %vm1077, %v2104
      %2147 = vst.msk [vmem:[#allocation4 + $0x30] sm:$0xff] %vm1077, %v2106
      %2148 = vst.msk [vmem:[#allocation4 + $0x38] sm:$0xff] %vm1077, %v2108
      %2149 = vst.msk [vmem:[#allocation4 + $0x40] sm:$0xff] %vm1077, %v2110
      %2150 = vst.msk [vmem:[#allocation4 + $0x48] sm:$0xff] %vm1077, %v2112
      %2151 = vst.msk [vmem:[#allocation4 + $0x50] sm:$0xff] %vm1077, %v2114
      %2152 = vst.msk [vmem:[#allocation4 + $0x58] sm:$0xff] %vm1077, %v2116
      %2153 = vst.msk [vmem:[#allocation4 + $0x60] sm:$0xff] %vm1077, %v2118
      %2154 = vst.msk [vmem:[#allocation4 + $0x68] sm:$0xff] %vm1077, %v2120
      %2155 = vst.msk [vmem:[#allocation4 + $0x70] sm:$0xff] %vm1077, %v2122
      %2156 = vst.msk [vmem:[#allocation4 + $0x78] sm:$0xff] %vm1077, %v2124
      %v2157 = vld [vmem:[%s1964 + $0x2] sm:$0xff]
      %v2158 = vld [vmem:[%s1964 + $0xa] sm:$0xff]
      %v2159 = vld [vmem:[%s1964 + $0x1a] sm:$0xff]
      %v2160 = vld [vmem:[%s1964 + $0x22] sm:$0xff]
      %v2161 = vld [vmem:[%s1964 + $0x32] sm:$0xff]
      %v2162 = vld [vmem:[%s1964 + $0x3a] sm:$0xff]
      %v2163 = vld [vmem:[%s1964 + $0x4a] sm:$0xff]
      %v2164 = vld [vmem:[%s1964 + $0x52] sm:$0xff]
      %v2165 = vld [vmem:[%s1964 + $0x62] sm:$0xff]
      %v2166 = vld [vmem:[%s1964 + $0x6a] sm:$0xff]
      %v2167 = vld [vmem:[%s1964 + $0x7a] sm:$0xff]
      %v2168 = vld [vmem:[%s1964 + $0x82] sm:$0xff]
      %v2169 = vld [vmem:[%s1964 + $0x92] sm:$0xff]
      %v2170 = vld [vmem:[%s1964 + $0x9a] sm:$0xff]
      %v2171 = vld [vmem:[%s1964 + $0xaa] sm:$0xff]
      %v2172 = vld [vmem:[%s1964 + $0xb2] sm:$0xff]
      %2189 = vrot.lane.b32.xlu0 %v2157, 32
      %v2190 = vpop.permute.xlu0 %2189
      %2191 = vrot.lane.b32.xlu0 %v2158, 32
      %v2192 = vpop.permute.xlu0 %2191
      %2193 = vrot.lane.b32.xlu0 %v2159, 32
      %v2194 = vpop.permute.xlu0 %2193
      %2195 = vrot.lane.b32.xlu0 %v2160, 32
      %v2196 = vpop.permute.xlu0 %2195
      %2197 = vrot.lane.b32.xlu0 %v2161, 32
      %v2198 = vpop.permute.xlu0 %2197
      %2199 = vrot.lane.b32.xlu0 %v2162, 32
      %v2200 = vpop.permute.xlu0 %2199
      %2201 = vrot.lane.b32.xlu0 %v2163, 32
      %v2202 = vpop.permute.xlu0 %2201
      %2203 = vrot.lane.b32.xlu0 %v2164, 32
      %v2204 = vpop.permute.xlu0 %2203
      %2205 = vrot.lane.b32.xlu0 %v2165, 32
      %v2206 = vpop.permute.xlu0 %2205
      %2207 = vrot.lane.b32.xlu0 %v2166, 32
      %v2208 = vpop.permute.xlu0 %2207
      %2209 = vrot.lane.b32.xlu0 %v2167, 32
      %v2210 = vpop.permute.xlu0 %2209
      %2211 = vrot.lane.b32.xlu0 %v2168, 32
      %v2212 = vpop.permute.xlu0 %2211
      %2213 = vrot.lane.b32.xlu0 %v2169, 32
      %v2214 = vpop.permute.xlu0 %2213
      %2215 = vrot.lane.b32.xlu0 %v2170, 32
      %v2216 = vpop.permute.xlu0 %2215
      %2217 = vrot.lane.b32.xlu0 %v2171, 32
      %v2218 = vpop.permute.xlu0 %2217
      %2219 = vrot.lane.b32.xlu0 %v2172, 32
      %v2220 = vpop.permute.xlu0 %2219
      %2237 = vst.msk [vmem:[#allocation4] sm:$0xff] %vm1174, %v2190
      %2238 = vst.msk [vmem:[#allocation4 + $0x8] sm:$0xff] %vm1174, %v2192
      %2239 = vst.msk [vmem:[#allocation4 + $0x10] sm:$0xff] %vm1174, %v2194
      %2240 = vst.msk [vmem:[#allocation4 + $0x18] sm:$0xff] %vm1174, %v2196
      %2241 = vst.msk [vmem:[#allocation4 + $0x20] sm:$0xff] %vm1174, %v2198
      %2242 = vst.msk [vmem:[#allocation4 + $0x28] sm:$0xff] %vm1174, %v2200
      %2243 = vst.msk [vmem:[#allocation4 + $0x30] sm:$0xff] %vm1174, %v2202
      %2244 = vst.msk [vmem:[#allocation4 + $0x38] sm:$0xff] %vm1174, %v2204
      %2245 = vst.msk [vmem:[#allocation4 + $0x40] sm:$0xff] %vm1174, %v2206
      %2246 = vst.msk [vmem:[#allocation4 + $0x48] sm:$0xff] %vm1174, %v2208
      %2247 = vst.msk [vmem:[#allocation4 + $0x50] sm:$0xff] %vm1174, %v2210
      %2248 = vst.msk [vmem:[#allocation4 + $0x58] sm:$0xff] %vm1174, %v2212
      %2249 = vst.msk [vmem:[#allocation4 + $0x60] sm:$0xff] %vm1174, %v2214
      %2250 = vst.msk [vmem:[#allocation4 + $0x68] sm:$0xff] %vm1174, %v2216
      %2251 = vst.msk [vmem:[#allocation4 + $0x70] sm:$0xff] %vm1174, %v2218
      %2252 = vst.msk [vmem:[#allocation4 + $0x78] sm:$0xff] %vm1174, %v2220
      %v2253 = vld [vmem:[#allocation4] sm:$0xff]
      %v2254 = vld [vmem:[#allocation4 + $0x8] sm:$0xff]
      %v2255 = vld [vmem:[#allocation4 + $0x10] sm:$0xff]
      %v2256 = vld [vmem:[#allocation4 + $0x18] sm:$0xff]
      %v2257 = vld [vmem:[#allocation4 + $0x20] sm:$0xff]
      %v2258 = vld [vmem:[#allocation4 + $0x28] sm:$0xff]
      %v2259 = vld [vmem:[#allocation4 + $0x30] sm:$0xff]
      %v2260 = vld [vmem:[#allocation4 + $0x38] sm:$0xff]
      %v2261 = vld [vmem:[#allocation4 + $0x40] sm:$0xff]
      %v2262 = vld [vmem:[#allocation4 + $0x48] sm:$0xff]
      %v2263 = vld [vmem:[#allocation4 + $0x50] sm:$0xff]
      %v2264 = vld [vmem:[#allocation4 + $0x58] sm:$0xff]
      %v2265 = vld [vmem:[#allocation4 + $0x60] sm:$0xff]
      %v2266 = vld [vmem:[#allocation4 + $0x68] sm:$0xff]
      %v2267 = vld [vmem:[#allocation4 + $0x70] sm:$0xff]
      %v2268 = vld [vmem:[#allocation4 + $0x78] sm:$0xff]
      %v2269 = vld [vmem:[%s1] sm:$0xff]
      %v2270 = vld [vmem:[%s1 + $0x8] sm:$0xff]
      %v2271 = vld [vmem:[%s1 + $0x10] sm:$0xff]
      %v2272 = vld [vmem:[%s1 + $0x18] sm:$0xff]
      %v2273 = vld [vmem:[%s1 + $0x20] sm:$0xf]
      %v2274 = vld [vmem:[%s2] sm:$0x1]
      %v2276 = vlaneseq
      %v2277 = vshrl.u32 %v2276, 7
      %v2278 = vsub.s32 0, %v2277
      %v2279 = vrot.slane %v2274, %v2278
      %v2282 = vsel %vm1219, %v2253, 0
      %v2285 = vsel %vm1219, %v2254, 0
      %v2288 = vsel %vm1219, %v2255, 0
      %v2291 = vsel %vm1219, %v2256, 0
      %v2294 = vsel %vm1219, %v2257, 0
      %v2297 = vsel %vm1219, %v2258, 0
      %v2300 = vsel %vm1219, %v2259, 0
      %v2303 = vsel %vm1219, %v2260, 0
      %v2306 = vsel %vm1219, %v2261, 0
      %v2309 = vsel %vm1219, %v2262, 0
      %v2312 = vsel %vm1219, %v2263, 0
      %v2315 = vsel %vm1219, %v2264, 0
      %v2318 = vsel %vm1219, %v2265, 0
      %v2321 = vsel %vm1219, %v2266, 0
      %v2324 = vsel %vm1219, %v2267, 0
      %v2327 = vsel %vm1219, %v2268, 0
      %v2330 = vsel %vm1268, %v2273, 0
      %2332 = vmatprep.subr.mxu0 0.0
      %2333 = vmatpush1.msra.mxu0 %v2269
      %2334 = vmatprep.subr.mxu0 0.0
      %2335 = vmatpush1.msra.mxu0 %v2270
      %2336 = vmatprep.subr.mxu0 0.0
      %2337 = vmatpush1.msra.mxu0 %v2271
      %2338 = vmatprep.subr.mxu0 0.0
      %2339 = vmatpush1.msra.mxu0 %v2272
      %2340 = vmatprep.subr.mxu0 0.0
      %2341 = vmatpush1.msra.mxu0 %v2330
      %2342 = vmatprep.subr.mxu0 0.0
      %2343 = vmatpush1.msra.mxu0 0.0
      %2344 = vmatprep.subr.mxu0 0.0
      %2345 = vmatpush1.msra.mxu0 0.0
      %2346 = vmatprep.subr.mxu0 0.0
      %2347 = vmatpush1.msra.mxu0 0.0
      %2348 = vmatprep.subr.mxu0 0.0
      %2349 = vmatpush1.msra.mxu0 0.0
      %2350 = vmatprep.subr.mxu0 0.0
      %2351 = vmatpush1.msra.mxu0 0.0
      %2352 = vmatprep.subr.mxu0 0.0
      %2353 = vmatpush1.msra.mxu0 0.0
      %2354 = vmatprep.subr.mxu0 0.0
      %2355 = vmatpush1.msra.mxu0 0.0
      %2356 = vmatprep.subr.mxu0 0.0
      %2357 = vmatpush1.msra.mxu0 0.0
      %2358 = vmatprep.subr.mxu0 0.0
      %2359 = vmatpush1.msra.mxu0 0.0
      %2360 = vmatprep.subr.mxu0 0.0
      %2361 = vmatpush1.msra.mxu0 0.0
      %2362 = vmatprep.subr.mxu0 0.0
      %2363 = vmatpush1.msra.mxu0 0.0
      %2364 = vmatprep.subr.mxu0 0.0
      %2365 = vmatpush1.msra.mxu0 0.0
      %2366 = vmatprep.subr.mxu0 0.0
      %2367 = vmatpush1.msra.mxu0 0.0
      %2368 = vmatprep.subr.mxu0 0.0
      %2369 = vmatpush1.msra.mxu0 0.0
      %2370 = vmatprep.subr.mxu0 0.0
      %2371 = vmatpush1.msra.mxu0 0.0
      %2372 = vmatprep.subr.mxu0 0.0
      %2373 = vmatpush1.msra.mxu0 0.0
      %2374 = vmatprep.subr.mxu0 0.0
      %2375 = vmatpush1.msra.mxu0 0.0
      %2376 = vmatprep.subr.mxu0 0.0
      %2377 = vmatpush1.msra.mxu0 0.0
      %2378 = vmatprep.subr.mxu0 0.0
      %2379 = vmatpush1.msra.mxu0 0.0
      %2380 = vmatprep.subr.mxu0 0.0
      %2381 = vmatpush1.msra.mxu0 0.0
      %2382 = vmatprep.subr.mxu0 0.0
      %2383 = vmatpush1.msra.mxu0 0.0
      %2384 = vmatprep.subr.mxu0 0.0
      %2385 = vmatpush1.msra.mxu0 0.0
      %2386 = vmatprep.subr.mxu0 0.0
      %2387 = vmatpush1.msra.mxu0 0.0
      %2388 = vmatprep.subr.mxu0 0.0
      %2389 = vmatpush1.msra.mxu0 0.0
      %2390 = vmatprep.subr.mxu0 0.0
      %2391 = vmatpush1.msra.mxu0 0.0
      %2392 = vmatprep.subr.mxu0 0.0
      %2393 = vmatpush1.msra.mxu0 0.0
      %2394 = vmatprep.subr.mxu0 0.0
      %2395 = vmatpush1.msra.mxu0 0.0
      %2396 = vmatprep.mubr.f32.mxu0 0.0
      %2397 = vmatmul.mubr.f32.gmra.mrb[0].mxu0 %v2282
      %v2398 = vpop.f32.mrb[0].mxu0
      %v2399 = vadd.f32 %v2279, %v2398
      %v2400 = vpop.f32.mrb[0].mxu0
      %2401 = vmatprep.mubr.f32.mxu0 0.0
      %2402 = vmatmul.mubr.f32.gmra.mrb[0].mxu0 %v2285
      %v2403 = vpop.f32.mrb[0].mxu0
      %v2404 = vadd.f32 %v2279, %v2403
      %v2405 = vpop.f32.mrb[0].mxu0
      %2406 = vmatprep.mubr.f32.mxu0 0.0
      %2407 = vmatmul.mubr.f32.gmra.mrb[0].mxu0 %v2288
      %v2408 = vpop.f32.mrb[0].mxu0
      %v2409 = vadd.f32 %v2279, %v2408
      %v2410 = vpop.f32.mrb[0].mxu0
      %2411 = vmatprep.mubr.f32.mxu0 0.0
      %2412 = vmatmul.mubr.f32.gmra.mrb[0].mxu0 %v2291
      %v2413 = vpop.f32.mrb[0].mxu0
      %v2414 = vadd.f32 %v2279, %v2413
      %v2415 = vpop.f32.mrb[0].mxu0
      %2416 = vmatprep.mubr.f32.mxu0 0.0
      %2417 = vmatmul.mubr.f32.gmra.mrb[0].mxu0 %v2294
      %v2418 = vpop.f32.mrb[0].mxu0
      %v2419 = vadd.f32 %v2279, %v2418
      %v2420 = vpop.f32.mrb[0].mxu0
      %2421 = vmatprep.mubr.f32.mxu0 0.0
      %2422 = vmatmul.mubr.f32.gmra.mrb[0].mxu0 %v2297
      %v2423 = vpop.f32.mrb[0].mxu0
      %v2424 = vadd.f32 %v2279, %v2423
      %v2425 = vpop.f32.mrb[0].mxu0
      %2426 = vmatprep.mubr.f32.mxu0 0.0
      %2427 = vmatmul.mubr.f32.gmra.mrb[0].mxu0 %v2300
      %v2428 = vpop.f32.mrb[0].mxu0
      %v2429 = vadd.f32 %v2279, %v2428
      %v2430 = vpop.f32.mrb[0].mxu0
      %2431 = vmatprep.mubr.f32.mxu0 0.0
      %2432 = vmatmul.mubr.f32.gmra.mrb[0].mxu0 %v2303
      %v2433 = vpop.f32.mrb[0].mxu0
      %v2434 = vadd.f32 %v2279, %v2433
      %v2435 = vpop.f32.mrb[0].mxu0
      %2436 = vmatprep.mubr.f32.mxu0 0.0
      %2437 = vmatmul.mubr.f32.gmra.mrb[0].mxu0 %v2306
      %v2438 = vpop.f32.mrb[0].mxu0
      %v2439 = vadd.f32 %v2279, %v2438
      %v2440 = vpop.f32.mrb[0].mxu0
      %2441 = vmatprep.mubr.f32.mxu0 0.0
      %2442 = vmatmul.mubr.f32.gmra.mrb[0].mxu0 %v2309
      %v2443 = vpop.f32.mrb[0].mxu0
      %v2444 = vadd.f32 %v2279, %v2443
      %v2445 = vpop.f32.mrb[0].mxu0
      %2446 = vmatprep.mubr.f32.mxu0 0.0
      %2447 = vmatmul.mubr.f32.gmra.mrb[0].mxu0 %v2312
      %v2448 = vpop.f32.mrb[0].mxu0
      %v2449 = vadd.f32 %v2279, %v2448
      %v2450 = vpop.f32.mrb[0].mxu0
      %2451 = vmatprep.mubr.f32.mxu0 0.0
      %2452 = vmatmul.mubr.f32.gmra.mrb[0].mxu0 %v2315
      %v2453 = vpop.f32.mrb[0].mxu0
      %v2454 = vadd.f32 %v2279, %v2453
      %v2455 = vpop.f32.mrb[0].mxu0
      %2456 = vmatprep.mubr.f32.mxu0 0.0
      %2457 = vmatmul.mubr.f32.gmra.mrb[0].mxu0 %v2318
      %v2458 = vpop.f32.mrb[0].mxu0
      %v2459 = vadd.f32 %v2279, %v2458
      %v2460 = vpop.f32.mrb[0].mxu0
      %2461 = vmatprep.mubr.f32.mxu0 0.0
      %2462 = vmatmul.mubr.f32.gmra.mrb[0].mxu0 %v2321
      %v2463 = vpop.f32.mrb[0].mxu0
      %v2464 = vadd.f32 %v2279, %v2463
      %v2465 = vpop.f32.mrb[0].mxu0
      %2466 = vmatprep.mubr.f32.mxu0 0.0
      %2467 = vmatmul.mubr.f32.gmra.mrb[0].mxu0 %v2324
      %v2468 = vpop.f32.mrb[0].mxu0
      %v2469 = vadd.f32 %v2279, %v2468
      %v2470 = vpop.f32.mrb[0].mxu0
      %2471 = vmatprep.mubr.f32.mxu0 0.0
      %2472 = vmatmul.mubr.f32.gmra.mrb[0].mxu0 %v2327
      %v2473 = vpop.f32.mrb[0].mxu0
      %v2474 = vadd.f32 %v2279, %v2473
      %v2475 = vpop.f32.mrb[0].mxu0
      %2476 = vdwg.mxu0
      %v2477 = vmax.f32 %v2399, 0.0
      %v2478 = vmax.f32 %v2404, 0.0
      %v2479 = vmax.f32 %v2409, 0.0
      %v2480 = vmax.f32 %v2414, 0.0
      %v2481 = vmax.f32 %v2419, 0.0
      %v2482 = vmax.f32 %v2424, 0.0
      %v2483 = vmax.f32 %v2429, 0.0
      %v2484 = vmax.f32 %v2434, 0.0
      %v2485 = vmax.f32 %v2439, 0.0
      %v2486 = vmax.f32 %v2444, 0.0
      %v2487 = vmax.f32 %v2449, 0.0
      %v2488 = vmax.f32 %v2454, 0.0
      %v2489 = vmax.f32 %v2459, 0.0
      %v2490 = vmax.f32 %v2464, 0.0
      %v2491 = vmax.f32 %v2469, 0.0
      %v2492 = vmax.f32 %v2474, 0.0
      %s2493 = scalar_lea.vmem [#allocation3], 216
      %2494 = vst.msk [vmem:[%s2493 + $0x1] sm:$0xff] %vm336, %v2477
      %2495 = vst.msk [vmem:[%s2493 + $0x9] sm:$0xff] %vm336, %v2478
      %2496 = vst.msk [vmem:[%s2493 + $0x19] sm:$0xff] %vm336, %v2479
      %2497 = vst.msk [vmem:[%s2493 + $0x21] sm:$0xff] %vm336, %v2480
      %2498 = vst.msk [vmem:[%s2493 + $0x31] sm:$0xff] %vm336, %v2481
      %2499 = vst.msk [vmem:[%s2493 + $0x39] sm:$0xff] %vm336, %v2482
      %2500 = vst.msk [vmem:[%s2493 + $0x49] sm:$0xff] %vm336, %v2483
      %2501 = vst.msk [vmem:[%s2493 + $0x51] sm:$0xff] %vm336, %v2484
      %2502 = vst.msk [vmem:[%s2493 + $0x61] sm:$0xff] %vm336, %v2485
      %2503 = vst.msk [vmem:[%s2493 + $0x69] sm:$0xff] %vm336, %v2486
      %2504 = vst.msk [vmem:[%s2493 + $0x79] sm:$0xff] %vm336, %v2487
      %2505 = vst.msk [vmem:[%s2493 + $0x81] sm:$0xff] %vm336, %v2488
      %2506 = vst.msk [vmem:[%s2493 + $0x91] sm:$0xff] %vm336, %v2489
      %2507 = vst.msk [vmem:[%s2493 + $0x99] sm:$0xff] %vm336, %v2490
      %2508 = vst.msk [vmem:[%s2493 + $0xa9] sm:$0xff] %vm336, %v2491
      %2509 = vst.msk [vmem:[%s2493 + $0xb1] sm:$0xff] %vm336, %v2492
      %v2510 = vld [vmem:[#allocation3] sm:$0xff]
      %v2511 = vld [vmem:[#allocation3 + $0x8] sm:$0xff]
      %v2512 = vld [vmem:[#allocation3 + $0x18] sm:$0xff]
      %v2513 = vld [vmem:[#allocation3 + $0x20] sm:$0xff]
      %v2514 = vld [vmem:[#allocation3 + $0x30] sm:$0xff]
      %v2515 = vld [vmem:[#allocation3 + $0x38] sm:$0xff]
      %v2516 = vld [vmem:[#allocation3 + $0x48] sm:$0xff]
      %v2517 = vld [vmem:[#allocation3 + $0x50] sm:$0xff]
      %v2518 = vld [vmem:[#allocation3 + $0x60] sm:$0xff]
      %v2519 = vld [vmem:[#allocation3 + $0x68] sm:$0xff]
      %v2520 = vld [vmem:[#allocation3 + $0x78] sm:$0xff]
      %v2521 = vld [vmem:[#allocation3 + $0x80] sm:$0xff]
      %v2522 = vld [vmem:[#allocation3 + $0x90] sm:$0xff]
      %v2523 = vld [vmem:[#allocation3 + $0x98] sm:$0xff]
      %v2524 = vld [vmem:[#allocation3 + $0xa8] sm:$0xff]
      %v2525 = vld [vmem:[#allocation3 + $0xb0] sm:$0xff]
      %2526 = vst.msk [vmem:[#allocation5] sm:$0xff] %vm336, %v2510
      %2527 = vst.msk [vmem:[#allocation5 + $0x8] sm:$0xff] %vm336, %v2511
      %2528 = vst.msk [vmem:[#allocation5 + $0x10] sm:$0xff] %vm336, %v2512
      %2529 = vst.msk [vmem:[#allocation5 + $0x18] sm:$0xff] %vm336, %v2513
      %2530 = vst.msk [vmem:[#allocation5 + $0x20] sm:$0xff] %vm336, %v2514
      %2531 = vst.msk [vmem:[#allocation5 + $0x28] sm:$0xff] %vm336, %v2515
      %2532 = vst.msk [vmem:[#allocation5 + $0x30] sm:$0xff] %vm336, %v2516
      %2533 = vst.msk [vmem:[#allocation5 + $0x38] sm:$0xff] %vm336, %v2517
      %2534 = vst.msk [vmem:[#allocation5 + $0x40] sm:$0xff] %vm336, %v2518
      %2535 = vst.msk [vmem:[#allocation5 + $0x48] sm:$0xff] %vm336, %v2519
      %2536 = vst.msk [vmem:[#allocation5 + $0x50] sm:$0xff] %vm336, %v2520
      %2537 = vst.msk [vmem:[#allocation5 + $0x58] sm:$0xff] %vm336, %v2521
      %2538 = vst.msk [vmem:[#allocation5 + $0x60] sm:$0xff] %vm336, %v2522
      %2539 = vst.msk [vmem:[#allocation5 + $0x68] sm:$0xff] %vm336, %v2523
      %2540 = vst.msk [vmem:[#allocation5 + $0x70] sm:$0xff] %vm336, %v2524
      %2541 = vst.msk [vmem:[#allocation5 + $0x78] sm:$0xff] %vm336, %v2525
      %v2542 = vld [vmem:[#allocation3 + $0x1] sm:$0xff]
      %v2543 = vld [vmem:[#allocation3 + $0x9] sm:$0xff]
      %v2544 = vld [vmem:[#allocation3 + $0x19] sm:$0xff]
      %v2545 = vld [vmem:[#allocation3 + $0x21] sm:$0xff]
      %v2546 = vld [vmem:[#allocation3 + $0x31] sm:$0xff]
      %v2547 = vld [vmem:[#allocation3 + $0x39] sm:$0xff]
      %v2548 = vld [vmem:[#allocation3 + $0x49] sm:$0xff]
      %v2549 = vld [vmem:[#allocation3 + $0x51] sm:$0xff]
      %v2550 = vld [vmem:[#allocation3 + $0x61] sm:$0xff]
      %v2551 = vld [vmem:[#allocation3 + $0x69] sm:$0xff]
      %v2552 = vld [vmem:[#allocation3 + $0x79] sm:$0xff]
      %v2553 = vld [vmem:[#allocation3 + $0x81] sm:$0xff]
      %v2554 = vld [vmem:[#allocation3 + $0x91] sm:$0xff]
      %v2555 = vld [vmem:[#allocation3 + $0x99] sm:$0xff]
      %v2556 = vld [vmem:[#allocation3 + $0xa9] sm:$0xff]
      %v2557 = vld [vmem:[#allocation3 + $0xb1] sm:$0xff]
      %2574 = vrot.lane.b32.xlu0 %v2542, 8
      %v2575 = vpop.permute.xlu0 %2574
      %2576 = vrot.lane.b32.xlu0 %v2543, 8
      %v2577 = vpop.permute.xlu0 %2576
      %2578 = vrot.lane.b32.xlu0 %v2544, 8
      %v2579 = vpop.permute.xlu0 %2578
      %2580 = vrot.lane.b32.xlu0 %v2545, 8
      %v2581 = vpop.permute.xlu0 %2580
      %2582 = vrot.lane.b32.xlu0 %v2546, 8
      %v2583 = vpop.permute.xlu0 %2582
      %2584 = vrot.lane.b32.xlu0 %v2547, 8
      %v2585 = vpop.permute.xlu0 %2584
      %2586 = vrot.lane.b32.xlu0 %v2548, 8
      %v2587 = vpop.permute.xlu0 %2586
      %2588 = vrot.lane.b32.xlu0 %v2549, 8
      %v2589 = vpop.permute.xlu0 %2588
      %2590 = vrot.lane.b32.xlu0 %v2550, 8
      %v2591 = vpop.permute.xlu0 %2590
      %2592 = vrot.lane.b32.xlu0 %v2551, 8
      %v2593 = vpop.permute.xlu0 %2592
      %2594 = vrot.lane.b32.xlu0 %v2552, 8
      %v2595 = vpop.permute.xlu0 %2594
      %2596 = vrot.lane.b32.xlu0 %v2553, 8
      %v2597 = vpop.permute.xlu0 %2596
      %2598 = vrot.lane.b32.xlu0 %v2554, 8
      %v2599 = vpop.permute.xlu0 %2598
      %2600 = vrot.lane.b32.xlu0 %v2555, 8
      %v2601 = vpop.permute.xlu0 %2600
      %2602 = vrot.lane.b32.xlu0 %v2556, 8
      %v2603 = vpop.permute.xlu0 %2602
      %2604 = vrot.lane.b32.xlu0 %v2557, 8
      %v2605 = vpop.permute.xlu0 %2604
      %vm2622 = vcmask 130112
      %2623 = vst.msk [vmem:[#allocation5] sm:$0xff] %vm2622, %v2575
      %2624 = vst.msk [vmem:[#allocation5 + $0x8] sm:$0xff] %vm2622, %v2577
      %2625 = vst.msk [vmem:[#allocation5 + $0x10] sm:$0xff] %vm2622, %v2579
      %2626 = vst.msk [vmem:[#allocation5 + $0x18] sm:$0xff] %vm2622, %v2581
      %2627 = vst.msk [vmem:[#allocation5 + $0x20] sm:$0xff] %vm2622, %v2583
      %2628 = vst.msk [vmem:[#allocation5 + $0x28] sm:$0xff] %vm2622, %v2585
      %2629 = vst.msk [vmem:[#allocation5 + $0x30] sm:$0xff] %vm2622, %v2587
      %2630 = vst.msk [vmem:[#allocation5 + $0x38] sm:$0xff] %vm2622, %v2589
      %2631 = vst.msk [vmem:[#allocation5 + $0x40] sm:$0xff] %vm2622, %v2591
      %2632 = vst.msk [vmem:[#allocation5 + $0x48] sm:$0xff] %vm2622, %v2593
      %2633 = vst.msk [vmem:[#allocation5 + $0x50] sm:$0xff] %vm2622, %v2595
      %2634 = vst.msk [vmem:[#allocation5 + $0x58] sm:$0xff] %vm2622, %v2597
      %2635 = vst.msk [vmem:[#allocation5 + $0x60] sm:$0xff] %vm2622, %v2599
      %2636 = vst.msk [vmem:[#allocation5 + $0x68] sm:$0xff] %vm2622, %v2601
      %2637 = vst.msk [vmem:[#allocation5 + $0x70] sm:$0xff] %vm2622, %v2603
      %2638 = vst.msk [vmem:[#allocation5 + $0x78] sm:$0xff] %vm2622, %v2605
      %v2639 = vld [vmem:[#allocation3 + $0x2] sm:$0xff]
      %v2640 = vld [vmem:[#allocation3 + $0xa] sm:$0xff]
      %v2641 = vld [vmem:[#allocation3 + $0x1a] sm:$0xff]
      %v2642 = vld [vmem:[#allocation3 + $0x22] sm:$0xff]
      %v2643 = vld [vmem:[#allocation3 + $0x32] sm:$0xff]
      %v2644 = vld [vmem:[#allocation3 + $0x3a] sm:$0xff]
      %v2645 = vld [vmem:[#allocation3 + $0x4a] sm:$0xff]
      %v2646 = vld [vmem:[#allocation3 + $0x52] sm:$0xff]
      %v2647 = vld [vmem:[#allocation3 + $0x62] sm:$0xff]
      %v2648 = vld [vmem:[#allocation3 + $0x6a] sm:$0xff]
      %v2649 = vld [vmem:[#allocation3 + $0x7a] sm:$0xff]
      %v2650 = vld [vmem:[#allocation3 + $0x82] sm:$0xff]
      %v2651 = vld [vmem:[#allocation3 + $0x92] sm:$0xff]
      %v2652 = vld [vmem:[#allocation3 + $0x9a] sm:$0xff]
      %v2653 = vld [vmem:[#allocation3 + $0xaa] sm:$0xff]
      %v2654 = vld [vmem:[#allocation3 + $0xb2] sm:$0xff]
      %2671 = vrot.lane.b32.xlu0 %v2639, 16
      %v2672 = vpop.permute.xlu0 %2671
      %2673 = vrot.lane.b32.xlu0 %v2640, 16
      %v2674 = vpop.permute.xlu0 %2673
      %2675 = vrot.lane.b32.xlu0 %v2641, 16
      %v2676 = vpop.permute.xlu0 %2675
      %2677 = vrot.lane.b32.xlu0 %v2642, 16
      %v2678 = vpop.permute.xlu0 %2677
      %2679 = vrot.lane.b32.xlu0 %v2643, 16
      %v2680 = vpop.permute.xlu0 %2679
      %2681 = vrot.lane.b32.xlu0 %v2644, 16
      %v2682 = vpop.permute.xlu0 %2681
      %2683 = vrot.lane.b32.xlu0 %v2645, 16
      %v2684 = vpop.permute.xlu0 %2683
      %2685 = vrot.lane.b32.xlu0 %v2646, 16
      %v2686 = vpop.permute.xlu0 %2685
      %2687 = vrot.lane.b32.xlu0 %v2647, 16
      %v2688 = vpop.permute.xlu0 %2687
      %2689 = vrot.lane.b32.xlu0 %v2648, 16
      %v2690 = vpop.permute.xlu0 %2689
      %2691 = vrot.lane.b32.xlu0 %v2649, 16
      %v2692 = vpop.permute.xlu0 %2691
      %2693 = vrot.lane.b32.xlu0 %v2650, 16
      %v2694 = vpop.permute.xlu0 %2693
      %2695 = vrot.lane.b32.xlu0 %v2651, 16
      %v2696 = vpop.permute.xlu0 %2695
      %2697 = vrot.lane.b32.xlu0 %v2652, 16
      %v2698 = vpop.permute.xlu0 %2697
      %2699 = vrot.lane.b32.xlu0 %v2653, 16
      %v2700 = vpop.permute.xlu0 %2699
      %2701 = vrot.lane.b32.xlu0 %v2654, 16
      %v2702 = vpop.permute.xlu0 %2701
      %vm2719 = vcmask 195712
      %2720 = vst.msk [vmem:[#allocation5] sm:$0xff] %vm2719, %v2672
      %2721 = vst.msk [vmem:[#allocation5 + $0x8] sm:$0xff] %vm2719, %v2674
      %2722 = vst.msk [vmem:[#allocation5 + $0x10] sm:$0xff] %vm2719, %v2676
      %2723 = vst.msk [vmem:[#allocation5 + $0x18] sm:$0xff] %vm2719, %v2678
      %2724 = vst.msk [vmem:[#allocation5 + $0x20] sm:$0xff] %vm2719, %v2680
      %2725 = vst.msk [vmem:[#allocation5 + $0x28] sm:$0xff] %vm2719, %v2682
      %2726 = vst.msk [vmem:[#allocation5 + $0x30] sm:$0xff] %vm2719, %v2684
      %2727 = vst.msk [vmem:[#allocation5 + $0x38] sm:$0xff] %vm2719, %v2686
      %2728 = vst.msk [vmem:[#allocation5 + $0x40] sm:$0xff] %vm2719, %v2688
      %2729 = vst.msk [vmem:[#allocation5 + $0x48] sm:$0xff] %vm2719, %v2690
      %2730 = vst.msk [vmem:[#allocation5 + $0x50] sm:$0xff] %vm2719, %v2692
      %2731 = vst.msk [vmem:[#allocation5 + $0x58] sm:$0xff] %vm2719, %v2694
      %2732 = vst.msk [vmem:[#allocation5 + $0x60] sm:$0xff] %vm2719, %v2696
      %2733 = vst.msk [vmem:[#allocation5 + $0x68] sm:$0xff] %vm2719, %v2698
      %2734 = vst.msk [vmem:[#allocation5 + $0x70] sm:$0xff] %vm2719, %v2700
      %2735 = vst.msk [vmem:[#allocation5 + $0x78] sm:$0xff] %vm2719, %v2702
      %v2736 = vld [vmem:[%s1433] sm:$0xff]
      %v2737 = vld [vmem:[%s1433 + $0x8] sm:$0xff]
      %v2738 = vld [vmem:[%s1433 + $0x18] sm:$0xff]
      %v2739 = vld [vmem:[%s1433 + $0x20] sm:$0xff]
      %v2740 = vld [vmem:[%s1433 + $0x30] sm:$0xff]
      %v2741 = vld [vmem:[%s1433 + $0x38] sm:$0xff]
      %v2742 = vld [vmem:[%s1433 + $0x48] sm:$0xff]
      %v2743 = vld [vmem:[%s1433 + $0x50] sm:$0xff]
      %v2744 = vld [vmem:[%s1433 + $0x60] sm:$0xff]
      %v2745 = vld [vmem:[%s1433 + $0x68] sm:$0xff]
      %v2746 = vld [vmem:[%s1433 + $0x78] sm:$0xff]
      %v2747 = vld [vmem:[%s1433 + $0x80] sm:$0xff]
      %v2748 = vld [vmem:[%s1433 + $0x90] sm:$0xff]
      %v2749 = vld [vmem:[%s1433 + $0x98] sm:$0xff]
      %v2750 = vld [vmem:[%s1433 + $0xa8] sm:$0xff]
      %v2751 = vld [vmem:[%s1433 + $0xb0] sm:$0xff]
      %2768 = vrot.lane.b32.xlu0 %v2736, 24
      %v2769 = vpop.permute.xlu0 %2768
      %2770 = vrot.lane.b32.xlu0 %v2737, 24
      %v2771 = vpop.permute.xlu0 %2770
      %2772 = vrot.lane.b32.xlu0 %v2738, 24
      %v2773 = vpop.permute.xlu0 %2772
      %2774 = vrot.lane.b32.xlu0 %v2739, 24
      %v2775 = vpop.permute.xlu0 %2774
      %2776 = vrot.lane.b32.xlu0 %v2740, 24
      %v2777 = vpop.permute.xlu0 %2776
      %2778 = vrot.lane.b32.xlu0 %v2741, 24
      %v2779 = vpop.permute.xlu0 %2778
      %2780 = vrot.lane.b32.xlu0 %v2742, 24
      %v2781 = vpop.permute.xlu0 %2780
      %2782 = vrot.lane.b32.xlu0 %v2743, 24
      %v2783 = vpop.permute.xlu0 %2782
      %2784 = vrot.lane.b32.xlu0 %v2744, 24
      %v2785 = vpop.permute.xlu0 %2784
      %2786 = vrot.lane.b32.xlu0 %v2745, 24
      %v2787 = vpop.permute.xlu0 %2786
      %2788 = vrot.lane.b32.xlu0 %v2746, 24
      %v2789 = vpop.permute.xlu0 %2788
      %2790 = vrot.lane.b32.xlu0 %v2747, 24
      %v2791 = vpop.permute.xlu0 %2790
      %2792 = vrot.lane.b32.xlu0 %v2748, 24
      %v2793 = vpop.permute.xlu0 %2792
      %2794 = vrot.lane.b32.xlu0 %v2749, 24
      %v2795 = vpop.permute.xlu0 %2794
      %2796 = vrot.lane.b32.xlu0 %v2750, 24
      %v2797 = vpop.permute.xlu0 %2796
      %2798 = vrot.lane.b32.xlu0 %v2751, 24
      %v2799 = vpop.permute.xlu0 %2798
      %vm2816 = vcmask 261312
      %2817 = vst.msk [vmem:[#allocation5] sm:$0xff] %vm2816, %v2769
      %2818 = vst.msk [vmem:[#allocation5 + $0x8] sm:$0xff] %vm2816, %v2771
      %2819 = vst.msk [vmem:[#allocation5 + $0x10] sm:$0xff] %vm2816, %v2773
      %2820 = vst.msk [vmem:[#allocation5 + $0x18] sm:$0xff] %vm2816, %v2775
      %2821 = vst.msk [vmem:[#allocation5 + $0x20] sm:$0xff] %vm2816, %v2777
      %2822 = vst.msk [vmem:[#allocation5 + $0x28] sm:$0xff] %vm2816, %v2779
      %2823 = vst.msk [vmem:[#allocation5 + $0x30] sm:$0xff] %vm2816, %v2781
      %2824 = vst.msk [vmem:[#allocation5 + $0x38] sm:$0xff] %vm2816, %v2783
      %2825 = vst.msk [vmem:[#allocation5 + $0x40] sm:$0xff] %vm2816, %v2785
      %2826 = vst.msk [vmem:[#allocation5 + $0x48] sm:$0xff] %vm2816, %v2787
      %2827 = vst.msk [vmem:[#allocation5 + $0x50] sm:$0xff] %vm2816, %v2789
      %2828 = vst.msk [vmem:[#allocation5 + $0x58] sm:$0xff] %vm2816, %v2791
      %2829 = vst.msk [vmem:[#allocation5 + $0x60] sm:$0xff] %vm2816, %v2793
      %2830 = vst.msk [vmem:[#allocation5 + $0x68] sm:$0xff] %vm2816, %v2795
      %2831 = vst.msk [vmem:[#allocation5 + $0x70] sm:$0xff] %vm2816, %v2797
      %2832 = vst.msk [vmem:[#allocation5 + $0x78] sm:$0xff] %vm2816, %v2799
      %v2833 = vld [vmem:[%s1433 + $0x1] sm:$0xff]
      %v2834 = vld [vmem:[%s1433 + $0x9] sm:$0xff]
      %v2835 = vld [vmem:[%s1433 + $0x19] sm:$0xff]
      %v2836 = vld [vmem:[%s1433 + $0x21] sm:$0xff]
      %v2837 = vld [vmem:[%s1433 + $0x31] sm:$0xff]
      %v2838 = vld [vmem:[%s1433 + $0x39] sm:$0xff]
      %v2839 = vld [vmem:[%s1433 + $0x49] sm:$0xff]
      %v2840 = vld [vmem:[%s1433 + $0x51] sm:$0xff]
      %v2841 = vld [vmem:[%s1433 + $0x61] sm:$0xff]
      %v2842 = vld [vmem:[%s1433 + $0x69] sm:$0xff]
      %v2843 = vld [vmem:[%s1433 + $0x79] sm:$0xff]
      %v2844 = vld [vmem:[%s1433 + $0x81] sm:$0xff]
      %v2845 = vld [vmem:[%s1433 + $0x91] sm:$0xff]
      %v2846 = vld [vmem:[%s1433 + $0x99] sm:$0xff]
      %v2847 = vld [vmem:[%s1433 + $0xa9] sm:$0xff]
      %v2848 = vld [vmem:[%s1433 + $0xb1] sm:$0xff]
      %2865 = vrot.lane.b32.xlu0 %v2833, 32
      %v2866 = vpop.permute.xlu0 %2865
      %2867 = vrot.lane.b32.xlu0 %v2834, 32
      %v2868 = vpop.permute.xlu0 %2867
      %2869 = vrot.lane.b32.xlu0 %v2835, 32
      %v2870 = vpop.permute.xlu0 %2869
      %2871 = vrot.lane.b32.xlu0 %v2836, 32
      %v2872 = vpop.permute.xlu0 %2871
      %2873 = vrot.lane.b32.xlu0 %v2837, 32
      %v2874 = vpop.permute.xlu0 %2873
      %2875 = vrot.lane.b32.xlu0 %v2838, 32
      %v2876 = vpop.permute.xlu0 %2875
      %2877 = vrot.lane.b32.xlu0 %v2839, 32
      %v2878 = vpop.permute.xlu0 %2877
      %2879 = vrot.lane.b32.xlu0 %v2840, 32
      %v2880 = vpop.permute.xlu0 %2879
      %2881 = vrot.lane.b32.xlu0 %v2841, 32
      %v2882 = vpop.permute.xlu0 %2881
      %2883 = vrot.lane.b32.xlu0 %v2842, 32
      %v2884 = vpop.permute.xlu0 %2883
      %2885 = vrot.lane.b32.xlu0 %v2843, 32
      %v2886 = vpop.permute.xlu0 %2885
      %2887 = vrot.lane.b32.xlu0 %v2844, 32
      %v2888 = vpop.permute.xlu0 %2887
      %2889 = vrot.lane.b32.xlu0 %v2845, 32
      %v2890 = vpop.permute.xlu0 %2889
      %2891 = vrot.lane.b32.xlu0 %v2846, 32
      %v2892 = vpop.permute.xlu0 %2891
      %2893 = vrot.lane.b32.xlu0 %v2847, 32
      %v2894 = vpop.permute.xlu0 %2893
      %2895 = vrot.lane.b32.xlu0 %v2848, 32
      %v2896 = vpop.permute.xlu0 %2895
      %vm2913 = vcmask 326912
      %2914 = vst.msk [vmem:[#allocation5] sm:$0xff] %vm2913, %v2866
      %2915 = vst.msk [vmem:[#allocation5 + $0x8] sm:$0xff] %vm2913, %v2868
      %2916 = vst.msk [vmem:[#allocation5 + $0x10] sm:$0xff] %vm2913, %v2870
      %2917 = vst.msk [vmem:[#allocation5 + $0x18] sm:$0xff] %vm2913, %v2872
      %2918 = vst.msk [vmem:[#allocation5 + $0x20] sm:$0xff] %vm2913, %v2874
      %2919 = vst.msk [vmem:[#allocation5 + $0x28] sm:$0xff] %vm2913, %v2876
      %2920 = vst.msk [vmem:[#allocation5 + $0x30] sm:$0xff] %vm2913, %v2878
      %2921 = vst.msk [vmem:[#allocation5 + $0x38] sm:$0xff] %vm2913, %v2880
      %2922 = vst.msk [vmem:[#allocation5 + $0x40] sm:$0xff] %vm2913, %v2882
      %2923 = vst.msk [vmem:[#allocation5 + $0x48] sm:$0xff] %vm2913, %v2884
      %2924 = vst.msk [vmem:[#allocation5 + $0x50] sm:$0xff] %vm2913, %v2886
      %2925 = vst.msk [vmem:[#allocation5 + $0x58] sm:$0xff] %vm2913, %v2888
      %2926 = vst.msk [vmem:[#allocation5 + $0x60] sm:$0xff] %vm2913, %v2890
      %2927 = vst.msk [vmem:[#allocation5 + $0x68] sm:$0xff] %vm2913, %v2892
      %2928 = vst.msk [vmem:[#allocation5 + $0x70] sm:$0xff] %vm2913, %v2894
      %2929 = vst.msk [vmem:[#allocation5 + $0x78] sm:$0xff] %vm2913, %v2896
      %v2930 = vld [vmem:[%s1433 + $0x2] sm:$0xff]
      %v2931 = vld [vmem:[%s1433 + $0xa] sm:$0xff]
      %v2932 = vld [vmem:[%s1433 + $0x1a] sm:$0xff]
      %v2933 = vld [vmem:[%s1433 + $0x22] sm:$0xff]
      %v2934 = vld [vmem:[%s1433 + $0x32] sm:$0xff]
      %v2935 = vld [vmem:[%s1433 + $0x3a] sm:$0xff]
      %v2936 = vld [vmem:[%s1433 + $0x4a] sm:$0xff]
      %v2937 = vld [vmem:[%s1433 + $0x52] sm:$0xff]
      %v2938 = vld [vmem:[%s1433 + $0x62] sm:$0xff]
      %v2939 = vld [vmem:[%s1433 + $0x6a] sm:$0xff]
      %v2940 = vld [vmem:[%s1433 + $0x7a] sm:$0xff]
      %v2941 = vld [vmem:[%s1433 + $0x82] sm:$0xff]
      %v2942 = vld [vmem:[%s1433 + $0x92] sm:$0xff]
      %v2943 = vld [vmem:[%s1433 + $0x9a] sm:$0xff]
      %v2944 = vld [vmem:[%s1433 + $0xaa] sm:$0xff]
      %v2945 = vld [vmem:[%s1433 + $0xb2] sm:$0xff]
      %2962 = vrot.lane.b32.xlu0 %v2930, 40
      %v2963 = vpop.permute.xlu0 %2962
      %2964 = vrot.lane.b32.xlu0 %v2931, 40
      %v2965 = vpop.permute.xlu0 %2964
      %2966 = vrot.lane.b32.xlu0 %v2932, 40
      %v2967 = vpop.permute.xlu0 %2966
      %2968 = vrot.lane.b32.xlu0 %v2933, 40
      %v2969 = vpop.permute.xlu0 %2968
      %2970 = vrot.lane.b32.xlu0 %v2934, 40
      %v2971 = vpop.permute.xlu0 %2970
      %2972 = vrot.lane.b32.xlu0 %v2935, 40
      %v2973 = vpop.permute.xlu0 %2972
      %2974 = vrot.lane.b32.xlu0 %v2936, 40
      %v2975 = vpop.permute.xlu0 %2974
      %2976 = vrot.lane.b32.xlu0 %v2937, 40
      %v2977 = vpop.permute.xlu0 %2976
      %2978 = vrot.lane.b32.xlu0 %v2938, 40
      %v2979 = vpop.permute.xlu0 %2978
      %2980 = vrot.lane.b32.xlu0 %v2939, 40
      %v2981 = vpop.permute.xlu0 %2980
      %2982 = vrot.lane.b32.xlu0 %v2940, 40
      %v2983 = vpop.permute.xlu0 %2982
      %2984 = vrot.lane.b32.xlu0 %v2941, 40
      %v2985 = vpop.permute.xlu0 %2984
      %2986 = vrot.lane.b32.xlu0 %v2942, 40
      %v2987 = vpop.permute.xlu0 %2986
      %2988 = vrot.lane.b32.xlu0 %v2943, 40
      %v2989 = vpop.permute.xlu0 %2988
      %2990 = vrot.lane.b32.xlu0 %v2944, 40
      %v2991 = vpop.permute.xlu0 %2990
      %2992 = vrot.lane.b32.xlu0 %v2945, 40
      %v2993 = vpop.permute.xlu0 %2992
      %vm3010 = vcmask 392512
      %3011 = vst.msk [vmem:[#allocation5] sm:$0xff] %vm3010, %v2963
      %3012 = vst.msk [vmem:[#allocation5 + $0x8] sm:$0xff] %vm3010, %v2965
      %3013 = vst.msk [vmem:[#allocation5 + $0x10] sm:$0xff] %vm3010, %v2967
      %3014 = vst.msk [vmem:[#allocation5 + $0x18] sm:$0xff] %vm3010, %v2969
      %3015 = vst.msk [vmem:[#allocation5 + $0x20] sm:$0xff] %vm3010, %v2971
      %3016 = vst.msk [vmem:[#allocation5 + $0x28] sm:$0xff] %vm3010, %v2973
      %3017 = vst.msk [vmem:[#allocation5 + $0x30] sm:$0xff] %vm3010, %v2975
      %3018 = vst.msk [vmem:[#allocation5 + $0x38] sm:$0xff] %vm3010, %v2977
      %3019 = vst.msk [vmem:[#allocation5 + $0x40] sm:$0xff] %vm3010, %v2979
      %3020 = vst.msk [vmem:[#allocation5 + $0x48] sm:$0xff] %vm3010, %v2981
      %3021 = vst.msk [vmem:[#allocation5 + $0x50] sm:$0xff] %vm3010, %v2983
      %3022 = vst.msk [vmem:[#allocation5 + $0x58] sm:$0xff] %vm3010, %v2985
      %3023 = vst.msk [vmem:[#allocation5 + $0x60] sm:$0xff] %vm3010, %v2987
      %3024 = vst.msk [vmem:[#allocation5 + $0x68] sm:$0xff] %vm3010, %v2989
      %3025 = vst.msk [vmem:[#allocation5 + $0x70] sm:$0xff] %vm3010, %v2991
      %3026 = vst.msk [vmem:[#allocation5 + $0x78] sm:$0xff] %vm3010, %v2993
      %s3027 = scalar_lea.vmem [#allocation3], 48
      %v3028 = vld [vmem:[%s3027] sm:$0xff]
      %v3029 = vld [vmem:[%s3027 + $0x8] sm:$0xff]
      %v3030 = vld [vmem:[%s3027 + $0x18] sm:$0xff]
      %v3031 = vld [vmem:[%s3027 + $0x20] sm:$0xff]
      %v3032 = vld [vmem:[%s3027 + $0x30] sm:$0xff]
      %v3033 = vld [vmem:[%s3027 + $0x38] sm:$0xff]
      %v3034 = vld [vmem:[%s3027 + $0x48] sm:$0xff]
      %v3035 = vld [vmem:[%s3027 + $0x50] sm:$0xff]
      %v3036 = vld [vmem:[%s3027 + $0x60] sm:$0xff]
      %v3037 = vld [vmem:[%s3027 + $0x68] sm:$0xff]
      %v3038 = vld [vmem:[%s3027 + $0x78] sm:$0xff]
      %v3039 = vld [vmem:[%s3027 + $0x80] sm:$0xff]
      %v3040 = vld [vmem:[%s3027 + $0x90] sm:$0xff]
      %v3041 = vld [vmem:[%s3027 + $0x98] sm:$0xff]
      %v3042 = vld [vmem:[%s3027 + $0xa8] sm:$0xff]
      %v3043 = vld [vmem:[%s3027 + $0xb0] sm:$0xff]
      %3060 = vrot.lane.b32.xlu0 %v3028, 48
      %v3061 = vpop.permute.xlu0 %3060
      %3062 = vrot.lane.b32.xlu0 %v3029, 48
      %v3063 = vpop.permute.xlu0 %3062
      %3064 = vrot.lane.b32.xlu0 %v3030, 48
      %v3065 = vpop.permute.xlu0 %3064
      %3066 = vrot.lane.b32.xlu0 %v3031, 48
      %v3067 = vpop.permute.xlu0 %3066
      %3068 = vrot.lane.b32.xlu0 %v3032, 48
      %v3069 = vpop.permute.xlu0 %3068
      %3070 = vrot.lane.b32.xlu0 %v3033, 48
      %v3071 = vpop.permute.xlu0 %3070
      %3072 = vrot.lane.b32.xlu0 %v3034, 48
      %v3073 = vpop.permute.xlu0 %3072
      %3074 = vrot.lane.b32.xlu0 %v3035, 48
      %v3075 = vpop.permute.xlu0 %3074
      %3076 = vrot.lane.b32.xlu0 %v3036, 48
      %v3077 = vpop.permute.xlu0 %3076
      %3078 = vrot.lane.b32.xlu0 %v3037, 48
      %v3079 = vpop.permute.xlu0 %3078
      %3080 = vrot.lane.b32.xlu0 %v3038, 48
      %v3081 = vpop.permute.xlu0 %3080
      %3082 = vrot.lane.b32.xlu0 %v3039, 48
      %v3083 = vpop.permute.xlu0 %3082
      %3084 = vrot.lane.b32.xlu0 %v3040, 48
      %v3085 = vpop.permute.xlu0 %3084
      %3086 = vrot.lane.b32.xlu0 %v3041, 48
      %v3087 = vpop.permute.xlu0 %3086
      %3088 = vrot.lane.b32.xlu0 %v3042, 48
      %v3089 = vpop.permute.xlu0 %3088
      %3090 = vrot.lane.b32.xlu0 %v3043, 48
      %v3091 = vpop.permute.xlu0 %3090
      %vm3108 = vcmask 458112
      %3109 = vst.msk [vmem:[#allocation5] sm:$0xff] %vm3108, %v3061
      %3110 = vst.msk [vmem:[#allocation5 + $0x8] sm:$0xff] %vm3108, %v3063
      %3111 = vst.msk [vmem:[#allocation5 + $0x10] sm:$0xff] %vm3108, %v3065
      %3112 = vst.msk [vmem:[#allocation5 + $0x18] sm:$0xff] %vm3108, %v3067
      %3113 = vst.msk [vmem:[#allocation5 + $0x20] sm:$0xff] %vm3108, %v3069
      %3114 = vst.msk [vmem:[#allocation5 + $0x28] sm:$0xff] %vm3108, %v3071
      %3115 = vst.msk [vmem:[#allocation5 + $0x30] sm:$0xff] %vm3108, %v3073
      %3116 = vst.msk [vmem:[#allocation5 + $0x38] sm:$0xff] %vm3108, %v3075
      %3117 = vst.msk [vmem:[#allocation5 + $0x40] sm:$0xff] %vm3108, %v3077
      %3118 = vst.msk [vmem:[#allocation5 + $0x48] sm:$0xff] %vm3108, %v3079
      %3119 = vst.msk [vmem:[#allocation5 + $0x50] sm:$0xff] %vm3108, %v3081
      %3120 = vst.msk [vmem:[#allocation5 + $0x58] sm:$0xff] %vm3108, %v3083
      %3121 = vst.msk [vmem:[#allocation5 + $0x60] sm:$0xff] %vm3108, %v3085
      %3122 = vst.msk [vmem:[#allocation5 + $0x68] sm:$0xff] %vm3108, %v3087
      %3123 = vst.msk [vmem:[#allocation5 + $0x70] sm:$0xff] %vm3108, %v3089
      %3124 = vst.msk [vmem:[#allocation5 + $0x78] sm:$0xff] %vm3108, %v3091
      %v3125 = vld [vmem:[%s3027 + $0x1] sm:$0xff]
      %v3126 = vld [vmem:[%s3027 + $0x9] sm:$0xff]
      %v3127 = vld [vmem:[%s3027 + $0x19] sm:$0xff]
      %v3128 = vld [vmem:[%s3027 + $0x21] sm:$0xff]
      %v3129 = vld [vmem:[%s3027 + $0x31] sm:$0xff]
      %v3130 = vld [vmem:[%s3027 + $0x39] sm:$0xff]
      %v3131 = vld [vmem:[%s3027 + $0x49] sm:$0xff]
      %v3132 = vld [vmem:[%s3027 + $0x51] sm:$0xff]
      %v3133 = vld [vmem:[%s3027 + $0x61] sm:$0xff]
      %v3134 = vld [vmem:[%s3027 + $0x69] sm:$0xff]
      %v3135 = vld [vmem:[%s3027 + $0x79] sm:$0xff]
      %v3136 = vld [vmem:[%s3027 + $0x81] sm:$0xff]
      %v3137 = vld [vmem:[%s3027 + $0x91] sm:$0xff]
      %v3138 = vld [vmem:[%s3027 + $0x99] sm:$0xff]
      %v3139 = vld [vmem:[%s3027 + $0xa9] sm:$0xff]
      %v3140 = vld [vmem:[%s3027 + $0xb1] sm:$0xff]
      %3157 = vrot.lane.b32.xlu0 %v3125, 56
      %v3158 = vpop.permute.xlu0 %3157
      %3159 = vrot.lane.b32.xlu0 %v3126, 56
      %v3160 = vpop.permute.xlu0 %3159
      %3161 = vrot.lane.b32.xlu0 %v3127, 56
      %v3162 = vpop.permute.xlu0 %3161
      %3163 = vrot.lane.b32.xlu0 %v3128, 56
      %v3164 = vpop.permute.xlu0 %3163
      %3165 = vrot.lane.b32.xlu0 %v3129, 56
      %v3166 = vpop.permute.xlu0 %3165
      %3167 = vrot.lane.b32.xlu0 %v3130, 56
      %v3168 = vpop.permute.xlu0 %3167
      %3169 = vrot.lane.b32.xlu0 %v3131, 56
      %v3170 = vpop.permute.xlu0 %3169
      %3171 = vrot.lane.b32.xlu0 %v3132, 56
      %v3172 = vpop.permute.xlu0 %3171
      %3173 = vrot.lane.b32.xlu0 %v3133, 56
      %v3174 = vpop.permute.xlu0 %3173
      %3175 = vrot.lane.b32.xlu0 %v3134, 56
      %v3176 = vpop.permute.xlu0 %3175
      %3177 = vrot.lane.b32.xlu0 %v3135, 56
      %v3178 = vpop.permute.xlu0 %3177
      %3179 = vrot.lane.b32.xlu0 %v3136, 56
      %v3180 = vpop.permute.xlu0 %3179
      %3181 = vrot.lane.b32.xlu0 %v3137, 56
      %v3182 = vpop.permute.xlu0 %3181
      %3183 = vrot.lane.b32.xlu0 %v3138, 56
      %v3184 = vpop.permute.xlu0 %3183
      %3185 = vrot.lane.b32.xlu0 %v3139, 56
      %v3186 = vpop.permute.xlu0 %3185
      %3187 = vrot.lane.b32.xlu0 %v3140, 56
      %v3188 = vpop.permute.xlu0 %3187
      %vm3205 = vcmask 523712
      %3206 = vst.msk [vmem:[#allocation5] sm:$0xff] %vm3205, %v3158
      %3207 = vst.msk [vmem:[#allocation5 + $0x8] sm:$0xff] %vm3205, %v3160
      %3208 = vst.msk [vmem:[#allocation5 + $0x10] sm:$0xff] %vm3205, %v3162
      %3209 = vst.msk [vmem:[#allocation5 + $0x18] sm:$0xff] %vm3205, %v3164
      %3210 = vst.msk [vmem:[#allocation5 + $0x20] sm:$0xff] %vm3205, %v3166
      %3211 = vst.msk [vmem:[#allocation5 + $0x28] sm:$0xff] %vm3205, %v3168
      %3212 = vst.msk [vmem:[#allocation5 + $0x30] sm:$0xff] %vm3205, %v3170
      %3213 = vst.msk [vmem:[#allocation5 + $0x38] sm:$0xff] %vm3205, %v3172
      %3214 = vst.msk [vmem:[#allocation5 + $0x40] sm:$0xff] %vm3205, %v3174
      %3215 = vst.msk [vmem:[#allocation5 + $0x48] sm:$0xff] %vm3205, %v3176
      %3216 = vst.msk [vmem:[#allocation5 + $0x50] sm:$0xff] %vm3205, %v3178
      %3217 = vst.msk [vmem:[#allocation5 + $0x58] sm:$0xff] %vm3205, %v3180
      %3218 = vst.msk [vmem:[#allocation5 + $0x60] sm:$0xff] %vm3205, %v3182
      %3219 = vst.msk [vmem:[#allocation5 + $0x68] sm:$0xff] %vm3205, %v3184
      %3220 = vst.msk [vmem:[#allocation5 + $0x70] sm:$0xff] %vm3205, %v3186
      %3221 = vst.msk [vmem:[#allocation5 + $0x78] sm:$0xff] %vm3205, %v3188
      %v3222 = vld [vmem:[%s3027 + $0x2] sm:$0xff]
      %v3223 = vld [vmem:[%s3027 + $0xa] sm:$0xff]
      %v3224 = vld [vmem:[%s3027 + $0x1a] sm:$0xff]
      %v3225 = vld [vmem:[%s3027 + $0x22] sm:$0xff]
      %v3226 = vld [vmem:[%s3027 + $0x32] sm:$0xff]
      %v3227 = vld [vmem:[%s3027 + $0x3a] sm:$0xff]
      %v3228 = vld [vmem:[%s3027 + $0x4a] sm:$0xff]
      %v3229 = vld [vmem:[%s3027 + $0x52] sm:$0xff]
      %v3230 = vld [vmem:[%s3027 + $0x62] sm:$0xff]
      %v3231 = vld [vmem:[%s3027 + $0x6a] sm:$0xff]
      %v3232 = vld [vmem:[%s3027 + $0x7a] sm:$0xff]
      %v3233 = vld [vmem:[%s3027 + $0x82] sm:$0xff]
      %v3234 = vld [vmem:[%s3027 + $0x92] sm:$0xff]
      %v3235 = vld [vmem:[%s3027 + $0x9a] sm:$0xff]
      %v3236 = vld [vmem:[%s3027 + $0xaa] sm:$0xff]
      %v3237 = vld [vmem:[%s3027 + $0xb2] sm:$0xff]
      %3254 = vrot.lane.b32.xlu0 %v3222, 64
      %v3255 = vpop.permute.xlu0 %3254
      %3256 = vrot.lane.b32.xlu0 %v3223, 64
      %v3257 = vpop.permute.xlu0 %3256
      %3258 = vrot.lane.b32.xlu0 %v3224, 64
      %v3259 = vpop.permute.xlu0 %3258
      %3260 = vrot.lane.b32.xlu0 %v3225, 64
      %v3261 = vpop.permute.xlu0 %3260
      %3262 = vrot.lane.b32.xlu0 %v3226, 64
      %v3263 = vpop.permute.xlu0 %3262
      %3264 = vrot.lane.b32.xlu0 %v3227, 64
      %v3265 = vpop.permute.xlu0 %3264
      %3266 = vrot.lane.b32.xlu0 %v3228, 64
      %v3267 = vpop.permute.xlu0 %3266
      %3268 = vrot.lane.b32.xlu0 %v3229, 64
      %v3269 = vpop.permute.xlu0 %3268
      %3270 = vrot.lane.b32.xlu0 %v3230, 64
      %v3271 = vpop.permute.xlu0 %3270
      %3272 = vrot.lane.b32.xlu0 %v3231, 64
      %v3273 = vpop.permute.xlu0 %3272
      %3274 = vrot.lane.b32.xlu0 %v3232, 64
      %v3275 = vpop.permute.xlu0 %3274
      %3276 = vrot.lane.b32.xlu0 %v3233, 64
      %v3277 = vpop.permute.xlu0 %3276
      %3278 = vrot.lane.b32.xlu0 %v3234, 64
      %v3279 = vpop.permute.xlu0 %3278
      %3280 = vrot.lane.b32.xlu0 %v3235, 64
      %v3281 = vpop.permute.xlu0 %3280
      %3282 = vrot.lane.b32.xlu0 %v3236, 64
      %v3283 = vpop.permute.xlu0 %3282
      %3284 = vrot.lane.b32.xlu0 %v3237, 64
      %v3285 = vpop.permute.xlu0 %3284
      %vm3302 = vcmask 589312
      %3303 = vst.msk [vmem:[#allocation5] sm:$0xff] %vm3302, %v3255
      %3304 = vst.msk [vmem:[#allocation5 + $0x8] sm:$0xff] %vm3302, %v3257
      %3305 = vst.msk [vmem:[#allocation5 + $0x10] sm:$0xff] %vm3302, %v3259
      %3306 = vst.msk [vmem:[#allocation5 + $0x18] sm:$0xff] %vm3302, %v3261
      %3307 = vst.msk [vmem:[#allocation5 + $0x20] sm:$0xff] %vm3302, %v3263
      %3308 = vst.msk [vmem:[#allocation5 + $0x28] sm:$0xff] %vm3302, %v3265
      %3309 = vst.msk [vmem:[#allocation5 + $0x30] sm:$0xff] %vm3302, %v3267
      %3310 = vst.msk [vmem:[#allocation5 + $0x38] sm:$0xff] %vm3302, %v3269
      %3311 = vst.msk [vmem:[#allocation5 + $0x40] sm:$0xff] %vm3302, %v3271
      %3312 = vst.msk [vmem:[#allocation5 + $0x48] sm:$0xff] %vm3302, %v3273
      %3313 = vst.msk [vmem:[#allocation5 + $0x50] sm:$0xff] %vm3302, %v3275
      %3314 = vst.msk [vmem:[#allocation5 + $0x58] sm:$0xff] %vm3302, %v3277
      %3315 = vst.msk [vmem:[#allocation5 + $0x60] sm:$0xff] %vm3302, %v3279
      %3316 = vst.msk [vmem:[#allocation5 + $0x68] sm:$0xff] %vm3302, %v3281
      %3317 = vst.msk [vmem:[#allocation5 + $0x70] sm:$0xff] %vm3302, %v3283
      %3318 = vst.msk [vmem:[#allocation5 + $0x78] sm:$0xff] %vm3302, %v3285
      %v3319 = vld [vmem:[#allocation5] sm:$0xff]
      %v3320 = vld [vmem:[#allocation5 + $0x8] sm:$0xff]
      %v3321 = vld [vmem:[#allocation5 + $0x10] sm:$0xff]
      %v3322 = vld [vmem:[#allocation5 + $0x18] sm:$0xff]
      %v3323 = vld [vmem:[#allocation5 + $0x20] sm:$0xff]
      %v3324 = vld [vmem:[#allocation5 + $0x28] sm:$0xff]
      %v3325 = vld [vmem:[#allocation5 + $0x30] sm:$0xff]
      %v3326 = vld [vmem:[#allocation5 + $0x38] sm:$0xff]
      %v3327 = vld [vmem:[#allocation5 + $0x40] sm:$0xff]
      %v3328 = vld [vmem:[#allocation5 + $0x48] sm:$0xff]
      %v3329 = vld [vmem:[#allocation5 + $0x50] sm:$0xff]
      %v3330 = vld [vmem:[#allocation5 + $0x58] sm:$0xff]
      %v3331 = vld [vmem:[#allocation5 + $0x60] sm:$0xff]
      %v3332 = vld [vmem:[#allocation5 + $0x68] sm:$0xff]
      %v3333 = vld [vmem:[#allocation5 + $0x70] sm:$0xff]
      %v3334 = vld [vmem:[#allocation5 + $0x78] sm:$0xff]
      %v3335 = vld [vmem:[%s3] sm:$0xff]
      %v3336 = vld [vmem:[%s3 + $0x8] sm:$0xff]
      %v3337 = vld [vmem:[%s3 + $0x10] sm:$0xff]
      %v3338 = vld [vmem:[%s3 + $0x18] sm:$0xff]
      %v3339 = vld [vmem:[%s3 + $0x20] sm:$0xff]
      %v3340 = vld [vmem:[%s3 + $0x28] sm:$0xff]
      %v3341 = vld [vmem:[%s3 + $0x30] sm:$0xff]
      %v3342 = vld [vmem:[%s3 + $0x38] sm:$0xff]
      %v3343 = vld [vmem:[%s3 + $0x40] sm:$0xff]
      %v3344 = vld [vmem:[%s4] sm:$0x1]
      %v3346 = vlaneseq
      %v3347 = vshrl.u32 %v3346, 7
      %v3348 = vsub.s32 0, %v3347
      %v3349 = vrot.slane %v3344, %v3348
      %vm3351 = vcmask 588800
      %v3353 = vsel %vm3351, %v3319, 0
      %v3356 = vsel %vm3351, %v3320, 0
      %v3359 = vsel %vm3351, %v3321, 0
      %v3362 = vsel %vm3351, %v3322, 0
      %v3365 = vsel %vm3351, %v3323, 0
      %v3368 = vsel %vm3351, %v3324, 0
      %v3371 = vsel %vm3351, %v3325, 0
      %v3374 = vsel %vm3351, %v3326, 0
      %v3377 = vsel %vm3351, %v3327, 0
      %v3380 = vsel %vm3351, %v3328, 0
      %v3383 = vsel %vm3351, %v3329, 0
      %v3386 = vsel %vm3351, %v3330, 0
      %v3389 = vsel %vm3351, %v3331, 0
      %v3392 = vsel %vm3351, %v3332, 0
      %v3395 = vsel %vm3351, %v3333, 0
      %v3398 = vsel %vm3351, %v3334, 0
      %3400 = vmatprep.subr.mxu0 0.0
      %3401 = vmatpush1.msra.mxu0 %v3335
      %3402 = vmatprep.subr.mxu0 0.0
      %3403 = vmatpush1.msra.mxu0 %v3336
      %3404 = vmatprep.subr.mxu0 0.0
      %3405 = vmatpush1.msra.mxu0 %v3337
      %3406 = vmatprep.subr.mxu0 0.0
      %3407 = vmatpush1.msra.mxu0 %v3338
      %3408 = vmatprep.subr.mxu0 0.0
      %3409 = vmatpush1.msra.mxu0 %v3339
      %3410 = vmatprep.subr.mxu0 0.0
      %3411 = vmatpush1.msra.mxu0 %v3340
      %3412 = vmatprep.subr.mxu0 0.0
      %3413 = vmatpush1.msra.mxu0 %v3341
      %3414 = vmatprep.subr.mxu0 0.0
      %3415 = vmatpush1.msra.mxu0 %v3342
      %3416 = vmatprep.subr.mxu0 0.0
      %3417 = vmatpush1.msra.mxu0 %v3343
      %3418 = vmatprep.subr.mxu0 0.0
      %3419 = vmatpush1.msra.mxu0 0.0
      %3420 = vmatprep.subr.mxu0 0.0
      %3421 = vmatpush1.msra.mxu0 0.0
      %3422 = vmatprep.subr.mxu0 0.0
      %3423 = vmatpush1.msra.mxu0 0.0
      %3424 = vmatprep.subr.mxu0 0.0
      %3425 = vmatpush1.msra.mxu0 0.0
      %3426 = vmatprep.subr.mxu0 0.0
      %3427 = vmatpush1.msra.mxu0 0.0
      %3428 = vmatprep.subr.mxu0 0.0
      %3429 = vmatpush1.msra.mxu0 0.0
      %3430 = vmatprep.subr.mxu0 0.0
      %3431 = vmatpush1.msra.mxu0 0.0
      %3432 = vmatprep.subr.mxu0 0.0
      %3433 = vmatpush1.msra.mxu0 0.0
      %3434 = vmatprep.subr.mxu0 0.0
      %3435 = vmatpush1.msra.mxu0 0.0
      %3436 = vmatprep.subr.mxu0 0.0
      %3437 = vmatpush1.msra.mxu0 0.0
      %3438 = vmatprep.subr.mxu0 0.0
      %3439 = vmatpush1.msra.mxu0 0.0
      %3440 = vmatprep.subr.mxu0 0.0
      %3441 = vmatpush1.msra.mxu0 0.0
      %3442 = vmatprep.subr.mxu0 0.0
      %3443 = vmatpush1.msra.mxu0 0.0
      %3444 = vmatprep.subr.mxu0 0.0
      %3445 = vmatpush1.msra.mxu0 0.0
      %3446 = vmatprep.subr.mxu0 0.0
      %3447 = vmatpush1.msra.mxu0 0.0
      %3448 = vmatprep.subr.mxu0 0.0
      %3449 = vmatpush1.msra.mxu0 0.0
      %3450 = vmatprep.subr.mxu0 0.0
      %3451 = vmatpush1.msra.mxu0 0.0
      %3452 = vmatprep.subr.mxu0 0.0
      %3453 = vmatpush1.msra.mxu0 0.0
      %3454 = vmatprep.subr.mxu0 0.0
      %3455 = vmatpush1.msra.mxu0 0.0
      %3456 = vmatprep.subr.mxu0 0.0
      %3457 = vmatpush1.msra.mxu0 0.0
      %3458 = vmatprep.subr.mxu0 0.0
      %3459 = vmatpush1.msra.mxu0 0.0
      %3460 = vmatprep.subr.mxu0 0.0
      %3461 = vmatpush1.msra.mxu0 0.0
      %3462 = vmatprep.subr.mxu0 0.0
      %3463 = vmatpush1.msra.mxu0 0.0
      %3464 = vmatprep.mubr.f32.mxu0 0.0
      %3465 = vmatmul.mubr.f32.gmra.mrb[0].mxu0 %v3353
      %v3466 = vpop.f32.mrb[0].mxu0
      %v3467 = vadd.f32 %v3349, %v3466
      %v3468 = vpop.f32.mrb[0].mxu0
      %3469 = vmatprep.mubr.f32.mxu0 0.0
      %3470 = vmatmul.mubr.f32.gmra.mrb[0].mxu0 %v3356
      %v3471 = vpop.f32.mrb[0].mxu0
      %v3472 = vadd.f32 %v3349, %v3471
      %v3473 = vpop.f32.mrb[0].mxu0
      %3474 = vmatprep.mubr.f32.mxu0 0.0
      %3475 = vmatmul.mubr.f32.gmra.mrb[0].mxu0 %v3359
      %v3476 = vpop.f32.mrb[0].mxu0
      %v3477 = vadd.f32 %v3349, %v3476
      %v3478 = vpop.f32.mrb[0].mxu0
      %3479 = vmatprep.mubr.f32.mxu0 0.0
      %3480 = vmatmul.mubr.f32.gmra.mrb[0].mxu0 %v3362
      %v3481 = vpop.f32.mrb[0].mxu0
      %v3482 = vadd.f32 %v3349, %v3481
      %v3483 = vpop.f32.mrb[0].mxu0
      %3484 = vmatprep.mubr.f32.mxu0 0.0
      %3485 = vmatmul.mubr.f32.gmra.mrb[0].mxu0 %v3365
      %v3486 = vpop.f32.mrb[0].mxu0
      %v3487 = vadd.f32 %v3349, %v3486
      %v3488 = vpop.f32.mrb[0].mxu0
      %3489 = vmatprep.mubr.f32.mxu0 0.0
      %3490 = vmatmul.mubr.f32.gmra.mrb[0].mxu0 %v3368
      %v3491 = vpop.f32.mrb[0].mxu0
      %v3492 = vadd.f32 %v3349, %v3491
      %v3493 = vpop.f32.mrb[0].mxu0
      %3494 = vmatprep.mubr.f32.mxu0 0.0
      %3495 = vmatmul.mubr.f32.gmra.mrb[0].mxu0 %v3371
      %v3496 = vpop.f32.mrb[0].mxu0
      %v3497 = vadd.f32 %v3349, %v3496
      %v3498 = vpop.f32.mrb[0].mxu0
      %3499 = vmatprep.mubr.f32.mxu0 0.0
      %3500 = vmatmul.mubr.f32.gmra.mrb[0].mxu0 %v3374
      %v3501 = vpop.f32.mrb[0].mxu0
      %v3502 = vadd.f32 %v3349, %v3501
      %v3503 = vpop.f32.mrb[0].mxu0
      %3504 = vmatprep.mubr.f32.mxu0 0.0
      %3505 = vmatmul.mubr.f32.gmra.mrb[0].mxu0 %v3377
      %v3506 = vpop.f32.mrb[0].mxu0
      %v3507 = vadd.f32 %v3349, %v3506
      %v3508 = vpop.f32.mrb[0].mxu0
      %3509 = vmatprep.mubr.f32.mxu0 0.0
      %3510 = vmatmul.mubr.f32.gmra.mrb[0].mxu0 %v3380
      %v3511 = vpop.f32.mrb[0].mxu0
      %v3512 = vadd.f32 %v3349, %v3511
      %v3513 = vpop.f32.mrb[0].mxu0
      %3514 = vmatprep.mubr.f32.mxu0 0.0
      %3515 = vmatmul.mubr.f32.gmra.mrb[0].mxu0 %v3383
      %v3516 = vpop.f32.mrb[0].mxu0
      %v3517 = vadd.f32 %v3349, %v3516
      %v3518 = vpop.f32.mrb[0].mxu0
      %3519 = vmatprep.mubr.f32.mxu0 0.0
      %3520 = vmatmul.mubr.f32.gmra.mrb[0].mxu0 %v3386
      %v3521 = vpop.f32.mrb[0].mxu0
      %v3522 = vadd.f32 %v3349, %v3521
      %v3523 = vpop.f32.mrb[0].mxu0
      %3524 = vmatprep.mubr.f32.mxu0 0.0
      %3525 = vmatmul.mubr.f32.gmra.mrb[0].mxu0 %v3389
      %v3526 = vpop.f32.mrb[0].mxu0
      %v3527 = vadd.f32 %v3349, %v3526
      %v3528 = vpop.f32.mrb[0].mxu0
      %3529 = vmatprep.mubr.f32.mxu0 0.0
      %3530 = vmatmul.mubr.f32.gmra.mrb[0].mxu0 %v3392
      %v3531 = vpop.f32.mrb[0].mxu0
      %v3532 = vadd.f32 %v3349, %v3531
      %v3533 = vpop.f32.mrb[0].mxu0
      %3534 = vmatprep.mubr.f32.mxu0 0.0
      %3535 = vmatmul.mubr.f32.gmra.mrb[0].mxu0 %v3395
      %v3536 = vpop.f32.mrb[0].mxu0
      %v3537 = vadd.f32 %v3349, %v3536
      %v3538 = vpop.f32.mrb[0].mxu0
      %3539 = vmatprep.mubr.f32.mxu0 0.0
      %3540 = vmatmul.mubr.f32.gmra.mrb[0].mxu0 %v3398
      %v3541 = vpop.f32.mrb[0].mxu0
      %v3542 = vadd.f32 %v3349, %v3541
      %v3543 = vpop.f32.mrb[0].mxu0
      %3544 = vdwg.mxu0
      %v3545 = vmax.f32 %v3467, 0.0
      %v3546 = vmax.f32 %v3472, 0.0
      %v3547 = vmax.f32 %v3477, 0.0
      %v3548 = vmax.f32 %v3482, 0.0
      %v3549 = vmax.f32 %v3487, 0.0
      %v3550 = vmax.f32 %v3492, 0.0
      %v3551 = vmax.f32 %v3497, 0.0
      %v3552 = vmax.f32 %v3502, 0.0
      %v3553 = vmax.f32 %v3507, 0.0
      %v3554 = vmax.f32 %v3512, 0.0
      %v3555 = vmax.f32 %v3517, 0.0
      %v3556 = vmax.f32 %v3522, 0.0
      %v3557 = vmax.f32 %v3527, 0.0
      %v3558 = vmax.f32 %v3532, 0.0
      %v3559 = vmax.f32 %v3537, 0.0
      %v3560 = vmax.f32 %v3542, 0.0
      %3561 = vst.msk [vmem:[%s224] sm:$0xff] %vm336, %v3545
      %3562 = vst.msk [vmem:[%s224 + $0x8] sm:$0xff] %vm336, %v3546
      %3563 = vst.msk [vmem:[%s224 + $0x10] sm:$0xff] %vm336, %v3547
      %3564 = vst.msk [vmem:[%s224 + $0x18] sm:$0xff] %vm336, %v3548
      %3565 = vst.msk [vmem:[%s224 + $0x20] sm:$0xff] %vm336, %v3549
      %3566 = vst.msk [vmem:[%s224 + $0x28] sm:$0xff] %vm336, %v3550
      %3567 = vst.msk [vmem:[%s224 + $0x30] sm:$0xff] %vm336, %v3551
      %3568 = vst.msk [vmem:[%s224 + $0x38] sm:$0xff] %vm336, %v3552
      %3569 = vst.msk [vmem:[%s224 + $0x40] sm:$0xff] %vm336, %v3553
      %3570 = vst.msk [vmem:[%s224 + $0x48] sm:$0xff] %vm336, %v3554
      %3571 = vst.msk [vmem:[%s224 + $0x50] sm:$0xff] %vm336, %v3555
      %3572 = vst.msk [vmem:[%s224 + $0x58] sm:$0xff] %vm336, %v3556
      %3573 = vst.msk [vmem:[%s224 + $0x60] sm:$0xff] %vm336, %v3557
      %3574 = vst.msk [vmem:[%s224 + $0x68] sm:$0xff] %vm336, %v3558
      %3575 = vst.msk [vmem:[%s224 + $0x70] sm:$0xff] %vm336, %v3559
      %3576 = vst.msk [vmem:[%s224 + $0x78] sm:$0xff] %vm336, %v3560
      %s3577 = scalar_lea.vmem [#allocation3], 192
      %v3578 = vld [vmem:[%s3577] sm:$0xff]
      %v3579 = vld [vmem:[%s3577 + $0x8] sm:$0xff]
      %v3580 = vld [vmem:[%s3577 + $0x18] sm:$0xff]
      %v3581 = vld [vmem:[%s3577 + $0x20] sm:$0xff]
      %v3582 = vld [vmem:[%s3577 + $0x30] sm:$0xff]
      %v3583 = vld [vmem:[%s3577 + $0x38] sm:$0xff]
      %v3584 = vld [vmem:[%s3577 + $0x48] sm:$0xff]
      %v3585 = vld [vmem:[%s3577 + $0x50] sm:$0xff]
      %v3586 = vld [vmem:[%s3577 + $0x60] sm:$0xff]
      %v3587 = vld [vmem:[%s3577 + $0x68] sm:$0xff]
      %v3588 = vld [vmem:[%s3577 + $0x78] sm:$0xff]
      %v3589 = vld [vmem:[%s3577 + $0x80] sm:$0xff]
      %v3590 = vld [vmem:[%s3577 + $0x90] sm:$0xff]
      %v3591 = vld [vmem:[%s3577 + $0x98] sm:$0xff]
      %v3592 = vld [vmem:[%s3577 + $0xa8] sm:$0xff]
      %v3593 = vld [vmem:[%s3577 + $0xb0] sm:$0xff]
      %3594 = vst.msk [vmem:[#allocation5] sm:$0xff] %vm336, %v3578
      %3595 = vst.msk [vmem:[#allocation5 + $0x8] sm:$0xff] %vm336, %v3579
      %3596 = vst.msk [vmem:[#allocation5 + $0x10] sm:$0xff] %vm336, %v3580
      %3597 = vst.msk [vmem:[#allocation5 + $0x18] sm:$0xff] %vm336, %v3581
      %3598 = vst.msk [vmem:[#allocation5 + $0x20] sm:$0xff] %vm336, %v3582
      %3599 = vst.msk [vmem:[#allocation5 + $0x28] sm:$0xff] %vm336, %v3583
      %3600 = vst.msk [vmem:[#allocation5 + $0x30] sm:$0xff] %vm336, %v3584
      %3601 = vst.msk [vmem:[#allocation5 + $0x38] sm:$0xff] %vm336, %v3585
      %3602 = vst.msk [vmem:[#allocation5 + $0x40] sm:$0xff] %vm336, %v3586
      %3603 = vst.msk [vmem:[#allocation5 + $0x48] sm:$0xff] %vm336, %v3587
      %3604 = vst.msk [vmem:[#allocation5 + $0x50] sm:$0xff] %vm336, %v3588
      %3605 = vst.msk [vmem:[#allocation5 + $0x58] sm:$0xff] %vm336, %v3589
      %3606 = vst.msk [vmem:[#allocation5 + $0x60] sm:$0xff] %vm336, %v3590
      %3607 = vst.msk [vmem:[#allocation5 + $0x68] sm:$0xff] %vm336, %v3591
      %3608 = vst.msk [vmem:[#allocation5 + $0x70] sm:$0xff] %vm336, %v3592
      %3609 = vst.msk [vmem:[#allocation5 + $0x78] sm:$0xff] %vm336, %v3593
      %v3610 = vld [vmem:[%s3577 + $0x1] sm:$0xff]
      %v3611 = vld [vmem:[%s3577 + $0x9] sm:$0xff]
      %v3612 = vld [vmem:[%s3577 + $0x19] sm:$0xff]
      %v3613 = vld [vmem:[%s3577 + $0x21] sm:$0xff]
      %v3614 = vld [vmem:[%s3577 + $0x31] sm:$0xff]
      %v3615 = vld [vmem:[%s3577 + $0x39] sm:$0xff]
      %v3616 = vld [vmem:[%s3577 + $0x49] sm:$0xff]
      %v3617 = vld [vmem:[%s3577 + $0x51] sm:$0xff]
      %v3618 = vld [vmem:[%s3577 + $0x61] sm:$0xff]
      %v3619 = vld [vmem:[%s3577 + $0x69] sm:$0xff]
      %v3620 = vld [vmem:[%s3577 + $0x79] sm:$0xff]
      %v3621 = vld [vmem:[%s3577 + $0x81] sm:$0xff]
      %v3622 = vld [vmem:[%s3577 + $0x91] sm:$0xff]
      %v3623 = vld [vmem:[%s3577 + $0x99] sm:$0xff]
      %v3624 = vld [vmem:[%s3577 + $0xa9] sm:$0xff]
      %v3625 = vld [vmem:[%s3577 + $0xb1] sm:$0xff]
      %3642 = vrot.lane.b32.xlu0 %v3610, 8
      %v3643 = vpop.permute.xlu0 %3642
      %3644 = vrot.lane.b32.xlu0 %v3611, 8
      %v3645 = vpop.permute.xlu0 %3644
      %3646 = vrot.lane.b32.xlu0 %v3612, 8
      %v3647 = vpop.permute.xlu0 %3646
      %3648 = vrot.lane.b32.xlu0 %v3613, 8
      %v3649 = vpop.permute.xlu0 %3648
      %3650 = vrot.lane.b32.xlu0 %v3614, 8
      %v3651 = vpop.permute.xlu0 %3650
      %3652 = vrot.lane.b32.xlu0 %v3615, 8
      %v3653 = vpop.permute.xlu0 %3652
      %3654 = vrot.lane.b32.xlu0 %v3616, 8
      %v3655 = vpop.permute.xlu0 %3654
      %3656 = vrot.lane.b32.xlu0 %v3617, 8
      %v3657 = vpop.permute.xlu0 %3656
      %3658 = vrot.lane.b32.xlu0 %v3618, 8
      %v3659 = vpop.permute.xlu0 %3658
      %3660 = vrot.lane.b32.xlu0 %v3619, 8
      %v3661 = vpop.permute.xlu0 %3660
      %3662 = vrot.lane.b32.xlu0 %v3620, 8
      %v3663 = vpop.permute.xlu0 %3662
      %3664 = vrot.lane.b32.xlu0 %v3621, 8
      %v3665 = vpop.permute.xlu0 %3664
      %3666 = vrot.lane.b32.xlu0 %v3622, 8
      %v3667 = vpop.permute.xlu0 %3666
      %3668 = vrot.lane.b32.xlu0 %v3623, 8
      %v3669 = vpop.permute.xlu0 %3668
      %3670 = vrot.lane.b32.xlu0 %v3624, 8
      %v3671 = vpop.permute.xlu0 %3670
      %3672 = vrot.lane.b32.xlu0 %v3625, 8
      %v3673 = vpop.permute.xlu0 %3672
      %3690 = vst.msk [vmem:[#allocation5] sm:$0xff] %vm2622, %v3643
      %3691 = vst.msk [vmem:[#allocation5 + $0x8] sm:$0xff] %vm2622, %v3645
      %3692 = vst.msk [vmem:[#allocation5 + $0x10] sm:$0xff] %vm2622, %v3647
      %3693 = vst.msk [vmem:[#allocation5 + $0x18] sm:$0xff] %vm2622, %v3649
      %3694 = vst.msk [vmem:[#allocation5 + $0x20] sm:$0xff] %vm2622, %v3651
      %3695 = vst.msk [vmem:[#allocation5 + $0x28] sm:$0xff] %vm2622, %v3653
      %3696 = vst.msk [vmem:[#allocation5 + $0x30] sm:$0xff] %vm2622, %v3655
      %3697 = vst.msk [vmem:[#allocation5 + $0x38] sm:$0xff] %vm2622, %v3657
      %3698 = vst.msk [vmem:[#allocation5 + $0x40] sm:$0xff] %vm2622, %v3659
      %3699 = vst.msk [vmem:[#allocation5 + $0x48] sm:$0xff] %vm2622, %v3661
      %3700 = vst.msk [vmem:[#allocation5 + $0x50] sm:$0xff] %vm2622, %v3663
      %3701 = vst.msk [vmem:[#allocation5 + $0x58] sm:$0xff] %vm2622, %v3665
      %3702 = vst.msk [vmem:[#allocation5 + $0x60] sm:$0xff] %vm2622, %v3667
      %3703 = vst.msk [vmem:[#allocation5 + $0x68] sm:$0xff] %vm2622, %v3669
      %3704 = vst.msk [vmem:[#allocation5 + $0x70] sm:$0xff] %vm2622, %v3671
      %3705 = vst.msk [vmem:[#allocation5 + $0x78] sm:$0xff] %vm2622, %v3673
      %v3706 = vld [vmem:[%s3577 + $0x2] sm:$0xff]
      %v3707 = vld [vmem:[%s3577 + $0xa] sm:$0xff]
      %v3708 = vld [vmem:[%s3577 + $0x1a] sm:$0xff]
      %v3709 = vld [vmem:[%s3577 + $0x22] sm:$0xff]
      %v3710 = vld [vmem:[%s3577 + $0x32] sm:$0xff]
      %v3711 = vld [vmem:[%s3577 + $0x3a] sm:$0xff]
      %v3712 = vld [vmem:[%s3577 + $0x4a] sm:$0xff]
      %v3713 = vld [vmem:[%s3577 + $0x52] sm:$0xff]
      %v3714 = vld [vmem:[%s3577 + $0x62] sm:$0xff]
      %v3715 = vld [vmem:[%s3577 + $0x6a] sm:$0xff]
      %v3716 = vld [vmem:[%s3577 + $0x7a] sm:$0xff]
      %v3717 = vld [vmem:[%s3577 + $0x82] sm:$0xff]
      %v3718 = vld [vmem:[%s3577 + $0x92] sm:$0xff]
      %v3719 = vld [vmem:[%s3577 + $0x9a] sm:$0xff]
      %v3720 = vld [vmem:[%s3577 + $0xaa] sm:$0xff]
      %v3721 = vld [vmem:[%s3577 + $0xb2] sm:$0xff]
      %3738 = vrot.lane.b32.xlu0 %v3706, 16
      %v3739 = vpop.permute.xlu0 %3738
      %3740 = vrot.lane.b32.xlu0 %v3707, 16
      %v3741 = vpop.permute.xlu0 %3740
      %3742 = vrot.lane.b32.xlu0 %v3708, 16
      %v3743 = vpop.permute.xlu0 %3742
      %3744 = vrot.lane.b32.xlu0 %v3709, 16
      %v3745 = vpop.permute.xlu0 %3744
      %3746 = vrot.lane.b32.xlu0 %v3710, 16
      %v3747 = vpop.permute.xlu0 %3746
      %3748 = vrot.lane.b32.xlu0 %v3711, 16
      %v3749 = vpop.permute.xlu0 %3748
      %3750 = vrot.lane.b32.xlu0 %v3712, 16
      %v3751 = vpop.permute.xlu0 %3750
      %3752 = vrot.lane.b32.xlu0 %v3713, 16
      %v3753 = vpop.permute.xlu0 %3752
      %3754 = vrot.lane.b32.xlu0 %v3714, 16
      %v3755 = vpop.permute.xlu0 %3754
      %3756 = vrot.lane.b32.xlu0 %v3715, 16
      %v3757 = vpop.permute.xlu0 %3756
      %3758 = vrot.lane.b32.xlu0 %v3716, 16
      %v3759 = vpop.permute.xlu0 %3758
      %3760 = vrot.lane.b32.xlu0 %v3717, 16
      %v3761 = vpop.permute.xlu0 %3760
      %3762 = vrot.lane.b32.xlu0 %v3718, 16
      %v3763 = vpop.permute.xlu0 %3762
      %3764 = vrot.lane.b32.xlu0 %v3719, 16
      %v3765 = vpop.permute.xlu0 %3764
      %3766 = vrot.lane.b32.xlu0 %v3720, 16
      %v3767 = vpop.permute.xlu0 %3766
      %3768 = vrot.lane.b32.xlu0 %v3721, 16
      %v3769 = vpop.permute.xlu0 %3768
      %3786 = vst.msk [vmem:[#allocation5] sm:$0xff] %vm2719, %v3739
      %3787 = vst.msk [vmem:[#allocation5 + $0x8] sm:$0xff] %vm2719, %v3741
      %3788 = vst.msk [vmem:[#allocation5 + $0x10] sm:$0xff] %vm2719, %v3743
      %3789 = vst.msk [vmem:[#allocation5 + $0x18] sm:$0xff] %vm2719, %v3745
      %3790 = vst.msk [vmem:[#allocation5 + $0x20] sm:$0xff] %vm2719, %v3747
      %3791 = vst.msk [vmem:[#allocation5 + $0x28] sm:$0xff] %vm2719, %v3749
      %3792 = vst.msk [vmem:[#allocation5 + $0x30] sm:$0xff] %vm2719, %v3751
      %3793 = vst.msk [vmem:[#allocation5 + $0x38] sm:$0xff] %vm2719, %v3753
      %3794 = vst.msk [vmem:[#allocation5 + $0x40] sm:$0xff] %vm2719, %v3755
      %3795 = vst.msk [vmem:[#allocation5 + $0x48] sm:$0xff] %vm2719, %v3757
      %3796 = vst.msk [vmem:[#allocation5 + $0x50] sm:$0xff] %vm2719, %v3759
      %3797 = vst.msk [vmem:[#allocation5 + $0x58] sm:$0xff] %vm2719, %v3761
      %3798 = vst.msk [vmem:[#allocation5 + $0x60] sm:$0xff] %vm2719, %v3763
      %3799 = vst.msk [vmem:[#allocation5 + $0x68] sm:$0xff] %vm2719, %v3765
      %3800 = vst.msk [vmem:[#allocation5 + $0x70] sm:$0xff] %vm2719, %v3767
      %3801 = vst.msk [vmem:[#allocation5 + $0x78] sm:$0xff] %vm2719, %v3769
      %v3802 = vld [vmem:[%s2493] sm:$0xff]
      %v3803 = vld [vmem:[%s2493 + $0x8] sm:$0xff]
      %v3804 = vld [vmem:[%s2493 + $0x18] sm:$0xff]
      %v3805 = vld [vmem:[%s2493 + $0x20] sm:$0xff]
      %v3806 = vld [vmem:[%s2493 + $0x30] sm:$0xff]
      %v3807 = vld [vmem:[%s2493 + $0x38] sm:$0xff]
      %v3808 = vld [vmem:[%s2493 + $0x48] sm:$0xff]
      %v3809 = vld [vmem:[%s2493 + $0x50] sm:$0xff]
      %v3810 = vld [vmem:[%s2493 + $0x60] sm:$0xff]
      %v3811 = vld [vmem:[%s2493 + $0x68] sm:$0xff]
      %v3812 = vld [vmem:[%s2493 + $0x78] sm:$0xff]
      %v3813 = vld [vmem:[%s2493 + $0x80] sm:$0xff]
      %v3814 = vld [vmem:[%s2493 + $0x90] sm:$0xff]
      %v3815 = vld [vmem:[%s2493 + $0x98] sm:$0xff]
      %v3816 = vld [vmem:[%s2493 + $0xa8] sm:$0xff]
      %v3817 = vld [vmem:[%s2493 + $0xb0] sm:$0xff]
      %3834 = vrot.lane.b32.xlu0 %v3802, 24
      %v3835 = vpop.permute.xlu0 %3834
      %3836 = vrot.lane.b32.xlu0 %v3803, 24
      %v3837 = vpop.permute.xlu0 %3836
      %3838 = vrot.lane.b32.xlu0 %v3804, 24
      %v3839 = vpop.permute.xlu0 %3838
      %3840 = vrot.lane.b32.xlu0 %v3805, 24
      %v3841 = vpop.permute.xlu0 %3840
      %3842 = vrot.lane.b32.xlu0 %v3806, 24
      %v3843 = vpop.permute.xlu0 %3842
      %3844 = vrot.lane.b32.xlu0 %v3807, 24
      %v3845 = vpop.permute.xlu0 %3844
      %3846 = vrot.lane.b32.xlu0 %v3808, 24
      %v3847 = vpop.permute.xlu0 %3846
      %3848 = vrot.lane.b32.xlu0 %v3809, 24
      %v3849 = vpop.permute.xlu0 %3848
      %3850 = vrot.lane.b32.xlu0 %v3810, 24
      %v3851 = vpop.permute.xlu0 %3850
      %3852 = vrot.lane.b32.xlu0 %v3811, 24
      %v3853 = vpop.permute.xlu0 %3852
      %3854 = vrot.lane.b32.xlu0 %v3812, 24
      %v3855 = vpop.permute.xlu0 %3854
      %3856 = vrot.lane.b32.xlu0 %v3813, 24
      %v3857 = vpop.permute.xlu0 %3856
      %3858 = vrot.lane.b32.xlu0 %v3814, 24
      %v3859 = vpop.permute.xlu0 %3858
      %3860 = vrot.lane.b32.xlu0 %v3815, 24
      %v3861 = vpop.permute.xlu0 %3860
      %3862 = vrot.lane.b32.xlu0 %v3816, 24
      %v3863 = vpop.permute.xlu0 %3862
      %3864 = vrot.lane.b32.xlu0 %v3817, 24
      %v3865 = vpop.permute.xlu0 %3864
      %3882 = vst.msk [vmem:[#allocation5] sm:$0xff] %vm2816, %v3835
      %3883 = vst.msk [vmem:[#allocation5 + $0x8] sm:$0xff] %vm2816, %v3837
      %3884 = vst.msk [vmem:[#allocation5 + $0x10] sm:$0xff] %vm2816, %v3839
      %3885 = vst.msk [vmem:[#allocation5 + $0x18] sm:$0xff] %vm2816, %v3841
      %3886 = vst.msk [vmem:[#allocation5 + $0x20] sm:$0xff] %vm2816, %v3843
      %3887 = vst.msk [vmem:[#allocation5 + $0x28] sm:$0xff] %vm2816, %v3845
      %3888 = vst.msk [vmem:[#allocation5 + $0x30] sm:$0xff] %vm2816, %v3847
      %3889 = vst.msk [vmem:[#allocation5 + $0x38] sm:$0xff] %vm2816, %v3849
      %3890 = vst.msk [vmem:[#allocation5 + $0x40] sm:$0xff] %vm2816, %v3851
      %3891 = vst.msk [vmem:[#allocation5 + $0x48] sm:$0xff] %vm2816, %v3853
      %3892 = vst.msk [vmem:[#allocation5 + $0x50] sm:$0xff] %vm2816, %v3855
      %3893 = vst.msk [vmem:[#allocation5 + $0x58] sm:$0xff] %vm2816, %v3857
      %3894 = vst.msk [vmem:[#allocation5 + $0x60] sm:$0xff] %vm2816, %v3859
      %3895 = vst.msk [vmem:[#allocation5 + $0x68] sm:$0xff] %vm2816, %v3861
      %3896 = vst.msk [vmem:[#allocation5 + $0x70] sm:$0xff] %vm2816, %v3863
      %3897 = vst.msk [vmem:[#allocation5 + $0x78] sm:$0xff] %vm2816, %v3865
      %v3898 = vld [vmem:[%s2493 + $0x1] sm:$0xff]
      %v3899 = vld [vmem:[%s2493 + $0x9] sm:$0xff]
      %v3900 = vld [vmem:[%s2493 + $0x19] sm:$0xff]
      %v3901 = vld [vmem:[%s2493 + $0x21] sm:$0xff]
      %v3902 = vld [vmem:[%s2493 + $0x31] sm:$0xff]
      %v3903 = vld [vmem:[%s2493 + $0x39] sm:$0xff]
      %v3904 = vld [vmem:[%s2493 + $0x49] sm:$0xff]
      %v3905 = vld [vmem:[%s2493 + $0x51] sm:$0xff]
      %v3906 = vld [vmem:[%s2493 + $0x61] sm:$0xff]
      %v3907 = vld [vmem:[%s2493 + $0x69] sm:$0xff]
      %v3908 = vld [vmem:[%s2493 + $0x79] sm:$0xff]
      %v3909 = vld [vmem:[%s2493 + $0x81] sm:$0xff]
      %v3910 = vld [vmem:[%s2493 + $0x91] sm:$0xff]
      %v3911 = vld [vmem:[%s2493 + $0x99] sm:$0xff]
      %v3912 = vld [vmem:[%s2493 + $0xa9] sm:$0xff]
      %v3913 = vld [vmem:[%s2493 + $0xb1] sm:$0xff]
      %3930 = vrot.lane.b32.xlu0 %v3898, 32
      %v3931 = vpop.permute.xlu0 %3930
      %3932 = vrot.lane.b32.xlu0 %v3899, 32
      %v3933 = vpop.permute.xlu0 %3932
      %3934 = vrot.lane.b32.xlu0 %v3900, 32
      %v3935 = vpop.permute.xlu0 %3934
      %3936 = vrot.lane.b32.xlu0 %v3901, 32
      %v3937 = vpop.permute.xlu0 %3936
      %3938 = vrot.lane.b32.xlu0 %v3902, 32
      %v3939 = vpop.permute.xlu0 %3938
      %3940 = vrot.lane.b32.xlu0 %v3903, 32
      %v3941 = vpop.permute.xlu0 %3940
      %3942 = vrot.lane.b32.xlu0 %v3904, 32
      %v3943 = vpop.permute.xlu0 %3942
      %3944 = vrot.lane.b32.xlu0 %v3905, 32
      %v3945 = vpop.permute.xlu0 %3944
      %3946 = vrot.lane.b32.xlu0 %v3906, 32
      %v3947 = vpop.permute.xlu0 %3946
      %3948 = vrot.lane.b32.xlu0 %v3907, 32
      %v3949 = vpop.permute.xlu0 %3948
      %3950 = vrot.lane.b32.xlu0 %v3908, 32
      %v3951 = vpop.permute.xlu0 %3950
      %3952 = vrot.lane.b32.xlu0 %v3909, 32
      %v3953 = vpop.permute.xlu0 %3952
      %3954 = vrot.lane.b32.xlu0 %v3910, 32
      %v3955 = vpop.permute.xlu0 %3954
      %3956 = vrot.lane.b32.xlu0 %v3911, 32
      %v3957 = vpop.permute.xlu0 %3956
      %3958 = vrot.lane.b32.xlu0 %v3912, 32
      %v3959 = vpop.permute.xlu0 %3958
      %3960 = vrot.lane.b32.xlu0 %v3913, 32
      %v3961 = vpop.permute.xlu0 %3960
      %3978 = vst.msk [vmem:[#allocation5] sm:$0xff] %vm2913, %v3931
      %3979 = vst.msk [vmem:[#allocation5 + $0x8] sm:$0xff] %vm2913, %v3933
      %3980 = vst.msk [vmem:[#allocation5 + $0x10] sm:$0xff] %vm2913, %v3935
      %3981 = vst.msk [vmem:[#allocation5 + $0x18] sm:$0xff] %vm2913, %v3937
      %3982 = vst.msk [vmem:[#allocation5 + $0x20] sm:$0xff] %vm2913, %v3939
      %3983 = vst.msk [vmem:[#allocation5 + $0x28] sm:$0xff] %vm2913, %v3941
      %3984 = vst.msk [vmem:[#allocation5 + $0x30] sm:$0xff] %vm2913, %v3943
      %3985 = vst.msk [vmem:[#allocation5 + $0x38] sm:$0xff] %vm2913, %v3945
      %3986 = vst.msk [vmem:[#allocation5 + $0x40] sm:$0xff] %vm2913, %v3947
      %3987 = vst.msk [vmem:[#allocation5 + $0x48] sm:$0xff] %vm2913, %v3949
      %3988 = vst.msk [vmem:[#allocation5 + $0x50] sm:$0xff] %vm2913, %v3951
      %3989 = vst.msk [vmem:[#allocation5 + $0x58] sm:$0xff] %vm2913, %v3953
      %3990 = vst.msk [vmem:[#allocation5 + $0x60] sm:$0xff] %vm2913, %v3955
      %3991 = vst.msk [vmem:[#allocation5 + $0x68] sm:$0xff] %vm2913, %v3957
      %3992 = vst.msk [vmem:[#allocation5 + $0x70] sm:$0xff] %vm2913, %v3959
      %3993 = vst.msk [vmem:[#allocation5 + $0x78] sm:$0xff] %vm2913, %v3961
      %v3994 = vld [vmem:[%s2493 + $0x2] sm:$0xff]
      %v3995 = vld [vmem:[%s2493 + $0xa] sm:$0xff]
      %v3996 = vld [vmem:[%s2493 + $0x1a] sm:$0xff]
      %v3997 = vld [vmem:[%s2493 + $0x22] sm:$0xff]
      %v3998 = vld [vmem:[%s2493 + $0x32] sm:$0xff]
      %v3999 = vld [vmem:[%s2493 + $0x3a] sm:$0xff]
      %v4000 = vld [vmem:[%s2493 + $0x4a] sm:$0xff]
      %v4001 = vld [vmem:[%s2493 + $0x52] sm:$0xff]
      %v4002 = vld [vmem:[%s2493 + $0x62] sm:$0xff]
      %v4003 = vld [vmem:[%s2493 + $0x6a] sm:$0xff]
      %v4004 = vld [vmem:[%s2493 + $0x7a] sm:$0xff]
      %v4005 = vld [vmem:[%s2493 + $0x82] sm:$0xff]
      %v4006 = vld [vmem:[%s2493 + $0x92] sm:$0xff]
      %v4007 = vld [vmem:[%s2493 + $0x9a] sm:$0xff]
      %v4008 = vld [vmem:[%s2493 + $0xaa] sm:$0xff]
      %v4009 = vld [vmem:[%s2493 + $0xb2] sm:$0xff]
      %4026 = vrot.lane.b32.xlu0 %v3994, 40
      %v4027 = vpop.permute.xlu0 %4026
      %4028 = vrot.lane.b32.xlu0 %v3995, 40
      %v4029 = vpop.permute.xlu0 %4028
      %4030 = vrot.lane.b32.xlu0 %v3996, 40
      %v4031 = vpop.permute.xlu0 %4030
      %4032 = vrot.lane.b32.xlu0 %v3997, 40
      %v4033 = vpop.permute.xlu0 %4032
      %4034 = vrot.lane.b32.xlu0 %v3998, 40
      %v4035 = vpop.permute.xlu0 %4034
      %4036 = vrot.lane.b32.xlu0 %v3999, 40
      %v4037 = vpop.permute.xlu0 %4036
      %4038 = vrot.lane.b32.xlu0 %v4000, 40
      %v4039 = vpop.permute.xlu0 %4038
      %4040 = vrot.lane.b32.xlu0 %v4001, 40
      %v4041 = vpop.permute.xlu0 %4040
      %4042 = vrot.lane.b32.xlu0 %v4002, 40
      %v4043 = vpop.permute.xlu0 %4042
      %4044 = vrot.lane.b32.xlu0 %v4003, 40
      %v4045 = vpop.permute.xlu0 %4044
      %4046 = vrot.lane.b32.xlu0 %v4004, 40
      %v4047 = vpop.permute.xlu0 %4046
      %4048 = vrot.lane.b32.xlu0 %v4005, 40
      %v4049 = vpop.permute.xlu0 %4048
      %4050 = vrot.lane.b32.xlu0 %v4006, 40
      %v4051 = vpop.permute.xlu0 %4050
      %4052 = vrot.lane.b32.xlu0 %v4007, 40
      %v4053 = vpop.permute.xlu0 %4052
      %4054 = vrot.lane.b32.xlu0 %v4008, 40
      %v4055 = vpop.permute.xlu0 %4054
      %4056 = vrot.lane.b32.xlu0 %v4009, 40
      %v4057 = vpop.permute.xlu0 %4056
      %4074 = vst.msk [vmem:[#allocation5] sm:$0xff] %vm3010, %v4027
      %4075 = vst.msk [vmem:[#allocation5 + $0x8] sm:$0xff] %vm3010, %v4029
      %4076 = vst.msk [vmem:[#allocation5 + $0x10] sm:$0xff] %vm3010, %v4031
      %4077 = vst.msk [vmem:[#allocation5 + $0x18] sm:$0xff] %vm3010, %v4033
      %4078 = vst.msk [vmem:[#allocation5 + $0x20] sm:$0xff] %vm3010, %v4035
      %4079 = vst.msk [vmem:[#allocation5 + $0x28] sm:$0xff] %vm3010, %v4037
      %4080 = vst.msk [vmem:[#allocation5 + $0x30] sm:$0xff] %vm3010, %v4039
      %4081 = vst.msk [vmem:[#allocation5 + $0x38] sm:$0xff] %vm3010, %v4041
      %4082 = vst.msk [vmem:[#allocation5 + $0x40] sm:$0xff] %vm3010, %v4043
      %4083 = vst.msk [vmem:[#allocation5 + $0x48] sm:$0xff] %vm3010, %v4045
      %4084 = vst.msk [vmem:[#allocation5 + $0x50] sm:$0xff] %vm3010, %v4047
      %4085 = vst.msk [vmem:[#allocation5 + $0x58] sm:$0xff] %vm3010, %v4049
      %4086 = vst.msk [vmem:[#allocation5 + $0x60] sm:$0xff] %vm3010, %v4051
      %4087 = vst.msk [vmem:[#allocation5 + $0x68] sm:$0xff] %vm3010, %v4053
      %4088 = vst.msk [vmem:[#allocation5 + $0x70] sm:$0xff] %vm3010, %v4055
      %4089 = vst.msk [vmem:[#allocation5 + $0x78] sm:$0xff] %vm3010, %v4057
      %s4090 = scalar_lea.vmem [#allocation3], 240
      %v4091 = vld [vmem:[%s4090] sm:$0xff]
      %v4092 = vld [vmem:[%s4090 + $0x8] sm:$0xff]
      %v4093 = vld [vmem:[%s4090 + $0x18] sm:$0xff]
      %v4094 = vld [vmem:[%s4090 + $0x20] sm:$0xff]
      %v4095 = vld [vmem:[%s4090 + $0x30] sm:$0xff]
      %v4096 = vld [vmem:[%s4090 + $0x38] sm:$0xff]
      %v4097 = vld [vmem:[%s4090 + $0x48] sm:$0xff]
      %v4098 = vld [vmem:[%s4090 + $0x50] sm:$0xff]
      %v4099 = vld [vmem:[%s4090 + $0x60] sm:$0xff]
      %v4100 = vld [vmem:[%s4090 + $0x68] sm:$0xff]
      %v4101 = vld [vmem:[%s4090 + $0x78] sm:$0xff]
      %v4102 = vld [vmem:[%s4090 + $0x80] sm:$0xff]
      %v4103 = vld [vmem:[%s4090 + $0x90] sm:$0xff]
      %v4104 = vld [vmem:[%s4090 + $0x98] sm:$0xff]
      %v4105 = vld [vmem:[%s4090 + $0xa8] sm:$0xff]
      %v4106 = vld [vmem:[%s4090 + $0xb0] sm:$0xff]
      %4123 = vrot.lane.b32.xlu0 %v4091, 48
      %v4124 = vpop.permute.xlu0 %4123
      %4125 = vrot.lane.b32.xlu0 %v4092, 48
      %v4126 = vpop.permute.xlu0 %4125
      %4127 = vrot.lane.b32.xlu0 %v4093, 48
      %v4128 = vpop.permute.xlu0 %4127
      %4129 = vrot.lane.b32.xlu0 %v4094, 48
      %v4130 = vpop.permute.xlu0 %4129
      %4131 = vrot.lane.b32.xlu0 %v4095, 48
      %v4132 = vpop.permute.xlu0 %4131
      %4133 = vrot.lane.b32.xlu0 %v4096, 48
      %v4134 = vpop.permute.xlu0 %4133
      %4135 = vrot.lane.b32.xlu0 %v4097, 48
      %v4136 = vpop.permute.xlu0 %4135
      %4137 = vrot.lane.b32.xlu0 %v4098, 48
      %v4138 = vpop.permute.xlu0 %4137
      %4139 = vrot.lane.b32.xlu0 %v4099, 48
      %v4140 = vpop.permute.xlu0 %4139
      %4141 = vrot.lane.b32.xlu0 %v4100, 48
      %v4142 = vpop.permute.xlu0 %4141
      %4143 = vrot.lane.b32.xlu0 %v4101, 48
      %v4144 = vpop.permute.xlu0 %4143
      %4145 = vrot.lane.b32.xlu0 %v4102, 48
      %v4146 = vpop.permute.xlu0 %4145
      %4147 = vrot.lane.b32.xlu0 %v4103, 48
      %v4148 = vpop.permute.xlu0 %4147
      %4149 = vrot.lane.b32.xlu0 %v4104, 48
      %v4150 = vpop.permute.xlu0 %4149
      %4151 = vrot.lane.b32.xlu0 %v4105, 48
      %v4152 = vpop.permute.xlu0 %4151
      %4153 = vrot.lane.b32.xlu0 %v4106, 48
      %v4154 = vpop.permute.xlu0 %4153
      %4171 = vst.msk [vmem:[#allocation5] sm:$0xff] %vm3108, %v4124
      %4172 = vst.msk [vmem:[#allocation5 + $0x8] sm:$0xff] %vm3108, %v4126
      %4173 = vst.msk [vmem:[#allocation5 + $0x10] sm:$0xff] %vm3108, %v4128
      %4174 = vst.msk [vmem:[#allocation5 + $0x18] sm:$0xff] %vm3108, %v4130
      %4175 = vst.msk [vmem:[#allocation5 + $0x20] sm:$0xff] %vm3108, %v4132
      %4176 = vst.msk [vmem:[#allocation5 + $0x28] sm:$0xff] %vm3108, %v4134
      %4177 = vst.msk [vmem:[#allocation5 + $0x30] sm:$0xff] %vm3108, %v4136
      %4178 = vst.msk [vmem:[#allocation5 + $0x38] sm:$0xff] %vm3108, %v4138
      %4179 = vst.msk [vmem:[#allocation5 + $0x40] sm:$0xff] %vm3108, %v4140
      %4180 = vst.msk [vmem:[#allocation5 + $0x48] sm:$0xff] %vm3108, %v4142
      %4181 = vst.msk [vmem:[#allocation5 + $0x50] sm:$0xff] %vm3108, %v4144
      %4182 = vst.msk [vmem:[#allocation5 + $0x58] sm:$0xff] %vm3108, %v4146
      %4183 = vst.msk [vmem:[#allocation5 + $0x60] sm:$0xff] %vm3108, %v4148
      %4184 = vst.msk [vmem:[#allocation5 + $0x68] sm:$0xff] %vm3108, %v4150
      %4185 = vst.msk [vmem:[#allocation5 + $0x70] sm:$0xff] %vm3108, %v4152
      %4186 = vst.msk [vmem:[#allocation5 + $0x78] sm:$0xff] %vm3108, %v4154
      %v4187 = vld [vmem:[%s4090 + $0x1] sm:$0xff]
      %v4188 = vld [vmem:[%s4090 + $0x9] sm:$0xff]
      %v4189 = vld [vmem:[%s4090 + $0x19] sm:$0xff]
      %v4190 = vld [vmem:[%s4090 + $0x21] sm:$0xff]
      %v4191 = vld [vmem:[%s4090 + $0x31] sm:$0xff]
      %v4192 = vld [vmem:[%s4090 + $0x39] sm:$0xff]
      %v4193 = vld [vmem:[%s4090 + $0x49] sm:$0xff]
      %v4194 = vld [vmem:[%s4090 + $0x51] sm:$0xff]
      %v4195 = vld [vmem:[%s4090 + $0x61] sm:$0xff]
      %v4196 = vld [vmem:[%s4090 + $0x69] sm:$0xff]
      %v4197 = vld [vmem:[%s4090 + $0x79] sm:$0xff]
      %v4198 = vld [vmem:[%s4090 + $0x81] sm:$0xff]
      %v4199 = vld [vmem:[%s4090 + $0x91] sm:$0xff]
      %v4200 = vld [vmem:[%s4090 + $0x99] sm:$0xff]
      %v4201 = vld [vmem:[%s4090 + $0xa9] sm:$0xff]
      %v4202 = vld [vmem:[%s4090 + $0xb1] sm:$0xff]
      %4219 = vrot.lane.b32.xlu0 %v4187, 56
      %v4220 = vpop.permute.xlu0 %4219
      %4221 = vrot.lane.b32.xlu0 %v4188, 56
      %v4222 = vpop.permute.xlu0 %4221
      %4223 = vrot.lane.b32.xlu0 %v4189, 56
      %v4224 = vpop.permute.xlu0 %4223
      %4225 = vrot.lane.b32.xlu0 %v4190, 56
      %v4226 = vpop.permute.xlu0 %4225
      %4227 = vrot.lane.b32.xlu0 %v4191, 56
      %v4228 = vpop.permute.xlu0 %4227
      %4229 = vrot.lane.b32.xlu0 %v4192, 56
      %v4230 = vpop.permute.xlu0 %4229
      %4231 = vrot.lane.b32.xlu0 %v4193, 56
      %v4232 = vpop.permute.xlu0 %4231
      %4233 = vrot.lane.b32.xlu0 %v4194, 56
      %v4234 = vpop.permute.xlu0 %4233
      %4235 = vrot.lane.b32.xlu0 %v4195, 56
      %v4236 = vpop.permute.xlu0 %4235
      %4237 = vrot.lane.b32.xlu0 %v4196, 56
      %v4238 = vpop.permute.xlu0 %4237
      %4239 = vrot.lane.b32.xlu0 %v4197, 56
      %v4240 = vpop.permute.xlu0 %4239
      %4241 = vrot.lane.b32.xlu0 %v4198, 56
      %v4242 = vpop.permute.xlu0 %4241
      %4243 = vrot.lane.b32.xlu0 %v4199, 56
      %v4244 = vpop.permute.xlu0 %4243
      %4245 = vrot.lane.b32.xlu0 %v4200, 56
      %v4246 = vpop.permute.xlu0 %4245
      %4247 = vrot.lane.b32.xlu0 %v4201, 56
      %v4248 = vpop.permute.xlu0 %4247
      %4249 = vrot.lane.b32.xlu0 %v4202, 56
      %v4250 = vpop.permute.xlu0 %4249
      %4267 = vst.msk [vmem:[#allocation5] sm:$0xff] %vm3205, %v4220
      %4268 = vst.msk [vmem:[#allocation5 + $0x8] sm:$0xff] %vm3205, %v4222
      %4269 = vst.msk [vmem:[#allocation5 + $0x10] sm:$0xff] %vm3205, %v4224
      %4270 = vst.msk [vmem:[#allocation5 + $0x18] sm:$0xff] %vm3205, %v4226
      %4271 = vst.msk [vmem:[#allocation5 + $0x20] sm:$0xff] %vm3205, %v4228
      %4272 = vst.msk [vmem:[#allocation5 + $0x28] sm:$0xff] %vm3205, %v4230
      %4273 = vst.msk [vmem:[#allocation5 + $0x30] sm:$0xff] %vm3205, %v4232
      %4274 = vst.msk [vmem:[#allocation5 + $0x38] sm:$0xff] %vm3205, %v4234
      %4275 = vst.msk [vmem:[#allocation5 + $0x40] sm:$0xff] %vm3205, %v4236
      %4276 = vst.msk [vmem:[#allocation5 + $0x48] sm:$0xff] %vm3205, %v4238
      %4277 = vst.msk [vmem:[#allocation5 + $0x50] sm:$0xff] %vm3205, %v4240
      %4278 = vst.msk [vmem:[#allocation5 + $0x58] sm:$0xff] %vm3205, %v4242
      %4279 = vst.msk [vmem:[#allocation5 + $0x60] sm:$0xff] %vm3205, %v4244
      %4280 = vst.msk [vmem:[#allocation5 + $0x68] sm:$0xff] %vm3205, %v4246
      %4281 = vst.msk [vmem:[#allocation5 + $0x70] sm:$0xff] %vm3205, %v4248
      %4282 = vst.msk [vmem:[#allocation5 + $0x78] sm:$0xff] %vm3205, %v4250
      %v4283 = vld [vmem:[%s4090 + $0x2] sm:$0xff]
      %v4284 = vld [vmem:[%s4090 + $0xa] sm:$0xff]
      %v4285 = vld [vmem:[%s4090 + $0x1a] sm:$0xff]
      %v4286 = vld [vmem:[%s4090 + $0x22] sm:$0xff]
      %v4287 = vld [vmem:[%s4090 + $0x32] sm:$0xff]
      %v4288 = vld [vmem:[%s4090 + $0x3a] sm:$0xff]
      %v4289 = vld [vmem:[%s4090 + $0x4a] sm:$0xff]
      %v4290 = vld [vmem:[%s4090 + $0x52] sm:$0xff]
      %v4291 = vld [vmem:[%s4090 + $0x62] sm:$0xff]
      %v4292 = vld [vmem:[%s4090 + $0x6a] sm:$0xff]
      %v4293 = vld [vmem:[%s4090 + $0x7a] sm:$0xff]
      %v4294 = vld [vmem:[%s4090 + $0x82] sm:$0xff]
      %v4295 = vld [vmem:[%s4090 + $0x92] sm:$0xff]
      %v4296 = vld [vmem:[%s4090 + $0x9a] sm:$0xff]
      %v4297 = vld [vmem:[%s4090 + $0xaa] sm:$0xff]
      %v4298 = vld [vmem:[%s4090 + $0xb2] sm:$0xff]
      %4315 = vrot.lane.b32.xlu0 %v4283, 64
      %v4316 = vpop.permute.xlu0 %4315
      %4317 = vrot.lane.b32.xlu0 %v4284, 64
      %v4318 = vpop.permute.xlu0 %4317
      %4319 = vrot.lane.b32.xlu0 %v4285, 64
      %v4320 = vpop.permute.xlu0 %4319
      %4321 = vrot.lane.b32.xlu0 %v4286, 64
      %v4322 = vpop.permute.xlu0 %4321
      %4323 = vrot.lane.b32.xlu0 %v4287, 64
      %v4324 = vpop.permute.xlu0 %4323
      %4325 = vrot.lane.b32.xlu0 %v4288, 64
      %v4326 = vpop.permute.xlu0 %4325
      %4327 = vrot.lane.b32.xlu0 %v4289, 64
      %v4328 = vpop.permute.xlu0 %4327
      %4329 = vrot.lane.b32.xlu0 %v4290, 64
      %v4330 = vpop.permute.xlu0 %4329
      %4331 = vrot.lane.b32.xlu0 %v4291, 64
      %v4332 = vpop.permute.xlu0 %4331
      %4333 = vrot.lane.b32.xlu0 %v4292, 64
      %v4334 = vpop.permute.xlu0 %4333
      %4335 = vrot.lane.b32.xlu0 %v4293, 64
      %v4336 = vpop.permute.xlu0 %4335
      %4337 = vrot.lane.b32.xlu0 %v4294, 64
      %v4338 = vpop.permute.xlu0 %4337
      %4339 = vrot.lane.b32.xlu0 %v4295, 64
      %v4340 = vpop.permute.xlu0 %4339
      %4341 = vrot.lane.b32.xlu0 %v4296, 64
      %v4342 = vpop.permute.xlu0 %4341
      %4343 = vrot.lane.b32.xlu0 %v4297, 64
      %v4344 = vpop.permute.xlu0 %4343
      %4345 = vrot.lane.b32.xlu0 %v4298, 64
      %v4346 = vpop.permute.xlu0 %4345
      %4363 = vst.msk [vmem:[#allocation5] sm:$0xff] %vm3302, %v4316
      %4364 = vst.msk [vmem:[#allocation5 + $0x8] sm:$0xff] %vm3302, %v4318
      %4365 = vst.msk [vmem:[#allocation5 + $0x10] sm:$0xff] %vm3302, %v4320
      %4366 = vst.msk [vmem:[#allocation5 + $0x18] sm:$0xff] %vm3302, %v4322
      %4367 = vst.msk [vmem:[#allocation5 + $0x20] sm:$0xff] %vm3302, %v4324
      %4368 = vst.msk [vmem:[#allocation5 + $0x28] sm:$0xff] %vm3302, %v4326
      %4369 = vst.msk [vmem:[#allocation5 + $0x30] sm:$0xff] %vm3302, %v4328
      %4370 = vst.msk [vmem:[#allocation5 + $0x38] sm:$0xff] %vm3302, %v4330
      %4371 = vst.msk [vmem:[#allocation5 + $0x40] sm:$0xff] %vm3302, %v4332
      %4372 = vst.msk [vmem:[#allocation5 + $0x48] sm:$0xff] %vm3302, %v4334
      %4373 = vst.msk [vmem:[#allocation5 + $0x50] sm:$0xff] %vm3302, %v4336
      %4374 = vst.msk [vmem:[#allocation5 + $0x58] sm:$0xff] %vm3302, %v4338
      %4375 = vst.msk [vmem:[#allocation5 + $0x60] sm:$0xff] %vm3302, %v4340
      %4376 = vst.msk [vmem:[#allocation5 + $0x68] sm:$0xff] %vm3302, %v4342
      %4377 = vst.msk [vmem:[#allocation5 + $0x70] sm:$0xff] %vm3302, %v4344
      %4378 = vst.msk [vmem:[#allocation5 + $0x78] sm:$0xff] %vm3302, %v4346
      %v4379 = vld [vmem:[#allocation5] sm:$0xff]
      %v4380 = vld [vmem:[#allocation5 + $0x8] sm:$0xff]
      %v4381 = vld [vmem:[#allocation5 + $0x10] sm:$0xff]
      %v4382 = vld [vmem:[#allocation5 + $0x18] sm:$0xff]
      %v4383 = vld [vmem:[#allocation5 + $0x20] sm:$0xff]
      %v4384 = vld [vmem:[#allocation5 + $0x28] sm:$0xff]
      %v4385 = vld [vmem:[#allocation5 + $0x30] sm:$0xff]
      %v4386 = vld [vmem:[#allocation5 + $0x38] sm:$0xff]
      %v4387 = vld [vmem:[#allocation5 + $0x40] sm:$0xff]
      %v4388 = vld [vmem:[#allocation5 + $0x48] sm:$0xff]
      %v4389 = vld [vmem:[#allocation5 + $0x50] sm:$0xff]
      %v4390 = vld [vmem:[#allocation5 + $0x58] sm:$0xff]
      %v4391 = vld [vmem:[#allocation5 + $0x60] sm:$0xff]
      %v4392 = vld [vmem:[#allocation5 + $0x68] sm:$0xff]
      %v4393 = vld [vmem:[#allocation5 + $0x70] sm:$0xff]
      %v4394 = vld [vmem:[#allocation5 + $0x78] sm:$0xff]
      %v4395 = vld [vmem:[%s3] sm:$0xff]
      %v4396 = vld [vmem:[%s3 + $0x8] sm:$0xff]
      %v4397 = vld [vmem:[%s3 + $0x10] sm:$0xff]
      %v4398 = vld [vmem:[%s3 + $0x18] sm:$0xff]
      %v4399 = vld [vmem:[%s3 + $0x20] sm:$0xff]
      %v4400 = vld [vmem:[%s3 + $0x28] sm:$0xff]
      %v4401 = vld [vmem:[%s3 + $0x30] sm:$0xff]
      %v4402 = vld [vmem:[%s3 + $0x38] sm:$0xff]
      %v4403 = vld [vmem:[%s3 + $0x40] sm:$0xff]
      %v4404 = vld [vmem:[%s4] sm:$0x1]
      %v4406 = vlaneseq
      %v4407 = vshrl.u32 %v4406, 7
      %v4408 = vsub.s32 0, %v4407
      %v4409 = vrot.slane %v4404, %v4408
      %v4412 = vsel %vm3351, %v4379, 0
      %v4415 = vsel %vm3351, %v4380, 0
      %v4418 = vsel %vm3351, %v4381, 0
      %v4421 = vsel %vm3351, %v4382, 0
      %v4424 = vsel %vm3351, %v4383, 0
      %v4427 = vsel %vm3351, %v4384, 0
      %v4430 = vsel %vm3351, %v4385, 0
      %v4433 = vsel %vm3351, %v4386, 0
      %v4436 = vsel %vm3351, %v4387, 0
      %v4439 = vsel %vm3351, %v4388, 0
      %v4442 = vsel %vm3351, %v4389, 0
      %v4445 = vsel %vm3351, %v4390, 0
      %v4448 = vsel %vm3351, %v4391, 0
      %v4451 = vsel %vm3351, %v4392, 0
      %v4454 = vsel %vm3351, %v4393, 0
      %v4457 = vsel %vm3351, %v4394, 0
      %4459 = vmatprep.subr.mxu0 0.0
      %4460 = vmatpush1.msra.mxu0 %v4395
      %4461 = vmatprep.subr.mxu0 0.0
      %4462 = vmatpush1.msra.mxu0 %v4396
      %4463 = vmatprep.subr.mxu0 0.0
      %4464 = vmatpush1.msra.mxu0 %v4397
      %4465 = vmatprep.subr.mxu0 0.0
      %4466 = vmatpush1.msra.mxu0 %v4398
      %4467 = vmatprep.subr.mxu0 0.0
      %4468 = vmatpush1.msra.mxu0 %v4399
      %4469 = vmatprep.subr.mxu0 0.0
      %4470 = vmatpush1.msra.mxu0 %v4400
      %4471 = vmatprep.subr.mxu0 0.0
      %4472 = vmatpush1.msra.mxu0 %v4401
      %4473 = vmatprep.subr.mxu0 0.0
      %4474 = vmatpush1.msra.mxu0 %v4402
      %4475 = vmatprep.subr.mxu0 0.0
      %4476 = vmatpush1.msra.mxu0 %v4403
      %4477 = vmatprep.subr.mxu0 0.0
      %4478 = vmatpush1.msra.mxu0 0.0
      %4479 = vmatprep.subr.mxu0 0.0
      %4480 = vmatpush1.msra.mxu0 0.0
      %4481 = vmatprep.subr.mxu0 0.0
      %4482 = vmatpush1.msra.mxu0 0.0
      %4483 = vmatprep.subr.mxu0 0.0
      %4484 = vmatpush1.msra.mxu0 0.0
      %4485 = vmatprep.subr.mxu0 0.0
      %4486 = vmatpush1.msra.mxu0 0.0
      %4487 = vmatprep.subr.mxu0 0.0
      %4488 = vmatpush1.msra.mxu0 0.0
      %4489 = vmatprep.subr.mxu0 0.0
      %4490 = vmatpush1.msra.mxu0 0.0
      %4491 = vmatprep.subr.mxu0 0.0
      %4492 = vmatpush1.msra.mxu0 0.0
      %4493 = vmatprep.subr.mxu0 0.0
      %4494 = vmatpush1.msra.mxu0 0.0
      %4495 = vmatprep.subr.mxu0 0.0
      %4496 = vmatpush1.msra.mxu0 0.0
      %4497 = vmatprep.subr.mxu0 0.0
      %4498 = vmatpush1.msra.mxu0 0.0
      %4499 = vmatprep.subr.mxu0 0.0
      %4500 = vmatpush1.msra.mxu0 0.0
      %4501 = vmatprep.subr.mxu0 0.0
      %4502 = vmatpush1.msra.mxu0 0.0
      %4503 = vmatprep.subr.mxu0 0.0
      %4504 = vmatpush1.msra.mxu0 0.0
      %4505 = vmatprep.subr.mxu0 0.0
      %4506 = vmatpush1.msra.mxu0 0.0
      %4507 = vmatprep.subr.mxu0 0.0
      %4508 = vmatpush1.msra.mxu0 0.0
      %4509 = vmatprep.subr.mxu0 0.0
      %4510 = vmatpush1.msra.mxu0 0.0
      %4511 = vmatprep.subr.mxu0 0.0
      %4512 = vmatpush1.msra.mxu0 0.0
      %4513 = vmatprep.subr.mxu0 0.0
      %4514 = vmatpush1.msra.mxu0 0.0
      %4515 = vmatprep.subr.mxu0 0.0
      %4516 = vmatpush1.msra.mxu0 0.0
      %4517 = vmatprep.subr.mxu0 0.0
      %4518 = vmatpush1.msra.mxu0 0.0
      %4519 = vmatprep.subr.mxu0 0.0
      %4520 = vmatpush1.msra.mxu0 0.0
      %4521 = vmatprep.subr.mxu0 0.0
      %4522 = vmatpush1.msra.mxu0 0.0
      %4523 = vmatprep.mubr.f32.mxu0 0.0
      %4524 = vmatmul.mubr.f32.gmra.mrb[0].mxu0 %v4412
      %v4525 = vpop.f32.mrb[0].mxu0
      %v4526 = vadd.f32 %v4409, %v4525
      %v4527 = vpop.f32.mrb[0].mxu0
      %4528 = vmatprep.mubr.f32.mxu0 0.0
      %4529 = vmatmul.mubr.f32.gmra.mrb[0].mxu0 %v4415
      %v4530 = vpop.f32.mrb[0].mxu0
      %v4531 = vadd.f32 %v4409, %v4530
      %v4532 = vpop.f32.mrb[0].mxu0
      %4533 = vmatprep.mubr.f32.mxu0 0.0
      %4534 = vmatmul.mubr.f32.gmra.mrb[0].mxu0 %v4418
      %v4535 = vpop.f32.mrb[0].mxu0
      %v4536 = vadd.f32 %v4409, %v4535
      %v4537 = vpop.f32.mrb[0].mxu0
      %4538 = vmatprep.mubr.f32.mxu0 0.0
      %4539 = vmatmul.mubr.f32.gmra.mrb[0].mxu0 %v4421
      %v4540 = vpop.f32.mrb[0].mxu0
      %v4541 = vadd.f32 %v4409, %v4540
      %v4542 = vpop.f32.mrb[0].mxu0
      %4543 = vmatprep.mubr.f32.mxu0 0.0
      %4544 = vmatmul.mubr.f32.gmra.mrb[0].mxu0 %v4424
      %v4545 = vpop.f32.mrb[0].mxu0
      %v4546 = vadd.f32 %v4409, %v4545
      %v4547 = vpop.f32.mrb[0].mxu0
      %4548 = vmatprep.mubr.f32.mxu0 0.0
      %4549 = vmatmul.mubr.f32.gmra.mrb[0].mxu0 %v4427
      %v4550 = vpop.f32.mrb[0].mxu0
      %v4551 = vadd.f32 %v4409, %v4550
      %v4552 = vpop.f32.mrb[0].mxu0
      %4553 = vmatprep.mubr.f32.mxu0 0.0
      %4554 = vmatmul.mubr.f32.gmra.mrb[0].mxu0 %v4430
      %v4555 = vpop.f32.mrb[0].mxu0
      %v4556 = vadd.f32 %v4409, %v4555
      %v4557 = vpop.f32.mrb[0].mxu0
      %4558 = vmatprep.mubr.f32.mxu0 0.0
      %4559 = vmatmul.mubr.f32.gmra.mrb[0].mxu0 %v4433
      %v4560 = vpop.f32.mrb[0].mxu0
      %v4561 = vadd.f32 %v4409, %v4560
      %v4562 = vpop.f32.mrb[0].mxu0
      %4563 = vmatprep.mubr.f32.mxu0 0.0
      %4564 = vmatmul.mubr.f32.gmra.mrb[0].mxu0 %v4436
      %v4565 = vpop.f32.mrb[0].mxu0
      %v4566 = vadd.f32 %v4409, %v4565
      %v4567 = vpop.f32.mrb[0].mxu0
      %4568 = vmatprep.mubr.f32.mxu0 0.0
      %4569 = vmatmul.mubr.f32.gmra.mrb[0].mxu0 %v4439
      %v4570 = vpop.f32.mrb[0].mxu0
      %v4571 = vadd.f32 %v4409, %v4570
      %v4572 = vpop.f32.mrb[0].mxu0
      %4573 = vmatprep.mubr.f32.mxu0 0.0
      %4574 = vmatmul.mubr.f32.gmra.mrb[0].mxu0 %v4442
      %v4575 = vpop.f32.mrb[0].mxu0
      %v4576 = vadd.f32 %v4409, %v4575
      %v4577 = vpop.f32.mrb[0].mxu0
      %4578 = vmatprep.mubr.f32.mxu0 0.0
      %4579 = vmatmul.mubr.f32.gmra.mrb[0].mxu0 %v4445
      %v4580 = vpop.f32.mrb[0].mxu0
      %v4581 = vadd.f32 %v4409, %v4580
      %v4582 = vpop.f32.mrb[0].mxu0
      %4583 = vmatprep.mubr.f32.mxu0 0.0
      %4584 = vmatmul.mubr.f32.gmra.mrb[0].mxu0 %v4448
      %v4585 = vpop.f32.mrb[0].mxu0
      %v4586 = vadd.f32 %v4409, %v4585
      %v4587 = vpop.f32.mrb[0].mxu0
      %4588 = vmatprep.mubr.f32.mxu0 0.0
      %4589 = vmatmul.mubr.f32.gmra.mrb[0].mxu0 %v4451
      %v4590 = vpop.f32.mrb[0].mxu0
      %v4591 = vadd.f32 %v4409, %v4590
      %v4592 = vpop.f32.mrb[0].mxu0
      %4593 = vmatprep.mubr.f32.mxu0 0.0
      %4594 = vmatmul.mubr.f32.gmra.mrb[0].mxu0 %v4454
      %v4595 = vpop.f32.mrb[0].mxu0
      %v4596 = vadd.f32 %v4409, %v4595
      %v4597 = vpop.f32.mrb[0].mxu0
      %4598 = vmatprep.mubr.f32.mxu0 0.0
      %4599 = vmatmul.mubr.f32.gmra.mrb[0].mxu0 %v4457
      %v4600 = vpop.f32.mrb[0].mxu0
      %v4601 = vadd.f32 %v4409, %v4600
      %v4602 = vpop.f32.mrb[0].mxu0
      %4603 = vdwg.mxu0
      %v4604 = vmax.f32 %v4526, 0.0
      %v4605 = vmax.f32 %v4531, 0.0
      %v4606 = vmax.f32 %v4536, 0.0
      %v4607 = vmax.f32 %v4541, 0.0
      %v4608 = vmax.f32 %v4546, 0.0
      %v4609 = vmax.f32 %v4551, 0.0
      %v4610 = vmax.f32 %v4556, 0.0
      %v4611 = vmax.f32 %v4561, 0.0
      %v4612 = vmax.f32 %v4566, 0.0
      %v4613 = vmax.f32 %v4571, 0.0
      %v4614 = vmax.f32 %v4576, 0.0
      %v4615 = vmax.f32 %v4581, 0.0
      %v4616 = vmax.f32 %v4586, 0.0
      %v4617 = vmax.f32 %v4591, 0.0
      %v4618 = vmax.f32 %v4596, 0.0
      %v4619 = vmax.f32 %v4601, 0.0
      %s4620 = scalar_lea.vmem %s224, 128
      %4621 = vst.msk [vmem:[%s4620] sm:$0xff] %vm336, %v4604
      %4622 = vst.msk [vmem:[%s4620 + $0x8] sm:$0xff] %vm336, %v4605
      %4623 = vst.msk [vmem:[%s4620 + $0x10] sm:$0xff] %vm336, %v4606
      %4624 = vst.msk [vmem:[%s4620 + $0x18] sm:$0xff] %vm336, %v4607
      %4625 = vst.msk [vmem:[%s4620 + $0x20] sm:$0xff] %vm336, %v4608
      %4626 = vst.msk [vmem:[%s4620 + $0x28] sm:$0xff] %vm336, %v4609
      %4627 = vst.msk [vmem:[%s4620 + $0x30] sm:$0xff] %vm336, %v4610
      %4628 = vst.msk [vmem:[%s4620 + $0x38] sm:$0xff] %vm336, %v4611
      %4629 = vst.msk [vmem:[%s4620 + $0x40] sm:$0xff] %vm336, %v4612
      %4630 = vst.msk [vmem:[%s4620 + $0x48] sm:$0xff] %vm336, %v4613
      %4631 = vst.msk [vmem:[%s4620 + $0x50] sm:$0xff] %vm336, %v4614
      %4632 = vst.msk [vmem:[%s4620 + $0x58] sm:$0xff] %vm336, %v4615
      %4633 = vst.msk [vmem:[%s4620 + $0x60] sm:$0xff] %vm336, %v4616
      %4634 = vst.msk [vmem:[%s4620 + $0x68] sm:$0xff] %vm336, %v4617
      %4635 = vst.msk [vmem:[%s4620 + $0x70] sm:$0xff] %vm336, %v4618
      %4636 = vst.msk [vmem:[%s4620 + $0x78] sm:$0xff] %vm336, %v4619
      %p4637 = scmp.lt.s32.totalorder %s16, 1
      %s4638 = scalar_select %p4637, %s16, 1
      %s4639 = smul.addr %s4638, 32
      %s4640 = smul.addr %s4639, 8
      %s4641 = scalar_lea.vmem %s5, %s4640
      // Predicated region
      $region41: #{double_conv_forward.1} parent=39 // pred_check
        %p4642 = pneg %p144
      $region42: #{double_conv_forward.1} parent=39 // pred_check_branch
        %4644 = sbr.rel (%p4642) target = $region44
      $region43: #{double_conv_forward.1} parent=39 // pred_region
        _
      $region44: #{double_conv_forward.1} parent=39 // pred_fallthru
        _
    $region40: #{double_conv_forward.1} parent=5 // pred_fallthru
      _
    %p4645 = scmp.le.s32.totalorder 2, %s11
    // Predicated region
    $region45: #{double_conv_forward.1} parent=5 // pred_check
      %p4646 = pneg %p4645
    $region46: #{double_conv_forward.1} parent=5 // pred_check_branch
      %4648 = sbr.rel (%p4646) target = $region48
    $region47: #{double_conv_forward.1} parent=5 // pred_region
      %s4649 = ssub.s32 %s11, 2
      // Predicated region
      $region49: #{double_conv_forward.1} parent=47 // pred_check
        %p4650 = pneg %p150
      $region50: #{double_conv_forward.1} parent=47 // pred_check_branch
        %4652 = sbr.rel (%p4650) target = $region52
      $region51: #{double_conv_forward.1} parent=47 // pred_region
        %p4653 = scmp.lt.s32.totalorder %s17, 1
        %s4654 = scalar_select %p4653, %s17, 1
        %s4655 = smul.addr %s4654, 32
        %s4656 = smul.addr %s4655, 8
        %s4657 = scalar_lea.vmem %s5, %s4656
      $region52: #{double_conv_forward.1} parent=47 // pred_fallthru
        _
    $region48: #{double_conv_forward.1} parent=5 // pred_fallthru
      _
  $region6: #{double_conv_forward.1} parent=0 // loop_footer
    %s15 = sadd.s32 1, %s11
  $region7: #{double_conv_forward.1} parent=0 // loop_footer_branch
    %10 = sbr.rel target = $region3
  $region8: #{double_conv_forward.1} parent=0 // loop_exit
    _

</llo_original>
